<compile_context>
chip_gen: v5e
topology: v5e:2x2
jax: 0.10.0
libtpu: 0.0.40
codegen_flags: <defaults>
</compile_context>

<pallas_src>
import jax
import jax.numpy as jnp
from jax.experimental import pallas as pl
from jax.experimental.pallas import tpu as pltpu

H1 = 512   # layer1 maxout output features
H2 = 256   # layer2 maxout output features

MAX_TILE_B = 512   # target rows per grid step (keeps footprint well under 32 MiB)


def _round_up(v, m):
    return ((v + m - 1) // m) * m


def _cdiv(a, b):
    return -(-a // b)


def maxout_net_kernel(x_ref, w1_ref, b1_ref, w2_ref, b2_ref, w3_ref, b3_ref,
                      logits_ref, xarg_ref):
    # ---- layer1: fused maxout(Linear(D -> 2*512)) then ReLU ----
    # x arrives as bf16 (cast fused into the wrapper's reshape) -> half the DMA.
    y1 = jnp.dot(x_ref[...], w1_ref[...],
                 preferred_element_type=jnp.float32) + b1_ref[...]
    h1 = jnp.maximum(jnp.maximum(y1[:, :H1], y1[:, H1:]), 0.0)

    # ---- layer2: fused maxout(Linear(512 -> 2*256)) then ReLU ----
    y2 = jnp.dot(h1.astype(jnp.bfloat16), w2_ref[...],
                 preferred_element_type=jnp.float32) + b2_ref[...]
    x_arg = jnp.maximum(jnp.maximum(y2[:, :H2], y2[:, H2:]), 0.0)
    xarg_ref[...] = x_arg

    # ---- softmax (dim=1) with normalization deferred past the output matmul ----
    m = jnp.max(x_arg, axis=1, keepdims=True)
    e = jnp.exp(x_arg - m)
    inv_s = pl.reciprocal(jnp.sum(e, axis=1, keepdims=True), approx=True)

    # ---- output linear: 256 -> padded(num_classes), lane-dense 128-wide store ----
    # (e @ W3) * (1/sum) + b3  ==  softmax(x_arg) @ W3 + b3
    logits_ref[...] = (jnp.dot(e.astype(jnp.bfloat16), w3_ref[...],
                               preferred_element_type=jnp.float32) * inv_s
                       + b3_ref[...])


def maxout_network_with_softmax(x_nchw, params, num_classes):
    w1, b1, w2, b2, w3, b3 = params          # kernel-layout params (fused / padded / bf16)
    B = x_nchw.shape[0]
    # torch: x.view(B, -1); cast to bf16 here so it fuses into the reshape producer.
    x = x_nchw.reshape(B, -1).astype(jnp.bfloat16)
    D = x.shape[1]
    D_pad = w1.shape[0]                       # already padded to a multiple of 128
    NC_pad = w3.shape[1]                      # already padded to a multiple of 128

    # Batch tiling: tile divides the padded batch (no 2x fixed-tile rounding waste),
    # targets ~MAX_TILE_B rows per step, and keeps >= 2 steps when B >= 16 so both
    # v7x TensorCores get work under the "parallel" grid axis.
    B8 = _round_up(B, 8)
    n_steps = _cdiv(B8, MAX_TILE_B)
    if B8 >= 16:
        n_steps = max(n_steps, 2)
    tile_b = _round_up(_cdiv(B8, n_steps), 8)
    B_pad = tile_b * n_steps

    # Single fused pad (batch rows + feature lanes), skipped when already aligned.
    pad_b, pad_d = B_pad - B, D_pad - D
    if pad_b or pad_d:
        x = jnp.pad(x, ((0, pad_b), (0, pad_d)))

    grid = (n_steps,)

    def const_spec(arr):
        # Whole-array block, constant index -> fetched once, VMEM-resident across
        # grid steps.  Single-buffered: the default second pipeline buffer would
        # never be used, so reclaim it as VMEM headroom.
        return pl.BlockSpec(arr.shape, lambda i: (0,) * arr.ndim,
                            pipeline_mode=pl.Buffered(1))

    logits, x_arg = pl.pallas_call(
        maxout_net_kernel,
        out_shape=(jax.ShapeDtypeStruct((B_pad, NC_pad), jnp.float32),
                   jax.ShapeDtypeStruct((B_pad, H2), jnp.float32)),
        grid=grid,
        in_specs=[pl.BlockSpec((tile_b, D_pad), lambda i: (i, 0)),
                  const_spec(w1), const_spec(b1),
                  const_spec(w2), const_spec(b2),
                  const_spec(w3), const_spec(b3)],
        out_specs=(pl.BlockSpec((tile_b, NC_pad), lambda i: (i, 0)),
                   pl.BlockSpec((tile_b, H2), lambda i: (i, 0))),
        compiler_params=pltpu.CompilerParams(
            dimension_semantics=("parallel",),
            vmem_limit_bytes=32 << 20),
    )(x, w1, b1, w2, b2, w3, b3)

    return logits[:B, :num_classes], x_arg[:B]


def init_raw_params(key, input_size, num_classes):
    """Deterministic synthetic parameters with PyTorch nn.Linear shapes (out, in)."""
    ks = jax.random.split(key, 6)

    def linear(kw, kb, out_f, in_f):
        bound = 1.0 / (in_f ** 0.5)
        w = jax.random.uniform(kw, (out_f, in_f), jnp.float32, -bound, bound)
        b = jax.random.uniform(kb, (out_f,), jnp.float32, -bound, bound)
        return w, b

    w1, b1 = linear(ks[0], ks[1], H1 * 2, input_size)   # layer1.fc
    w2, b2 = linear(ks[2], ks[3], H2 * 2, H1)           # layer2.fc
    w3, b3 = linear(ks[4], ks[5], num_classes, H2)      # output_layer
    return (w1, b1, w2, b2, w3, b3)


def prepare_params(raw_params, input_size, num_classes):
    """Repack PyTorch-layout params for the kernel: transpose to (in, out),
    de-interleave + fuse the maxout halves, pad K / logit lanes to multiples of
    128, and cast weights to bfloat16 (biases stay f32)."""
    w1, b1, w2, b2, w3, b3 = raw_params
    w1t, w2t, w3t = w1.T, w2.T, w3.T                                # (in, out)

    W1 = jnp.concatenate([w1t[:, 0::2], w1t[:, 1::2]], axis=1)      # (D, 2*H1)
    B1 = jnp.concatenate([b1[0::2], b1[1::2]])[None, :]             # (1, 2*H1)
    W2 = jnp.concatenate([w2t[:, 0::2], w2t[:, 1::2]], axis=1)      # (H1, 2*H2)
    B2 = jnp.concatenate([b2[0::2], b2[1::2]])[None, :]             # (1, 2*H2)

    D_pad = _round_up(input_size, 128)
    if D_pad != input_size:
        W1 = jnp.pad(W1, ((0, D_pad - input_size), (0, 0)))

    NC_pad = _round_up(num_classes, 128)
    W3 = jnp.pad(w3t, ((0, 0), (0, NC_pad - num_classes)))          # (H2, NC_pad)
    B3 = jnp.pad(b3, (0, NC_pad - num_classes))[None, :]            # (1, NC_pad)

    return (W1.astype(jnp.bfloat16), B1,
            W2.astype(jnp.bfloat16), B2,
            W3.astype(jnp.bfloat16), B3)


def reference_forward(x_nchw, raw_params):
    """Pure-JAX f32 reference with exact PyTorch semantics for verification."""
    w1, b1, w2, b2, w3, b3 = raw_params
    B = x_nchw.shape[0]
    x = x_nchw.reshape(B, -1)
    y = x @ w1.T + b1
    y = jnp.max(y.reshape(B, -1, 2), axis=-1)
    h1 = jax.nn.relu(y)
    y = h1 @ w2.T + b2
    y = jnp.max(y.reshape(B, -1, 2), axis=-1)
    x_arg = jax.nn.relu(y)
    p = jax.nn.softmax(x_arg, axis=1)
    logits = p @ w3.T + b3
    return logits, x_arg


if __name__ == "__main__":
    key = jax.random.PRNGKey(0)
    kx, kp = jax.random.split(key)

    B, C, H, W = 2, 4, 16, 16          # input_size = C*H*W = 1024
    num_classes = 10
    input_size = C * H * W

    x = jax.random.normal(kx, (B, C, H, W), jnp.float32)
    raw_params = init_raw_params(kp, input_size, num_classes)
    params = prepare_params(raw_params, input_size, num_classes)

    logits, x_arg = maxout_network_with_softmax(x, params, num_classes)
    jax.block_until_ready((logits, x_arg))

    ref_logits, ref_x_arg = reference_forward(x, raw_params)
    assert logits.shape == (B, num_classes) and x_arg.shape == (B, H2)
    # bf16 weight/activation rounding + approx reciprocal -> loosen tolerance vs f32 ref.
    assert jnp.allclose(logits, ref_logits, atol=2e-2, rtol=2e-2), (
        f"logits max abs err = {float(jnp.max(jnp.abs(logits - ref_logits)))}")
    assert jnp.allclose(x_arg, ref_x_arg, atol=2e-2, rtol=2e-2), (
        f"x_arg max abs err = {float(jnp.max(jnp.abs(x_arg - ref_x_arg)))}")

    print("KERNEL_OK")
</pallas_src>

<mosaic_0001>
module attributes {stable_mosaic.version = 11 : i64} {
  func.func @maxout_net_kernel(%arg0: i32, %arg1: memref<8x1024xbf16, #tpu.memory_space<vmem>>, %arg2: memref<1024x1024xbf16, #tpu.memory_space<vmem>>, %arg3: memref<1x1024xf32, #tpu.memory_space<vmem>>, %arg4: memref<512x512xbf16, #tpu.memory_space<vmem>>, %arg5: memref<1x512xf32, #tpu.memory_space<vmem>>, %arg6: memref<256x128xbf16, #tpu.memory_space<vmem>>, %arg7: memref<1x128xf32, #tpu.memory_space<vmem>>, %arg8: memref<8x128xf32, #tpu.memory_space<vmem>>, %arg9: memref<8x256xf32, #tpu.memory_space<vmem>>) attributes {dimension_semantics = [#tpu.dimension_semantics<parallel>], iteration_bounds = array<i64: 1>, scalar_prefetch = 0 : i64, scratch_operands = 0 : i64, tpu.core_type = #tpu.core_type<tc>, window_params = [{transform_indices = @transform_0, window_bounds = array<i64: 8, 1024>}, {pipeline_mode = #tpu.pipeline_mode<synchronous>, transform_indices = @transform_1, window_bounds = array<i64: 1024, 1024>}, {pipeline_mode = #tpu.pipeline_mode<synchronous>, transform_indices = @transform_2, window_bounds = array<i64: 1, 1024>}, {pipeline_mode = #tpu.pipeline_mode<synchronous>, transform_indices = @transform_3, window_bounds = array<i64: 512, 512>}, {pipeline_mode = #tpu.pipeline_mode<synchronous>, transform_indices = @transform_4, window_bounds = array<i64: 1, 512>}, {pipeline_mode = #tpu.pipeline_mode<synchronous>, transform_indices = @transform_5, window_bounds = array<i64: 256, 128>}, {pipeline_mode = #tpu.pipeline_mode<synchronous>, transform_indices = @transform_6, window_bounds = array<i64: 1, 128>}, {transform_indices = @transform_7, window_bounds = array<i64: 8, 128>}, {transform_indices = @transform_8, window_bounds = array<i64: 8, 256>}]} {
    %c0 = arith.constant 0 : index
    %c0_0 = arith.constant 0 : index
    %0 = vector.load %arg1[%c0, %c0_0] : memref<8x1024xbf16, #tpu.memory_space<vmem>>, vector<8x1024xbf16>
    %c0_1 = arith.constant 0 : index
    %c0_2 = arith.constant 0 : index
    %1 = vector.load %arg2[%c0_1, %c0_2] : memref<1024x1024xbf16, #tpu.memory_space<vmem>>, vector<1024x1024xbf16>
    %cst = arith.constant dense<0.000000e+00> : vector<8x1024xf32>
    %2 = tpu.matmul %0, %1, %cst {dimension_numbers = #tpu.dot_dimension_numbers<[1], [0], [0], [1], [0, 0, 1, 1], [], []>} : vector<8x1024xbf16>, vector<1024x1024xbf16>, vector<8x1024xf32> -> vector<8x1024xf32>
    %c0_3 = arith.constant 0 : index
    %c0_4 = arith.constant 0 : index
    %3 = vector.load %arg3[%c0_3, %c0_4] : memref<1x1024xf32, #tpu.memory_space<vmem>>, vector<1x1024xf32>
    %4 = vector.broadcast %3 : vector<1x1024xf32> to vector<8x1024xf32>
    %5 = arith.addf %2, %4 : vector<8x1024xf32>
    %6 = vector.extract_strided_slice %5 {offsets = [0, 0], sizes = [8, 512], strides = [1, 1]} : vector<8x1024xf32> to vector<8x512xf32>
    %7 = vector.extract_strided_slice %5 {offsets = [0, 512], sizes = [8, 512], strides = [1, 1]} : vector<8x1024xf32> to vector<8x512xf32>
    %8 = arith.maximumf %6, %7 : vector<8x512xf32>
    %cst_5 = arith.constant 0.000000e+00 : f32
    %9 = vector.broadcast %cst_5 : f32 to vector<8x512xf32>
    %10 = arith.maximumf %8, %9 : vector<8x512xf32>
    %11 = arith.truncf %10 : vector<8x512xf32> to vector<8x512xbf16>
    %c0_6 = arith.constant 0 : index
    %c0_7 = arith.constant 0 : index
    %12 = vector.load %arg4[%c0_6, %c0_7] : memref<512x512xbf16, #tpu.memory_space<vmem>>, vector<512x512xbf16>
    %cst_8 = arith.constant dense<0.000000e+00> : vector<8x512xf32>
    %13 = tpu.matmul %11, %12, %cst_8 {dimension_numbers = #tpu.dot_dimension_numbers<[1], [0], [0], [1], [0, 0, 1, 1], [], []>} : vector<8x512xbf16>, vector<512x512xbf16>, vector<8x512xf32> -> vector<8x512xf32>
    %c0_9 = arith.constant 0 : index
    %c0_10 = arith.constant 0 : index
    %14 = vector.load %arg5[%c0_9, %c0_10] : memref<1x512xf32, #tpu.memory_space<vmem>>, vector<1x512xf32>
    %15 = vector.broadcast %14 : vector<1x512xf32> to vector<8x512xf32>
    %16 = arith.addf %13, %15 : vector<8x512xf32>
    %17 = vector.extract_strided_slice %16 {offsets = [0, 0], sizes = [8, 256], strides = [1, 1]} : vector<8x512xf32> to vector<8x256xf32>
    %18 = vector.extract_strided_slice %16 {offsets = [0, 256], sizes = [8, 256], strides = [1, 1]} : vector<8x512xf32> to vector<8x256xf32>
    %19 = arith.maximumf %17, %18 : vector<8x256xf32>
    %cst_11 = arith.constant 0.000000e+00 : f32
    %20 = vector.broadcast %cst_11 : f32 to vector<8x256xf32>
    %21 = arith.maximumf %19, %20 : vector<8x256xf32>
    %c0_12 = arith.constant 0 : index
    %c0_13 = arith.constant 0 : index
    %22 = vector.load %arg9[%c0_12, %c0_13] : memref<8x256xf32, #tpu.memory_space<vmem>>, vector<8x256xf32>
    tpu.vector_store %arg9[%c0_12, %c0_13], %21 {strides = array<i32>} : memref<8x256xf32, #tpu.memory_space<vmem>>, vector<8x256xf32>,
    %cst_14 = arith.constant dense<0xFF800000> : vector<8xf32>
    %23 = vector.multi_reduction <maximumf>, %21, %cst_14 [1] : vector<8x256xf32> to vector<8xf32>
    %24 = vector.shape_cast %23 : vector<8xf32> to vector<8x1xf32>
    %25 = vector.broadcast %24 : vector<8x1xf32> to vector<8x256xf32>
    %26 = arith.subf %21, %25 : vector<8x256xf32>
    %27 = math.exp %26 : vector<8x256xf32>
    %cst_15 = arith.constant dense<0.000000e+00> : vector<8xf32>
    %28 = vector.multi_reduction <add>, %27, %cst_15 [1] : vector<8x256xf32> to vector<8xf32>
    %29 = vector.shape_cast %28 : vector<8xf32> to vector<8x1xf32>
    %30 = tpu.reciprocal %29 {approx = true} : vector<8x1xf32> -> vector<8x1xf32>
    %31 = arith.truncf %27 : vector<8x256xf32> to vector<8x256xbf16>
    %c0_16 = arith.constant 0 : index
    %c0_17 = arith.constant 0 : index
    %32 = vector.load %arg6[%c0_16, %c0_17] : memref<256x128xbf16, #tpu.memory_space<vmem>>, vector<256x128xbf16>
    %cst_18 = arith.constant dense<0.000000e+00> : vector<8x128xf32>
    %33 = tpu.matmul %31, %32, %cst_18 {dimension_numbers = #tpu.dot_dimension_numbers<[1], [0], [0], [1], [0, 0, 1, 1], [], []>} : vector<8x256xbf16>, vector<256x128xbf16>, vector<8x128xf32> -> vector<8x128xf32>
    %34 = vector.broadcast %30 : vector<8x1xf32> to vector<8x128xf32>
    %35 = arith.mulf %33, %34 : vector<8x128xf32>
    %c0_19 = arith.constant 0 : index
    %c0_20 = arith.constant 0 : index
    %36 = vector.load %arg7[%c0_19, %c0_20] : memref<1x128xf32, #tpu.memory_space<vmem>>, vector<1x128xf32>
    %37 = vector.broadcast %36 : vector<1x128xf32> to vector<8x128xf32>
    %38 = arith.addf %35, %37 : vector<8x128xf32>
    %c0_21 = arith.constant 0 : index
    %c0_22 = arith.constant 0 : index
    %39 = vector.load %arg8[%c0_21, %c0_22] : memref<8x128xf32, #tpu.memory_space<vmem>>, vector<8x128xf32>
    tpu.vector_store %arg8[%c0_21, %c0_22], %38 {strides = array<i32>} : memref<8x128xf32, #tpu.memory_space<vmem>>, vector<8x128xf32>,
    return
  }
  func.func @transform_0(%arg0: i32) -> (i32, i32) {
    %c0_i32 = arith.constant 0 : i32
    %c0_i32_0 = arith.constant 0 : i32
    return %arg0, %c0_i32 : i32, i32
  }
  func.func @transform_1(%arg0: i32) -> (i32, i32) {
    %c0_i32 = arith.constant 0 : i32
    %c0_i32_0 = arith.constant 0 : i32
    %c0_i32_1 = arith.constant 0 : i32
    return %c0_i32, %c0_i32_0 : i32, i32
  }
  func.func @transform_2(%arg0: i32) -> (i32, i32) {
    %c0_i32 = arith.constant 0 : i32
    %c0_i32_0 = arith.constant 0 : i32
    %c0_i32_1 = arith.constant 0 : i32
    return %c0_i32, %c0_i32_0 : i32, i32
  }
  func.func @transform_3(%arg0: i32) -> (i32, i32) {
    %c0_i32 = arith.constant 0 : i32
    %c0_i32_0 = arith.constant 0 : i32
    %c0_i32_1 = arith.constant 0 : i32
    return %c0_i32, %c0_i32_0 : i32, i32
  }
  func.func @transform_4(%arg0: i32) -> (i32, i32) {
    %c0_i32 = arith.constant 0 : i32
    %c0_i32_0 = arith.constant 0 : i32
    %c0_i32_1 = arith.constant 0 : i32
    return %c0_i32, %c0_i32_0 : i32, i32
  }
  func.func @transform_5(%arg0: i32) -> (i32, i32) {
    %c0_i32 = arith.constant 0 : i32
    %c0_i32_0 = arith.constant 0 : i32
    %c0_i32_1 = arith.constant 0 : i32
    return %c0_i32, %c0_i32_0 : i32, i32
  }
  func.func @transform_6(%arg0: i32) -> (i32, i32) {
    %c0_i32 = arith.constant 0 : i32
    %c0_i32_0 = arith.constant 0 : i32
    %c0_i32_1 = arith.constant 0 : i32
    return %c0_i32, %c0_i32_0 : i32, i32
  }
  func.func @transform_7(%arg0: i32) -> (i32, i32) {
    %c0_i32 = arith.constant 0 : i32
    %c0_i32_0 = arith.constant 0 : i32
    return %arg0, %c0_i32 : i32, i32
  }
  func.func @transform_8(%arg0: i32) -> (i32, i32) {
    %c0_i32 = arith.constant 0 : i32
    %c0_i32_0 = arith.constant 0 : i32
    return %arg0, %c0_i32 : i32, i32
  }
}

</mosaic_0001>

<llo_original>
// kernel: tpu_custom_call.1
$region0: #{tpu_custom_call.1}
  #allocation0 [shape = 'u32[]', space=smem, size = 0x4, offset = 0x4, fixed_abs, tag = 'smem constant byte address 0x4 - core index']
  #allocation1 [shape = 'u32[72,128]{1,0:T(1,128)}', space=vmem, size = 0x9000, scoped, tag = 'internal scratch']
  %s0 = inlined_call_operand.hbm [shape: bf16[8,1024], index: 0, kind: input, shape index: {}]
  %s1 = inlined_call_operand.hbm [shape: bf16[1024,1024], index: 1, kind: input, shape index: {}]
  %s2 = inlined_call_operand.hbm [shape: f32[1,1024], index: 2, kind: input, shape index: {}]
  %s3 = inlined_call_operand.hbm [shape: bf16[512,512], index: 3, kind: input, shape index: {}]
  %s4 = inlined_call_operand.hbm [shape: f32[1,512], index: 4, kind: input, shape index: {}]
  %s5 = inlined_call_operand.hbm [shape: bf16[256,128], index: 5, kind: input, shape index: {}]
  %s6 = inlined_call_operand.hbm [shape: f32[1,128], index: 6, kind: input, shape index: {}]
  %s7 = inlined_call_operand.hbm [shape: f32[8,128], index: 7, kind: output, shape index: {0}]
  %s8 = inlined_call_operand.hbm [shape: f32[8,256], index: 8, kind: output, shape index: {1}]
  %9 = xla_tuple %s7, %s8
  %s10 = sld [smem:[#allocation0]]
  $region74: #{tpu_custom_call.1} parent=0
    _
  %s12 = ssub.s32 1, %s10
  %s13 = scalar_select 0, %s12, %s10
  $region1: #{tpu_custom_call.1} parent=0
    #allocation2 [shape = 'u8[16384]{0}', space=vmem, size = 0x4000, scoped, tag = 'input window, operand 0, single buffered']
    #allocation3 [shape = 's32[1]{0}', space=sflag, size = 0x4, scoped, tag = 'scoped memory for tpu_custom_call.1']
    #allocation4 [shape = 's32[1]{0}', space=sflag, size = 0x4, scoped, tag = 'scoped memory for tpu_custom_call.1']
    #allocation5 [shape = 'u8[2097152]{0}', space=vmem, size = 0x200000, scoped, tag = 'input window, operand 1, single buffered']
    #allocation6 [shape = 's32[1]{0}', space=sflag, size = 0x4, scoped, tag = 'scoped memory for tpu_custom_call.1']
    #allocation7 [shape = 'u8[4096]{0}', space=vmem, size = 0x1000, scoped, tag = 'input window, operand 2, single buffered']
    #allocation8 [shape = 'u8[524288]{0}', space=vmem, size = 0x80000, scoped, tag = 'input window, operand 3, single buffered']
    #allocation9 [shape = 's32[1]{0}', space=sflag, size = 0x4, scoped, tag = 'scoped memory for tpu_custom_call.1']
    #allocation10 [shape = 'u8[2048]{0}', space=vmem, size = 0x800, scoped, tag = 'input window, operand 4, single buffered']
    #allocation11 [shape = 'u8[65536]{0}', space=vmem, size = 0x10000, scoped, tag = 'input window, operand 5, single buffered']
    #allocation12 [shape = 's32[1]{0}', space=sflag, size = 0x4, scoped, tag = 'scoped memory for tpu_custom_call.1']
    #allocation13 [shape = 'u8[512]{0}', space=vmem, size = 0x400, scoped, tag = 'input window, operand 6, single buffered']
    #allocation14 [shape = 'u8[4096]{0}', space=vmem, size = 0x1000, scoped, tag = 'output window, operand 0, single buffered']
    #allocation15 [shape = 'u8[8192]{0}', space=vmem, size = 0x2000, scoped, tag = 'output window, operand 1, single buffered']
    #allocation16 [shape = 's32[1]{0}', space=sflag, size = 0x4, scoped, tag = 'scoped memory for tpu_custom_call.1']
    %14 = vsyncpa [#allocation3], 0
    %15 = vsyncpa [#allocation6], 0
    %16 = vsyncpa [#allocation9], 0
    %17 = vsyncpa [#allocation12], 0
    %18 = vsyncpa [#allocation4], 0
    %19 = vsyncpa [#allocation16], 0
    // Predicated region
    $region2: #{tpu_custom_call.1} parent=1 // pred_check
      _
    $region3: #{tpu_custom_call.1} parent=1 // pred_check_branch
      %21 = sbr.rel (0) target = $region5
    $region4: #{tpu_custom_call.1} parent=1 // pred_region
      %23 = vsyncadd [#allocation3], 0
      %s25 = sshll.u32 %s0, 4
      %s26 = int_to_ptr.hbm [resolvable:$true] %s25
      %s27 = sshll.u32 [#allocation2], 4
      %s28 = int_to_ptr.vmem [resolvable:$true] %s27
      %30 = dma.hbm_to_vmem [thread:$0]  %s26, 512, %s28, [#allocation3]
    $region5: #{tpu_custom_call.1} parent=1 // pred_fallthru
      _
    // Predicated region
    $region6: #{tpu_custom_call.1} parent=1 // pred_check
      _
    $region7: #{tpu_custom_call.1} parent=1 // pred_check_branch
      %32 = sbr.rel (0) target = $region9
    $region8: #{tpu_custom_call.1} parent=1 // pred_region
      %34 = vsyncadd [#allocation6], 0
      %s35 = sshll.u32 %s1, 4
      %s36 = int_to_ptr.hbm [resolvable:$true] %s35
      %s37 = sshll.u32 [#allocation5], 4
      %s38 = int_to_ptr.vmem [resolvable:$true] %s37
      %43 = dma.hbm_to_vmem [thread:$0]  %s36, 65536, %s38, [#allocation6], 512, 512, 32
    $region9: #{tpu_custom_call.1} parent=1 // pred_fallthru
      _
    // Predicated region
    $region10: #{tpu_custom_call.1} parent=1 // pred_check
      _
    $region11: #{tpu_custom_call.1} parent=1 // pred_check_branch
      %45 = sbr.rel (0) target = $region13
    $region12: #{tpu_custom_call.1} parent=1 // pred_region
      %47 = vsyncadd [#allocation6], 0
      %s49 = sshll.u32 %s2, 4
      %s50 = int_to_ptr.hbm [resolvable:$true] %s49
      %s51 = sshll.u32 [#allocation7], 4
      %s52 = int_to_ptr.vmem [resolvable:$true] %s51
      %54 = dma.hbm_to_vmem [thread:$0]  %s50, 128, %s52, [#allocation6]
    $region13: #{tpu_custom_call.1} parent=1 // pred_fallthru
      _
    // Predicated region
    $region14: #{tpu_custom_call.1} parent=1 // pred_check
      _
    $region15: #{tpu_custom_call.1} parent=1 // pred_check_branch
      %56 = sbr.rel (0) target = $region17
    $region16: #{tpu_custom_call.1} parent=1 // pred_region
      %58 = vsyncadd [#allocation9], 0
      %s59 = sshll.u32 %s3, 4
      %s60 = int_to_ptr.hbm [resolvable:$true] %s59
      %s61 = sshll.u32 [#allocation8], 4
      %s62 = int_to_ptr.vmem [resolvable:$true] %s61
      %67 = dma.hbm_to_vmem [thread:$0]  %s60, 16384, %s62, [#allocation9], 256, 256, 16
    $region17: #{tpu_custom_call.1} parent=1 // pred_fallthru
      _
    // Predicated region
    $region18: #{tpu_custom_call.1} parent=1 // pred_check
      _
    $region19: #{tpu_custom_call.1} parent=1 // pred_check_branch
      %69 = sbr.rel (0) target = $region21
    $region20: #{tpu_custom_call.1} parent=1 // pred_region
      %71 = vsyncadd [#allocation9], 0
      %s73 = sshll.u32 %s4, 4
      %s74 = int_to_ptr.hbm [resolvable:$true] %s73
      %s75 = sshll.u32 [#allocation10], 4
      %s76 = int_to_ptr.vmem [resolvable:$true] %s75
      %78 = dma.hbm_to_vmem [thread:$0]  %s74, 64, %s76, [#allocation9]
    $region21: #{tpu_custom_call.1} parent=1 // pred_fallthru
      _
    // Predicated region
    $region22: #{tpu_custom_call.1} parent=1 // pred_check
      _
    $region23: #{tpu_custom_call.1} parent=1 // pred_check_branch
      %80 = sbr.rel (0) target = $region25
    $region24: #{tpu_custom_call.1} parent=1 // pred_region
      %82 = vsyncadd [#allocation12], 0
      %s83 = sshll.u32 %s5, 4
      %s84 = int_to_ptr.hbm [resolvable:$true] %s83
      %s85 = sshll.u32 [#allocation11], 4
      %s86 = int_to_ptr.vmem [resolvable:$true] %s85
      %91 = dma.hbm_to_vmem [thread:$0]  %s84, 2048, %s86, [#allocation12], 64, 64, 4
    $region25: #{tpu_custom_call.1} parent=1 // pred_fallthru
      _
    // Predicated region
    $region26: #{tpu_custom_call.1} parent=1 // pred_check
      _
    $region27: #{tpu_custom_call.1} parent=1 // pred_check_branch
      %93 = sbr.rel (0) target = $region29
    $region28: #{tpu_custom_call.1} parent=1 // pred_region
      %95 = vsyncadd [#allocation12], 0
      %s97 = sshll.u32 %s6, 4
      %s98 = int_to_ptr.hbm [resolvable:$true] %s97
      %s99 = sshll.u32 [#allocation13], 4
      %s100 = int_to_ptr.vmem [resolvable:$true] %s99
      %102 = dma.hbm_to_vmem [thread:$0]  %s98, 16, %s100, [#allocation12]
    $region29: #{tpu_custom_call.1} parent=1 // pred_fallthru
      _
    // Predicated region
    $region30: #{tpu_custom_call.1} parent=1 // pred_check
      _
    $region31: #{tpu_custom_call.1} parent=1 // pred_check_branch
      %104 = sbr.rel (0) target = $region33
    $region32: #{tpu_custom_call.1} parent=1 // pred_region
      %106 = dma.done [#allocation3], 512
    $region33: #{tpu_custom_call.1} parent=1 // pred_fallthru
      _
    // Predicated region
    $region34: #{tpu_custom_call.1} parent=1 // pred_check
      _
    $region35: #{tpu_custom_call.1} parent=1 // pred_check_branch
      %108 = sbr.rel (0) target = $region37
    $region36: #{tpu_custom_call.1} parent=1 // pred_region
      %110 = dma.done [#allocation6], 65536
    $region37: #{tpu_custom_call.1} parent=1 // pred_fallthru
      _
    // Predicated region
    $region38: #{tpu_custom_call.1} parent=1 // pred_check
      _
    $region39: #{tpu_custom_call.1} parent=1 // pred_check_branch
      %112 = sbr.rel (0) target = $region41
    $region40: #{tpu_custom_call.1} parent=1 // pred_region
      %114 = dma.done [#allocation6], 128
    $region41: #{tpu_custom_call.1} parent=1 // pred_fallthru
      _
    // Predicated region
    $region42: #{tpu_custom_call.1} parent=1 // pred_check
      _
    $region43: #{tpu_custom_call.1} parent=1 // pred_check_branch
      %116 = sbr.rel (0) target = $region45
    $region44: #{tpu_custom_call.1} parent=1 // pred_region
      %118 = dma.done [#allocation9], 16384
    $region45: #{tpu_custom_call.1} parent=1 // pred_fallthru
      _
    // Predicated region
    $region46: #{tpu_custom_call.1} parent=1 // pred_check
      _
    $region47: #{tpu_custom_call.1} parent=1 // pred_check_branch
      %120 = sbr.rel (0) target = $region49
    $region48: #{tpu_custom_call.1} parent=1 // pred_region
      %122 = dma.done [#allocation9], 64
    $region49: #{tpu_custom_call.1} parent=1 // pred_fallthru
      _
    // Predicated region
    $region50: #{tpu_custom_call.1} parent=1 // pred_check
      _
    $region51: #{tpu_custom_call.1} parent=1 // pred_check_branch
      %124 = sbr.rel (0) target = $region53
    $region52: #{tpu_custom_call.1} parent=1 // pred_region
      %126 = dma.done [#allocation12], 2048
    $region53: #{tpu_custom_call.1} parent=1 // pred_fallthru
      _
    // Predicated region
    $region54: #{tpu_custom_call.1} parent=1 // pred_check
      _
    $region55: #{tpu_custom_call.1} parent=1 // pred_check_branch
      %128 = sbr.rel (0) target = $region57
    $region56: #{tpu_custom_call.1} parent=1 // pred_region
      %130 = dma.done [#allocation12], 16
    $region57: #{tpu_custom_call.1} parent=1 // pred_fallthru
      _
    %v131 = vld [vmem:[#allocation2] sm:$0xff]
    %v132 = vld [vmem:[#allocation2 + $0x8] sm:$0xff]
    %v133 = vld [vmem:[#allocation2 + $0x10] sm:$0xff]
    %v134 = vld [vmem:[#allocation2 + $0x18] sm:$0xff]
    %v135 = vld [vmem:[#allocation5] sm:$0xff]
    %v136 = vld [vmem:[#allocation5 + $0x8] sm:$0xff]
    %v137 = vld [vmem:[#allocation5 + $0x10] sm:$0xff]
    %v138 = vld [vmem:[#allocation5 + $0x18] sm:$0xff]
    %v139 = vld [vmem:[#allocation5 + $0x20] sm:$0xff]
    %v140 = vld [vmem:[#allocation5 + $0x28] sm:$0xff]
    %v141 = vld [vmem:[#allocation5 + $0x30] sm:$0xff]
    %v142 = vld [vmem:[#allocation5 + $0x38] sm:$0xff]
    %v143 = vld [vmem:[#allocation5 + $0x40] sm:$0xff]
    %v144 = vld [vmem:[#allocation5 + $0x48] sm:$0xff]
    %v145 = vld [vmem:[#allocation5 + $0x50] sm:$0xff]
    %v146 = vld [vmem:[#allocation5 + $0x58] sm:$0xff]
    %v147 = vld [vmem:[#allocation5 + $0x60] sm:$0xff]
    %v148 = vld [vmem:[#allocation5 + $0x68] sm:$0xff]
    %v149 = vld [vmem:[#allocation5 + $0x70] sm:$0xff]
    %v150 = vld [vmem:[#allocation5 + $0x78] sm:$0xff]
    %v151 = vld [vmem:[#allocation5 + $0x80] sm:$0xff]
    %v152 = vld [vmem:[#allocation5 + $0x88] sm:$0xff]
    %v153 = vld [vmem:[#allocation5 + $0x90] sm:$0xff]
    %v154 = vld [vmem:[#allocation5 + $0x98] sm:$0xff]
    %v155 = vld [vmem:[#allocation5 + $0xa0] sm:$0xff]
    %v156 = vld [vmem:[#allocation5 + $0xa8] sm:$0xff]
    %v157 = vld [vmem:[#allocation5 + $0xb0] sm:$0xff]
    %v158 = vld [vmem:[#allocation5 + $0xb8] sm:$0xff]
    %v159 = vld [vmem:[#allocation5 + $0xc0] sm:$0xff]
    %v160 = vld [vmem:[#allocation5 + $0xc8] sm:$0xff]
    %v161 = vld [vmem:[#allocation5 + $0xd0] sm:$0xff]
    %v162 = vld [vmem:[#allocation5 + $0xd8] sm:$0xff]
    %v163 = vld [vmem:[#allocation5 + $0xe0] sm:$0xff]
    %v164 = vld [vmem:[#allocation5 + $0xe8] sm:$0xff]
    %v165 = vld [vmem:[#allocation5 + $0xf0] sm:$0xff]
    %v166 = vld [vmem:[#allocation5 + $0xf8] sm:$0xff]
    %v167 = vld [vmem:[#allocation5 + $0x100] sm:$0xff]
    %v168 = vld [vmem:[#allocation5 + $0x108] sm:$0xff]
    %v169 = vld [vmem:[#allocation5 + $0x110] sm:$0xff]
    %v170 = vld [vmem:[#allocation5 + $0x118] sm:$0xff]
    %v171 = vld [vmem:[#allocation5 + $0x120] sm:$0xff]
    %v172 = vld [vmem:[#allocation5 + $0x128] sm:$0xff]
    %v173 = vld [vmem:[#allocation5 + $0x130] sm:$0xff]
    %v174 = vld [vmem:[#allocation5 + $0x138] sm:$0xff]
    %v175 = vld [vmem:[#allocation5 + $0x140] sm:$0xff]
    %v176 = vld [vmem:[#allocation5 + $0x148] sm:$0xff]
    %v177 = vld [vmem:[#allocation5 + $0x150] sm:$0xff]
    %v178 = vld [vmem:[#allocation5 + $0x158] sm:$0xff]
    %v179 = vld [vmem:[#allocation5 + $0x160] sm:$0xff]
    %v180 = vld [vmem:[#allocation5 + $0x168] sm:$0xff]
    %v181 = vld [vmem:[#allocation5 + $0x170] sm:$0xff]
    %v182 = vld [vmem:[#allocation5 + $0x178] sm:$0xff]
    %v183 = vld [vmem:[#allocation5 + $0x180] sm:$0xff]
    %v184 = vld [vmem:[#allocation5 + $0x188] sm:$0xff]
    %v185 = vld [vmem:[#allocation5 + $0x190] sm:$0xff]
    %v186 = vld [vmem:[#allocation5 + $0x198] sm:$0xff]
    %v187 = vld [vmem:[#allocation5 + $0x1a0] sm:$0xff]
    %v188 = vld [vmem:[#allocation5 + $0x1a8] sm:$0xff]
    %v189 = vld [vmem:[#allocation5 + $0x1b0] sm:$0xff]
    %v190 = vld [vmem:[#allocation5 + $0x1b8] sm:$0xff]
    %v191 = vld [vmem:[#allocation5 + $0x1c0] sm:$0xff]
    %v192 = vld [vmem:[#allocation5 + $0x1c8] sm:$0xff]
    %v193 = vld [vmem:[#allocation5 + $0x1d0] sm:$0xff]
    %v194 = vld [vmem:[#allocation5 + $0x1d8] sm:$0xff]
    %v195 = vld [vmem:[#allocation5 + $0x1e0] sm:$0xff]
    %v196 = vld [vmem:[#allocation5 + $0x1e8] sm:$0xff]
    %v197 = vld [vmem:[#allocation5 + $0x1f0] sm:$0xff]
    %v198 = vld [vmem:[#allocation5 + $0x1f8] sm:$0xff]
    %v199 = vld [vmem:[#allocation5 + $0x200] sm:$0xff]
    %v200 = vld [vmem:[#allocation5 + $0x208] sm:$0xff]
    %v201 = vld [vmem:[#allocation5 + $0x210] sm:$0xff]
    %v202 = vld [vmem:[#allocation5 + $0x218] sm:$0xff]
    %v203 = vld [vmem:[#allocation5 + $0x220] sm:$0xff]
    %v204 = vld [vmem:[#allocation5 + $0x228] sm:$0xff]
    %v205 = vld [vmem:[#allocation5 + $0x230] sm:$0xff]
    %v206 = vld [vmem:[#allocation5 + $0x238] sm:$0xff]
    %v207 = vld [vmem:[#allocation5 + $0x240] sm:$0xff]
    %v208 = vld [vmem:[#allocation5 + $0x248] sm:$0xff]
    %v209 = vld [vmem:[#allocation5 + $0x250] sm:$0xff]
    %v210 = vld [vmem:[#allocation5 + $0x258] sm:$0xff]
    %v211 = vld [vmem:[#allocation5 + $0x260] sm:$0xff]
    %v212 = vld [vmem:[#allocation5 + $0x268] sm:$0xff]
    %v213 = vld [vmem:[#allocation5 + $0x270] sm:$0xff]
    %v214 = vld [vmem:[#allocation5 + $0x278] sm:$0xff]
    %v215 = vld [vmem:[#allocation5 + $0x280] sm:$0xff]
    %v216 = vld [vmem:[#allocation5 + $0x288] sm:$0xff]
    %v217 = vld [vmem:[#allocation5 + $0x290] sm:$0xff]
    %v218 = vld [vmem:[#allocation5 + $0x298] sm:$0xff]
    %v219 = vld [vmem:[#allocation5 + $0x2a0] sm:$0xff]
    %v220 = vld [vmem:[#allocation5 + $0x2a8] sm:$0xff]
    %v221 = vld [vmem:[#allocation5 + $0x2b0] sm:$0xff]
    %v222 = vld [vmem:[#allocation5 + $0x2b8] sm:$0xff]
    %v223 = vld [vmem:[#allocation5 + $0x2c0] sm:$0xff]
    %v224 = vld [vmem:[#allocation5 + $0x2c8] sm:$0xff]
    %v225 = vld [vmem:[#allocation5 + $0x2d0] sm:$0xff]
    %v226 = vld [vmem:[#allocation5 + $0x2d8] sm:$0xff]
    %v227 = vld [vmem:[#allocation5 + $0x2e0] sm:$0xff]
    %v228 = vld [vmem:[#allocation5 + $0x2e8] sm:$0xff]
    %v229 = vld [vmem:[#allocation5 + $0x2f0] sm:$0xff]
    %v230 = vld [vmem:[#allocation5 + $0x2f8] sm:$0xff]
    %v231 = vld [vmem:[#allocation5 + $0x300] sm:$0xff]
    %v232 = vld [vmem:[#allocation5 + $0x308] sm:$0xff]
    %v233 = vld [vmem:[#allocation5 + $0x310] sm:$0xff]
    %v234 = vld [vmem:[#allocation5 + $0x318] sm:$0xff]
    %v235 = vld [vmem:[#allocation5 + $0x320] sm:$0xff]
    %v236 = vld [vmem:[#allocation5 + $0x328] sm:$0xff]
    %v237 = vld [vmem:[#allocation5 + $0x330] sm:$0xff]
    %v238 = vld [vmem:[#allocation5 + $0x338] sm:$0xff]
    %v239 = vld [vmem:[#allocation5 + $0x340] sm:$0xff]
    %v240 = vld [vmem:[#allocation5 + $0x348] sm:$0xff]
    %v241 = vld [vmem:[#allocation5 + $0x350] sm:$0xff]
    %v242 = vld [vmem:[#allocation5 + $0x358] sm:$0xff]
    %v243 = vld [vmem:[#allocation5 + $0x360] sm:$0xff]
    %v244 = vld [vmem:[#allocation5 + $0x368] sm:$0xff]
    %v245 = vld [vmem:[#allocation5 + $0x370] sm:$0xff]
    %v246 = vld [vmem:[#allocation5 + $0x378] sm:$0xff]
    %v247 = vld [vmem:[#allocation5 + $0x380] sm:$0xff]
    %v248 = vld [vmem:[#allocation5 + $0x388] sm:$0xff]
    %v249 = vld [vmem:[#allocation5 + $0x390] sm:$0xff]
    %v250 = vld [vmem:[#allocation5 + $0x398] sm:$0xff]
    %v251 = vld [vmem:[#allocation5 + $0x3a0] sm:$0xff]
    %v252 = vld [vmem:[#allocation5 + $0x3a8] sm:$0xff]
    %v253 = vld [vmem:[#allocation5 + $0x3b0] sm:$0xff]
    %v254 = vld [vmem:[#allocation5 + $0x3b8] sm:$0xff]
    %v255 = vld [vmem:[#allocation5 + $0x3c0] sm:$0xff]
    %v256 = vld [vmem:[#allocation5 + $0x3c8] sm:$0xff]
    %v257 = vld [vmem:[#allocation5 + $0x3d0] sm:$0xff]
    %v258 = vld [vmem:[#allocation5 + $0x3d8] sm:$0xff]
    %v259 = vld [vmem:[#allocation5 + $0x3e0] sm:$0xff]
    %v260 = vld [vmem:[#allocation5 + $0x3e8] sm:$0xff]
    %v261 = vld [vmem:[#allocation5 + $0x3f0] sm:$0xff]
    %v262 = vld [vmem:[#allocation5 + $0x3f8] sm:$0xff]
    %v263 = vld [vmem:[#allocation5 + $0x400] sm:$0xff]
    %v264 = vld [vmem:[#allocation5 + $0x408] sm:$0xff]
    %v265 = vld [vmem:[#allocation5 + $0x410] sm:$0xff]
    %v266 = vld [vmem:[#allocation5 + $0x418] sm:$0xff]
    %v267 = vld [vmem:[#allocation5 + $0x420] sm:$0xff]
    %v268 = vld [vmem:[#allocation5 + $0x428] sm:$0xff]
    %v269 = vld [vmem:[#allocation5 + $0x430] sm:$0xff]
    %v270 = vld [vmem:[#allocation5 + $0x438] sm:$0xff]
    %v271 = vld [vmem:[#allocation5 + $0x440] sm:$0xff]
    %v272 = vld [vmem:[#allocation5 + $0x448] sm:$0xff]
    %v273 = vld [vmem:[#allocation5 + $0x450] sm:$0xff]
    %v274 = vld [vmem:[#allocation5 + $0x458] sm:$0xff]
    %v275 = vld [vmem:[#allocation5 + $0x460] sm:$0xff]
    %v276 = vld [vmem:[#allocation5 + $0x468] sm:$0xff]
    %v277 = vld [vmem:[#allocation5 + $0x470] sm:$0xff]
    %v278 = vld [vmem:[#allocation5 + $0x478] sm:$0xff]
    %v279 = vld [vmem:[#allocation5 + $0x480] sm:$0xff]
    %v280 = vld [vmem:[#allocation5 + $0x488] sm:$0xff]
    %v281 = vld [vmem:[#allocation5 + $0x490] sm:$0xff]
    %v282 = vld [vmem:[#allocation5 + $0x498] sm:$0xff]
    %v283 = vld [vmem:[#allocation5 + $0x4a0] sm:$0xff]
    %v284 = vld [vmem:[#allocation5 + $0x4a8] sm:$0xff]
    %v285 = vld [vmem:[#allocation5 + $0x4b0] sm:$0xff]
    %v286 = vld [vmem:[#allocation5 + $0x4b8] sm:$0xff]
    %v287 = vld [vmem:[#allocation5 + $0x4c0] sm:$0xff]
    %v288 = vld [vmem:[#allocation5 + $0x4c8] sm:$0xff]
    %v289 = vld [vmem:[#allocation5 + $0x4d0] sm:$0xff]
    %v290 = vld [vmem:[#allocation5 + $0x4d8] sm:$0xff]
    %v291 = vld [vmem:[#allocation5 + $0x4e0] sm:$0xff]
    %v292 = vld [vmem:[#allocation5 + $0x4e8] sm:$0xff]
    %v293 = vld [vmem:[#allocation5 + $0x4f0] sm:$0xff]
    %v294 = vld [vmem:[#allocation5 + $0x4f8] sm:$0xff]
    %v295 = vld [vmem:[#allocation5 + $0x500] sm:$0xff]
    %v296 = vld [vmem:[#allocation5 + $0x508] sm:$0xff]
    %v297 = vld [vmem:[#allocation5 + $0x510] sm:$0xff]
    %v298 = vld [vmem:[#allocation5 + $0x518] sm:$0xff]
    %v299 = vld [vmem:[#allocation5 + $0x520] sm:$0xff]
    %v300 = vld [vmem:[#allocation5 + $0x528] sm:$0xff]
    %v301 = vld [vmem:[#allocation5 + $0x530] sm:$0xff]
    %v302 = vld [vmem:[#allocation5 + $0x538] sm:$0xff]
    %v303 = vld [vmem:[#allocation5 + $0x540] sm:$0xff]
    %v304 = vld [vmem:[#allocation5 + $0x548] sm:$0xff]
    %v305 = vld [vmem:[#allocation5 + $0x550] sm:$0xff]
    %v306 = vld [vmem:[#allocation5 + $0x558] sm:$0xff]
    %v307 = vld [vmem:[#allocation5 + $0x560] sm:$0xff]
    %v308 = vld [vmem:[#allocation5 + $0x568] sm:$0xff]
    %v309 = vld [vmem:[#allocation5 + $0x570] sm:$0xff]
    %v310 = vld [vmem:[#allocation5 + $0x578] sm:$0xff]
    %v311 = vld [vmem:[#allocation5 + $0x580] sm:$0xff]
    %v312 = vld [vmem:[#allocation5 + $0x588] sm:$0xff]
    %v313 = vld [vmem:[#allocation5 + $0x590] sm:$0xff]
    %v314 = vld [vmem:[#allocation5 + $0x598] sm:$0xff]
    %v315 = vld [vmem:[#allocation5 + $0x5a0] sm:$0xff]
    %v316 = vld [vmem:[#allocation5 + $0x5a8] sm:$0xff]
    %v317 = vld [vmem:[#allocation5 + $0x5b0] sm:$0xff]
    %v318 = vld [vmem:[#allocation5 + $0x5b8] sm:$0xff]
    %v319 = vld [vmem:[#allocation5 + $0x5c0] sm:$0xff]
    %v320 = vld [vmem:[#allocation5 + $0x5c8] sm:$0xff]
    %v321 = vld [vmem:[#allocation5 + $0x5d0] sm:$0xff]
    %v322 = vld [vmem:[#allocation5 + $0x5d8] sm:$0xff]
    %v323 = vld [vmem:[#allocation5 + $0x5e0] sm:$0xff]
    %v324 = vld [vmem:[#allocation5 + $0x5e8] sm:$0xff]
    %v325 = vld [vmem:[#allocation5 + $0x5f0] sm:$0xff]
    %v326 = vld [vmem:[#allocation5 + $0x5f8] sm:$0xff]
    %v327 = vld [vmem:[#allocation5 + $0x600] sm:$0xff]
    %v328 = vld [vmem:[#allocation5 + $0x608] sm:$0xff]
    %v329 = vld [vmem:[#allocation5 + $0x610] sm:$0xff]
    %v330 = vld [vmem:[#allocation5 + $0x618] sm:$0xff]
    %v331 = vld [vmem:[#allocation5 + $0x620] sm:$0xff]
    %v332 = vld [vmem:[#allocation5 + $0x628] sm:$0xff]
    %v333 = vld [vmem:[#allocation5 + $0x630] sm:$0xff]
    %v334 = vld [vmem:[#allocation5 + $0x638] sm:$0xff]
    %v335 = vld [vmem:[#allocation5 + $0x640] sm:$0xff]
    %v336 = vld [vmem:[#allocation5 + $0x648] sm:$0xff]
    %v337 = vld [vmem:[#allocation5 + $0x650] sm:$0xff]
    %v338 = vld [vmem:[#allocation5 + $0x658] sm:$0xff]
    %v339 = vld [vmem:[#allocation5 + $0x660] sm:$0xff]
    %v340 = vld [vmem:[#allocation5 + $0x668] sm:$0xff]
    %v341 = vld [vmem:[#allocation5 + $0x670] sm:$0xff]
    %v342 = vld [vmem:[#allocation5 + $0x678] sm:$0xff]
    %v343 = vld [vmem:[#allocation5 + $0x680] sm:$0xff]
    %v344 = vld [vmem:[#allocation5 + $0x688] sm:$0xff]
    %v345 = vld [vmem:[#allocation5 + $0x690] sm:$0xff]
    %v346 = vld [vmem:[#allocation5 + $0x698] sm:$0xff]
    %v347 = vld [vmem:[#allocation5 + $0x6a0] sm:$0xff]
    %v348 = vld [vmem:[#allocation5 + $0x6a8] sm:$0xff]
    %v349 = vld [vmem:[#allocation5 + $0x6b0] sm:$0xff]
    %v350 = vld [vmem:[#allocation5 + $0x6b8] sm:$0xff]
    %v351 = vld [vmem:[#allocation5 + $0x6c0] sm:$0xff]
    %v352 = vld [vmem:[#allocation5 + $0x6c8] sm:$0xff]
    %v353 = vld [vmem:[#allocation5 + $0x6d0] sm:$0xff]
    %v354 = vld [vmem:[#allocation5 + $0x6d8] sm:$0xff]
    %v355 = vld [vmem:[#allocation5 + $0x6e0] sm:$0xff]
    %v356 = vld [vmem:[#allocation5 + $0x6e8] sm:$0xff]
    %v357 = vld [vmem:[#allocation5 + $0x6f0] sm:$0xff]
    %v358 = vld [vmem:[#allocation5 + $0x6f8] sm:$0xff]
    %v359 = vld [vmem:[#allocation5 + $0x700] sm:$0xff]
    %v360 = vld [vmem:[#allocation5 + $0x708] sm:$0xff]
    %v361 = vld [vmem:[#allocation5 + $0x710] sm:$0xff]
    %v362 = vld [vmem:[#allocation5 + $0x718] sm:$0xff]
    %v363 = vld [vmem:[#allocation5 + $0x720] sm:$0xff]
    %v364 = vld [vmem:[#allocation5 + $0x728] sm:$0xff]
    %v365 = vld [vmem:[#allocation5 + $0x730] sm:$0xff]
    %v366 = vld [vmem:[#allocation5 + $0x738] sm:$0xff]
    %v367 = vld [vmem:[#allocation5 + $0x740] sm:$0xff]
    %v368 = vld [vmem:[#allocation5 + $0x748] sm:$0xff]
    %v369 = vld [vmem:[#allocation5 + $0x750] sm:$0xff]
    %v370 = vld [vmem:[#allocation5 + $0x758] sm:$0xff]
    %v371 = vld [vmem:[#allocation5 + $0x760] sm:$0xff]
    %v372 = vld [vmem:[#allocation5 + $0x768] sm:$0xff]
    %v373 = vld [vmem:[#allocation5 + $0x770] sm:$0xff]
    %v374 = vld [vmem:[#allocation5 + $0x778] sm:$0xff]
    %v375 = vld [vmem:[#allocation5 + $0x780] sm:$0xff]
    %v376 = vld [vmem:[#allocation5 + $0x788] sm:$0xff]
    %v377 = vld [vmem:[#allocation5 + $0x790] sm:$0xff]
    %v378 = vld [vmem:[#allocation5 + $0x798] sm:$0xff]
    %v379 = vld [vmem:[#allocation5 + $0x7a0] sm:$0xff]
    %v380 = vld [vmem:[#allocation5 + $0x7a8] sm:$0xff]
    %v381 = vld [vmem:[#allocation5 + $0x7b0] sm:$0xff]
    %v382 = vld [vmem:[#allocation5 + $0x7b8] sm:$0xff]
    %v383 = vld [vmem:[#allocation5 + $0x7c0] sm:$0xff]
    %v384 = vld [vmem:[#allocation5 + $0x7c8] sm:$0xff]
    %v385 = vld [vmem:[#allocation5 + $0x7d0] sm:$0xff]
    %v386 = vld [vmem:[#allocation5 + $0x7d8] sm:$0xff]
    %v387 = vld [vmem:[#allocation5 + $0x7e0] sm:$0xff]
    %v388 = vld [vmem:[#allocation5 + $0x7e8] sm:$0xff]
    %v389 = vld [vmem:[#allocation5 + $0x7f0] sm:$0xff]
    %v390 = vld [vmem:[#allocation5 + $0x7f8] sm:$0xff]
    %v391 = vld [vmem:[#allocation5 + $0x800] sm:$0xff]
    %v392 = vld [vmem:[#allocation5 + $0x808] sm:$0xff]
    %v393 = vld [vmem:[#allocation5 + $0x810] sm:$0xff]
    %v394 = vld [vmem:[#allocation5 + $0x818] sm:$0xff]
    %v395 = vld [vmem:[#allocation5 + $0x820] sm:$0xff]
    %v396 = vld [vmem:[#allocation5 + $0x828] sm:$0xff]
    %v397 = vld [vmem:[#allocation5 + $0x830] sm:$0xff]
    %v398 = vld [vmem:[#allocation5 + $0x838] sm:$0xff]
    %v399 = vld [vmem:[#allocation5 + $0x840] sm:$0xff]
    %v400 = vld [vmem:[#allocation5 + $0x848] sm:$0xff]
    %v401 = vld [vmem:[#allocation5 + $0x850] sm:$0xff]
    %v402 = vld [vmem:[#allocation5 + $0x858] sm:$0xff]
    %v403 = vld [vmem:[#allocation5 + $0x860] sm:$0xff]
    %v404 = vld [vmem:[#allocation5 + $0x868] sm:$0xff]
    %v405 = vld [vmem:[#allocation5 + $0x870] sm:$0xff]
    %v406 = vld [vmem:[#allocation5 + $0x878] sm:$0xff]
    %v407 = vld [vmem:[#allocation5 + $0x880] sm:$0xff]
    %v408 = vld [vmem:[#allocation5 + $0x888] sm:$0xff]
    %v409 = vld [vmem:[#allocation5 + $0x890] sm:$0xff]
    %v410 = vld [vmem:[#allocation5 + $0x898] sm:$0xff]
    %v411 = vld [vmem:[#allocation5 + $0x8a0] sm:$0xff]
    %v412 = vld [vmem:[#allocation5 + $0x8a8] sm:$0xff]
    %v413 = vld [vmem:[#allocation5 + $0x8b0] sm:$0xff]
    %v414 = vld [vmem:[#allocation5 + $0x8b8] sm:$0xff]
    %v415 = vld [vmem:[#allocation5 + $0x8c0] sm:$0xff]
    %v416 = vld [vmem:[#allocation5 + $0x8c8] sm:$0xff]
    %v417 = vld [vmem:[#allocation5 + $0x8d0] sm:$0xff]
    %v418 = vld [vmem:[#allocation5 + $0x8d8] sm:$0xff]
    %v419 = vld [vmem:[#allocation5 + $0x8e0] sm:$0xff]
    %v420 = vld [vmem:[#allocation5 + $0x8e8] sm:$0xff]
    %v421 = vld [vmem:[#allocation5 + $0x8f0] sm:$0xff]
    %v422 = vld [vmem:[#allocation5 + $0x8f8] sm:$0xff]
    %v423 = vld [vmem:[#allocation5 + $0x900] sm:$0xff]
    %v424 = vld [vmem:[#allocation5 + $0x908] sm:$0xff]
    %v425 = vld [vmem:[#allocation5 + $0x910] sm:$0xff]
    %v426 = vld [vmem:[#allocation5 + $0x918] sm:$0xff]
    %v427 = vld [vmem:[#allocation5 + $0x920] sm:$0xff]
    %v428 = vld [vmem:[#allocation5 + $0x928] sm:$0xff]
    %v429 = vld [vmem:[#allocation5 + $0x930] sm:$0xff]
    %v430 = vld [vmem:[#allocation5 + $0x938] sm:$0xff]
    %v431 = vld [vmem:[#allocation5 + $0x940] sm:$0xff]
    %v432 = vld [vmem:[#allocation5 + $0x948] sm:$0xff]
    %v433 = vld [vmem:[#allocation5 + $0x950] sm:$0xff]
    %v434 = vld [vmem:[#allocation5 + $0x958] sm:$0xff]
    %v435 = vld [vmem:[#allocation5 + $0x960] sm:$0xff]
    %v436 = vld [vmem:[#allocation5 + $0x968] sm:$0xff]
    %v437 = vld [vmem:[#allocation5 + $0x970] sm:$0xff]
    %v438 = vld [vmem:[#allocation5 + $0x978] sm:$0xff]
    %v439 = vld [vmem:[#allocation5 + $0x980] sm:$0xff]
    %v440 = vld [vmem:[#allocation5 + $0x988] sm:$0xff]
    %v441 = vld [vmem:[#allocation5 + $0x990] sm:$0xff]
    %v442 = vld [vmem:[#allocation5 + $0x998] sm:$0xff]
    %v443 = vld [vmem:[#allocation5 + $0x9a0] sm:$0xff]
    %v444 = vld [vmem:[#allocation5 + $0x9a8] sm:$0xff]
    %v445 = vld [vmem:[#allocation5 + $0x9b0] sm:$0xff]
    %v446 = vld [vmem:[#allocation5 + $0x9b8] sm:$0xff]
    %v447 = vld [vmem:[#allocation5 + $0x9c0] sm:$0xff]
    %v448 = vld [vmem:[#allocation5 + $0x9c8] sm:$0xff]
    %v449 = vld [vmem:[#allocation5 + $0x9d0] sm:$0xff]
    %v450 = vld [vmem:[#allocation5 + $0x9d8] sm:$0xff]
    %v451 = vld [vmem:[#allocation5 + $0x9e0] sm:$0xff]
    %v452 = vld [vmem:[#allocation5 + $0x9e8] sm:$0xff]
    %v453 = vld [vmem:[#allocation5 + $0x9f0] sm:$0xff]
    %v454 = vld [vmem:[#allocation5 + $0x9f8] sm:$0xff]
    %v455 = vld [vmem:[#allocation5 + $0xa00] sm:$0xff]
    %v456 = vld [vmem:[#allocation5 + $0xa08] sm:$0xff]
    %v457 = vld [vmem:[#allocation5 + $0xa10] sm:$0xff]
    %v458 = vld [vmem:[#allocation5 + $0xa18] sm:$0xff]
    %v459 = vld [vmem:[#allocation5 + $0xa20] sm:$0xff]
    %v460 = vld [vmem:[#allocation5 + $0xa28] sm:$0xff]
    %v461 = vld [vmem:[#allocation5 + $0xa30] sm:$0xff]
    %v462 = vld [vmem:[#allocation5 + $0xa38] sm:$0xff]
    %v463 = vld [vmem:[#allocation5 + $0xa40] sm:$0xff]
    %v464 = vld [vmem:[#allocation5 + $0xa48] sm:$0xff]
    %v465 = vld [vmem:[#allocation5 + $0xa50] sm:$0xff]
    %v466 = vld [vmem:[#allocation5 + $0xa58] sm:$0xff]
    %v467 = vld [vmem:[#allocation5 + $0xa60] sm:$0xff]
    %v468 = vld [vmem:[#allocation5 + $0xa68] sm:$0xff]
    %v469 = vld [vmem:[#allocation5 + $0xa70] sm:$0xff]
    %v470 = vld [vmem:[#allocation5 + $0xa78] sm:$0xff]
    %v471 = vld [vmem:[#allocation5 + $0xa80] sm:$0xff]
    %v472 = vld [vmem:[#allocation5 + $0xa88] sm:$0xff]
    %v473 = vld [vmem:[#allocation5 + $0xa90] sm:$0xff]
    %v474 = vld [vmem:[#allocation5 + $0xa98] sm:$0xff]
    %v475 = vld [vmem:[#allocation5 + $0xaa0] sm:$0xff]
    %v476 = vld [vmem:[#allocation5 + $0xaa8] sm:$0xff]
    %v477 = vld [vmem:[#allocation5 + $0xab0] sm:$0xff]
    %v478 = vld [vmem:[#allocation5 + $0xab8] sm:$0xff]
    %v479 = vld [vmem:[#allocation5 + $0xac0] sm:$0xff]
    %v480 = vld [vmem:[#allocation5 + $0xac8] sm:$0xff]
    %v481 = vld [vmem:[#allocation5 + $0xad0] sm:$0xff]
    %v482 = vld [vmem:[#allocation5 + $0xad8] sm:$0xff]
    %v483 = vld [vmem:[#allocation5 + $0xae0] sm:$0xff]
    %v484 = vld [vmem:[#allocation5 + $0xae8] sm:$0xff]
    %v485 = vld [vmem:[#allocation5 + $0xaf0] sm:$0xff]
    %v486 = vld [vmem:[#allocation5 + $0xaf8] sm:$0xff]
    %v487 = vld [vmem:[#allocation5 + $0xb00] sm:$0xff]
    %v488 = vld [vmem:[#allocation5 + $0xb08] sm:$0xff]
    %v489 = vld [vmem:[#allocation5 + $0xb10] sm:$0xff]
    %v490 = vld [vmem:[#allocation5 + $0xb18] sm:$0xff]
    %v491 = vld [vmem:[#allocation5 + $0xb20] sm:$0xff]
    %v492 = vld [vmem:[#allocation5 + $0xb28] sm:$0xff]
    %v493 = vld [vmem:[#allocation5 + $0xb30] sm:$0xff]
    %v494 = vld [vmem:[#allocation5 + $0xb38] sm:$0xff]
    %v495 = vld [vmem:[#allocation5 + $0xb40] sm:$0xff]
    %v496 = vld [vmem:[#allocation5 + $0xb48] sm:$0xff]
    %v497 = vld [vmem:[#allocation5 + $0xb50] sm:$0xff]
    %v498 = vld [vmem:[#allocation5 + $0xb58] sm:$0xff]
    %v499 = vld [vmem:[#allocation5 + $0xb60] sm:$0xff]
    %v500 = vld [vmem:[#allocation5 + $0xb68] sm:$0xff]
    %v501 = vld [vmem:[#allocation5 + $0xb70] sm:$0xff]
    %v502 = vld [vmem:[#allocation5 + $0xb78] sm:$0xff]
    %v503 = vld [vmem:[#allocation5 + $0xb80] sm:$0xff]
    %v504 = vld [vmem:[#allocation5 + $0xb88] sm:$0xff]
    %v505 = vld [vmem:[#allocation5 + $0xb90] sm:$0xff]
    %v506 = vld [vmem:[#allocation5 + $0xb98] sm:$0xff]
    %v507 = vld [vmem:[#allocation5 + $0xba0] sm:$0xff]
    %v508 = vld [vmem:[#allocation5 + $0xba8] sm:$0xff]
    %v509 = vld [vmem:[#allocation5 + $0xbb0] sm:$0xff]
    %v510 = vld [vmem:[#allocation5 + $0xbb8] sm:$0xff]
    %v511 = vld [vmem:[#allocation5 + $0xbc0] sm:$0xff]
    %v512 = vld [vmem:[#allocation5 + $0xbc8] sm:$0xff]
    %v513 = vld [vmem:[#allocation5 + $0xbd0] sm:$0xff]
    %v514 = vld [vmem:[#allocation5 + $0xbd8] sm:$0xff]
    %v515 = vld [vmem:[#allocation5 + $0xbe0] sm:$0xff]
    %v516 = vld [vmem:[#allocation5 + $0xbe8] sm:$0xff]
    %v517 = vld [vmem:[#allocation5 + $0xbf0] sm:$0xff]
    %v518 = vld [vmem:[#allocation5 + $0xbf8] sm:$0xff]
    %v519 = vld [vmem:[#allocation5 + $0xc00] sm:$0xff]
    %v520 = vld [vmem:[#allocation5 + $0xc08] sm:$0xff]
    %v521 = vld [vmem:[#allocation5 + $0xc10] sm:$0xff]
    %v522 = vld [vmem:[#allocation5 + $0xc18] sm:$0xff]
    %v523 = vld [vmem:[#allocation5 + $0xc20] sm:$0xff]
    %v524 = vld [vmem:[#allocation5 + $0xc28] sm:$0xff]
    %v525 = vld [vmem:[#allocation5 + $0xc30] sm:$0xff]
    %v526 = vld [vmem:[#allocation5 + $0xc38] sm:$0xff]
    %v527 = vld [vmem:[#allocation5 + $0xc40] sm:$0xff]
    %v528 = vld [vmem:[#allocation5 + $0xc48] sm:$0xff]
    %v529 = vld [vmem:[#allocation5 + $0xc50] sm:$0xff]
    %v530 = vld [vmem:[#allocation5 + $0xc58] sm:$0xff]
    %v531 = vld [vmem:[#allocation5 + $0xc60] sm:$0xff]
    %v532 = vld [vmem:[#allocation5 + $0xc68] sm:$0xff]
    %v533 = vld [vmem:[#allocation5 + $0xc70] sm:$0xff]
    %v534 = vld [vmem:[#allocation5 + $0xc78] sm:$0xff]
    %v535 = vld [vmem:[#allocation5 + $0xc80] sm:$0xff]
    %v536 = vld [vmem:[#allocation5 + $0xc88] sm:$0xff]
    %v537 = vld [vmem:[#allocation5 + $0xc90] sm:$0xff]
    %v538 = vld [vmem:[#allocation5 + $0xc98] sm:$0xff]
    %v539 = vld [vmem:[#allocation5 + $0xca0] sm:$0xff]
    %v540 = vld [vmem:[#allocation5 + $0xca8] sm:$0xff]
    %v541 = vld [vmem:[#allocation5 + $0xcb0] sm:$0xff]
    %v542 = vld [vmem:[#allocation5 + $0xcb8] sm:$0xff]
    %v543 = vld [vmem:[#allocation5 + $0xcc0] sm:$0xff]
    %v544 = vld [vmem:[#allocation5 + $0xcc8] sm:$0xff]
    %v545 = vld [vmem:[#allocation5 + $0xcd0] sm:$0xff]
    %v546 = vld [vmem:[#allocation5 + $0xcd8] sm:$0xff]
    %v547 = vld [vmem:[#allocation5 + $0xce0] sm:$0xff]
    %v548 = vld [vmem:[#allocation5 + $0xce8] sm:$0xff]
    %v549 = vld [vmem:[#allocation5 + $0xcf0] sm:$0xff]
    %v550 = vld [vmem:[#allocation5 + $0xcf8] sm:$0xff]
    %v551 = vld [vmem:[#allocation5 + $0xd00] sm:$0xff]
    %v552 = vld [vmem:[#allocation5 + $0xd08] sm:$0xff]
    %v553 = vld [vmem:[#allocation5 + $0xd10] sm:$0xff]
    %v554 = vld [vmem:[#allocation5 + $0xd18] sm:$0xff]
    %v555 = vld [vmem:[#allocation5 + $0xd20] sm:$0xff]
    %v556 = vld [vmem:[#allocation5 + $0xd28] sm:$0xff]
    %v557 = vld [vmem:[#allocation5 + $0xd30] sm:$0xff]
    %v558 = vld [vmem:[#allocation5 + $0xd38] sm:$0xff]
    %v559 = vld [vmem:[#allocation5 + $0xd40] sm:$0xff]
    %v560 = vld [vmem:[#allocation5 + $0xd48] sm:$0xff]
    %v561 = vld [vmem:[#allocation5 + $0xd50] sm:$0xff]
    %v562 = vld [vmem:[#allocation5 + $0xd58] sm:$0xff]
    %v563 = vld [vmem:[#allocation5 + $0xd60] sm:$0xff]
    %v564 = vld [vmem:[#allocation5 + $0xd68] sm:$0xff]
    %v565 = vld [vmem:[#allocation5 + $0xd70] sm:$0xff]
    %v566 = vld [vmem:[#allocation5 + $0xd78] sm:$0xff]
    %v567 = vld [vmem:[#allocation5 + $0xd80] sm:$0xff]
    %v568 = vld [vmem:[#allocation5 + $0xd88] sm:$0xff]
    %v569 = vld [vmem:[#allocation5 + $0xd90] sm:$0xff]
    %v570 = vld [vmem:[#allocation5 + $0xd98] sm:$0xff]
    %v571 = vld [vmem:[#allocation5 + $0xda0] sm:$0xff]
    %v572 = vld [vmem:[#allocation5 + $0xda8] sm:$0xff]
    %v573 = vld [vmem:[#allocation5 + $0xdb0] sm:$0xff]
    %v574 = vld [vmem:[#allocation5 + $0xdb8] sm:$0xff]
    %v575 = vld [vmem:[#allocation5 + $0xdc0] sm:$0xff]
    %v576 = vld [vmem:[#allocation5 + $0xdc8] sm:$0xff]
    %v577 = vld [vmem:[#allocation5 + $0xdd0] sm:$0xff]
    %v578 = vld [vmem:[#allocation5 + $0xdd8] sm:$0xff]
    %v579 = vld [vmem:[#allocation5 + $0xde0] sm:$0xff]
    %v580 = vld [vmem:[#allocation5 + $0xde8] sm:$0xff]
    %v581 = vld [vmem:[#allocation5 + $0xdf0] sm:$0xff]
    %v582 = vld [vmem:[#allocation5 + $0xdf8] sm:$0xff]
    %v583 = vld [vmem:[#allocation5 + $0xe00] sm:$0xff]
    %v584 = vld [vmem:[#allocation5 + $0xe08] sm:$0xff]
    %v585 = vld [vmem:[#allocation5 + $0xe10] sm:$0xff]
    %v586 = vld [vmem:[#allocation5 + $0xe18] sm:$0xff]
    %v587 = vld [vmem:[#allocation5 + $0xe20] sm:$0xff]
    %v588 = vld [vmem:[#allocation5 + $0xe28] sm:$0xff]
    %v589 = vld [vmem:[#allocation5 + $0xe30] sm:$0xff]
    %v590 = vld [vmem:[#allocation5 + $0xe38] sm:$0xff]
    %v591 = vld [vmem:[#allocation5 + $0xe40] sm:$0xff]
    %v592 = vld [vmem:[#allocation5 + $0xe48] sm:$0xff]
    %v593 = vld [vmem:[#allocation5 + $0xe50] sm:$0xff]
    %v594 = vld [vmem:[#allocation5 + $0xe58] sm:$0xff]
    %v595 = vld [vmem:[#allocation5 + $0xe60] sm:$0xff]
    %v596 = vld [vmem:[#allocation5 + $0xe68] sm:$0xff]
    %v597 = vld [vmem:[#allocation5 + $0xe70] sm:$0xff]
    %v598 = vld [vmem:[#allocation5 + $0xe78] sm:$0xff]
    %v599 = vld [vmem:[#allocation5 + $0xe80] sm:$0xff]
    %v600 = vld [vmem:[#allocation5 + $0xe88] sm:$0xff]
    %v601 = vld [vmem:[#allocation5 + $0xe90] sm:$0xff]
    %v602 = vld [vmem:[#allocation5 + $0xe98] sm:$0xff]
    %v603 = vld [vmem:[#allocation5 + $0xea0] sm:$0xff]
    %v604 = vld [vmem:[#allocation5 + $0xea8] sm:$0xff]
    %v605 = vld [vmem:[#allocation5 + $0xeb0] sm:$0xff]
    %v606 = vld [vmem:[#allocation5 + $0xeb8] sm:$0xff]
    %v607 = vld [vmem:[#allocation5 + $0xec0] sm:$0xff]
    %v608 = vld [vmem:[#allocation5 + $0xec8] sm:$0xff]
    %v609 = vld [vmem:[#allocation5 + $0xed0] sm:$0xff]
    %v610 = vld [vmem:[#allocation5 + $0xed8] sm:$0xff]
    %v611 = vld [vmem:[#allocation5 + $0xee0] sm:$0xff]
    %v612 = vld [vmem:[#allocation5 + $0xee8] sm:$0xff]
    %v613 = vld [vmem:[#allocation5 + $0xef0] sm:$0xff]
    %v614 = vld [vmem:[#allocation5 + $0xef8] sm:$0xff]
    %v615 = vld [vmem:[#allocation5 + $0xf00] sm:$0xff]
    %v616 = vld [vmem:[#allocation5 + $0xf08] sm:$0xff]
    %v617 = vld [vmem:[#allocation5 + $0xf10] sm:$0xff]
    %v618 = vld [vmem:[#allocation5 + $0xf18] sm:$0xff]
    %v619 = vld [vmem:[#allocation5 + $0xf20] sm:$0xff]
    %v620 = vld [vmem:[#allocation5 + $0xf28] sm:$0xff]
    %v621 = vld [vmem:[#allocation5 + $0xf30] sm:$0xff]
    %v622 = vld [vmem:[#allocation5 + $0xf38] sm:$0xff]
    %v623 = vld [vmem:[#allocation5 + $0xf40] sm:$0xff]
    %v624 = vld [vmem:[#allocation5 + $0xf48] sm:$0xff]
    %v625 = vld [vmem:[#allocation5 + $0xf50] sm:$0xff]
    %v626 = vld [vmem:[#allocation5 + $0xf58] sm:$0xff]
    %v627 = vld [vmem:[#allocation5 + $0xf60] sm:$0xff]
    %v628 = vld [vmem:[#allocation5 + $0xf68] sm:$0xff]
    %v629 = vld [vmem:[#allocation5 + $0xf70] sm:$0xff]
    %v630 = vld [vmem:[#allocation5 + $0xf78] sm:$0xff]
    %v631 = vld [vmem:[#allocation5 + $0xf80] sm:$0xff]
    %v632 = vld [vmem:[#allocation5 + $0xf88] sm:$0xff]
    %v633 = vld [vmem:[#allocation5 + $0xf90] sm:$0xff]
    %v634 = vld [vmem:[#allocation5 + $0xf98] sm:$0xff]
    %v635 = vld [vmem:[#allocation5 + $0xfa0] sm:$0xff]
    %v636 = vld [vmem:[#allocation5 + $0xfa8] sm:$0xff]
    %v637 = vld [vmem:[#allocation5 + $0xfb0] sm:$0xff]
    %v638 = vld [vmem:[#allocation5 + $0xfb8] sm:$0xff]
    %v639 = vld [vmem:[#allocation5 + $0xfc0] sm:$0xff]
    %v640 = vld [vmem:[#allocation5 + $0xfc8] sm:$0xff]
    %v641 = vld [vmem:[#allocation5 + $0xfd0] sm:$0xff]
    %v642 = vld [vmem:[#allocation5 + $0xfd8] sm:$0xff]
    %v643 = vld [vmem:[#allocation5 + $0xfe0] sm:$0xff]
    %v644 = vld [vmem:[#allocation5 + $0xfe8] sm:$0xff]
    %v645 = vld [vmem:[#allocation5 + $0xff0] sm:$0xff]
    %v646 = vld [vmem:[#allocation5 + $0xff8] sm:$0xff]
    %v647 = vld [vmem:[#allocation7] sm:$0xff]
    %v649 = vperm.slane %v647, 0
    %v650 = vperm.slane %v647, 1
    %v651 = vperm.slane %v647, 2
    %v652 = vperm.slane %v647, 3
    %v653 = vperm.slane %v647, 4
    %v654 = vperm.slane %v647, 5
    %v655 = vperm.slane %v647, 6
    %v656 = vperm.slane %v647, 7
    %v669 = vunpack.c.l.b16 %v131
    %v670 = vunpack.c.h.b16 %v131
    %v671 = vunpack.c.l.b16 %v132
    %v672 = vunpack.c.h.b16 %v132
    %v673 = vunpack.c.l.b16 %v133
    %v674 = vunpack.c.h.b16 %v133
    %v675 = vunpack.c.l.b16 %v134
    %v676 = vunpack.c.h.b16 %v134
    %v677 = vpack.c.b16 %v669, %v669
    %v678 = vpack.c.b16 %v670, %v670
    %v679 = vpack.c.b16 %v671, %v671
    %v680 = vpack.c.b16 %v672, %v672
    %v681 = vpack.c.b16 %v673, %v673
    %v682 = vpack.c.b16 %v674, %v674
    %v683 = vpack.c.b16 %v675, %v675
    %v684 = vpack.c.b16 %v676, %v676
    %v1205 = vunpack.c.l.b16 %v135
    %v1206 = vunpack.c.h.b16 %v135
    %v1207 = vunpack.c.l.b16 %v136
    %v1208 = vunpack.c.h.b16 %v136
    %v1209 = vunpack.c.l.b16 %v137
    %v1210 = vunpack.c.h.b16 %v137
    %v1211 = vunpack.c.l.b16 %v138
    %v1212 = vunpack.c.h.b16 %v138
    %v1213 = vunpack.c.l.b16 %v139
    %v1214 = vunpack.c.h.b16 %v139
    %v1215 = vunpack.c.l.b16 %v140
    %v1216 = vunpack.c.h.b16 %v140
    %v1217 = vunpack.c.l.b16 %v141
    %v1218 = vunpack.c.h.b16 %v141
    %v1219 = vunpack.c.l.b16 %v142
    %v1220 = vunpack.c.h.b16 %v142
    %v1221 = vunpack.c.l.b16 %v143
    %v1222 = vunpack.c.h.b16 %v143
    %v1223 = vunpack.c.l.b16 %v144
    %v1224 = vunpack.c.h.b16 %v144
    %v1225 = vunpack.c.l.b16 %v145
    %v1226 = vunpack.c.h.b16 %v145
    %v1227 = vunpack.c.l.b16 %v146
    %v1228 = vunpack.c.h.b16 %v146
    %v1229 = vunpack.c.l.b16 %v147
    %v1230 = vunpack.c.h.b16 %v147
    %v1231 = vunpack.c.l.b16 %v148
    %v1232 = vunpack.c.h.b16 %v148
    %v1233 = vunpack.c.l.b16 %v149
    %v1234 = vunpack.c.h.b16 %v149
    %v1235 = vunpack.c.l.b16 %v150
    %v1236 = vunpack.c.h.b16 %v150
    %v1237 = vunpack.c.l.b16 %v151
    %v1238 = vunpack.c.h.b16 %v151
    %v1239 = vunpack.c.l.b16 %v152
    %v1240 = vunpack.c.h.b16 %v152
    %v1241 = vunpack.c.l.b16 %v153
    %v1242 = vunpack.c.h.b16 %v153
    %v1243 = vunpack.c.l.b16 %v154
    %v1244 = vunpack.c.h.b16 %v154
    %v1245 = vunpack.c.l.b16 %v155
    %v1246 = vunpack.c.h.b16 %v155
    %v1247 = vunpack.c.l.b16 %v156
    %v1248 = vunpack.c.h.b16 %v156
    %v1249 = vunpack.c.l.b16 %v157
    %v1250 = vunpack.c.h.b16 %v157
    %v1251 = vunpack.c.l.b16 %v158
    %v1252 = vunpack.c.h.b16 %v158
    %v1253 = vunpack.c.l.b16 %v159
    %v1254 = vunpack.c.h.b16 %v159
    %v1255 = vunpack.c.l.b16 %v160
    %v1256 = vunpack.c.h.b16 %v160
    %v1257 = vunpack.c.l.b16 %v161
    %v1258 = vunpack.c.h.b16 %v161
    %v1259 = vunpack.c.l.b16 %v162
    %v1260 = vunpack.c.h.b16 %v162
    %v1261 = vunpack.c.l.b16 %v163
    %v1262 = vunpack.c.h.b16 %v163
    %v1263 = vunpack.c.l.b16 %v164
    %v1264 = vunpack.c.h.b16 %v164
    %v1265 = vunpack.c.l.b16 %v165
    %v1266 = vunpack.c.h.b16 %v165
    %v1267 = vunpack.c.l.b16 %v166
    %v1268 = vunpack.c.h.b16 %v166
    %v1269 = vunpack.c.l.b16 %v167
    %v1270 = vunpack.c.h.b16 %v167
    %v1271 = vunpack.c.l.b16 %v168
    %v1272 = vunpack.c.h.b16 %v168
    %v1273 = vunpack.c.l.b16 %v169
    %v1274 = vunpack.c.h.b16 %v169
    %v1275 = vunpack.c.l.b16 %v170
    %v1276 = vunpack.c.h.b16 %v170
    %v1277 = vunpack.c.l.b16 %v171
    %v1278 = vunpack.c.h.b16 %v171
    %v1279 = vunpack.c.l.b16 %v172
    %v1280 = vunpack.c.h.b16 %v172
    %v1281 = vunpack.c.l.b16 %v173
    %v1282 = vunpack.c.h.b16 %v173
    %v1283 = vunpack.c.l.b16 %v174
    %v1284 = vunpack.c.h.b16 %v174
    %v1285 = vunpack.c.l.b16 %v175
    %v1286 = vunpack.c.h.b16 %v175
    %v1287 = vunpack.c.l.b16 %v176
    %v1288 = vunpack.c.h.b16 %v176
    %v1289 = vunpack.c.l.b16 %v177
    %v1290 = vunpack.c.h.b16 %v177
    %v1291 = vunpack.c.l.b16 %v178
    %v1292 = vunpack.c.h.b16 %v178
    %v1293 = vunpack.c.l.b16 %v179
    %v1294 = vunpack.c.h.b16 %v179
    %v1295 = vunpack.c.l.b16 %v180
    %v1296 = vunpack.c.h.b16 %v180
    %v1297 = vunpack.c.l.b16 %v181
    %v1298 = vunpack.c.h.b16 %v181
    %v1299 = vunpack.c.l.b16 %v182
    %v1300 = vunpack.c.h.b16 %v182
    %v1301 = vunpack.c.l.b16 %v183
    %v1302 = vunpack.c.h.b16 %v183
    %v1303 = vunpack.c.l.b16 %v184
    %v1304 = vunpack.c.h.b16 %v184
    %v1305 = vunpack.c.l.b16 %v185
    %v1306 = vunpack.c.h.b16 %v185
    %v1307 = vunpack.c.l.b16 %v186
    %v1308 = vunpack.c.h.b16 %v186
    %v1309 = vunpack.c.l.b16 %v187
    %v1310 = vunpack.c.h.b16 %v187
    %v1311 = vunpack.c.l.b16 %v188
    %v1312 = vunpack.c.h.b16 %v188
    %v1313 = vunpack.c.l.b16 %v189
    %v1314 = vunpack.c.h.b16 %v189
    %v1315 = vunpack.c.l.b16 %v190
    %v1316 = vunpack.c.h.b16 %v190
    %v1317 = vunpack.c.l.b16 %v191
    %v1318 = vunpack.c.h.b16 %v191
    %v1319 = vunpack.c.l.b16 %v192
    %v1320 = vunpack.c.h.b16 %v192
    %v1321 = vunpack.c.l.b16 %v193
    %v1322 = vunpack.c.h.b16 %v193
    %v1323 = vunpack.c.l.b16 %v194
    %v1324 = vunpack.c.h.b16 %v194
    %v1325 = vunpack.c.l.b16 %v195
    %v1326 = vunpack.c.h.b16 %v195
    %v1327 = vunpack.c.l.b16 %v196
    %v1328 = vunpack.c.h.b16 %v196
    %v1329 = vunpack.c.l.b16 %v197
    %v1330 = vunpack.c.h.b16 %v197
    %v1331 = vunpack.c.l.b16 %v198
    %v1332 = vunpack.c.h.b16 %v198
    %v1333 = vunpack.c.l.b16 %v199
    %v1334 = vunpack.c.h.b16 %v199
    %v1335 = vunpack.c.l.b16 %v200
    %v1336 = vunpack.c.h.b16 %v200
    %v1337 = vunpack.c.l.b16 %v201
    %v1338 = vunpack.c.h.b16 %v201
    %v1339 = vunpack.c.l.b16 %v202
    %v1340 = vunpack.c.h.b16 %v202
    %v1341 = vunpack.c.l.b16 %v203
    %v1342 = vunpack.c.h.b16 %v203
    %v1343 = vunpack.c.l.b16 %v204
    %v1344 = vunpack.c.h.b16 %v204
    %v1345 = vunpack.c.l.b16 %v205
    %v1346 = vunpack.c.h.b16 %v205
    %v1347 = vunpack.c.l.b16 %v206
    %v1348 = vunpack.c.h.b16 %v206
    %v1349 = vunpack.c.l.b16 %v207
    %v1350 = vunpack.c.h.b16 %v207
    %v1351 = vunpack.c.l.b16 %v208
    %v1352 = vunpack.c.h.b16 %v208
    %v1353 = vunpack.c.l.b16 %v209
    %v1354 = vunpack.c.h.b16 %v209
    %v1355 = vunpack.c.l.b16 %v210
    %v1356 = vunpack.c.h.b16 %v210
    %v1357 = vunpack.c.l.b16 %v211
    %v1358 = vunpack.c.h.b16 %v211
    %v1359 = vunpack.c.l.b16 %v212
    %v1360 = vunpack.c.h.b16 %v212
    %v1361 = vunpack.c.l.b16 %v213
    %v1362 = vunpack.c.h.b16 %v213
    %v1363 = vunpack.c.l.b16 %v214
    %v1364 = vunpack.c.h.b16 %v214
    %v1365 = vunpack.c.l.b16 %v215
    %v1366 = vunpack.c.h.b16 %v215
    %v1367 = vunpack.c.l.b16 %v216
    %v1368 = vunpack.c.h.b16 %v216
    %v1369 = vunpack.c.l.b16 %v217
    %v1370 = vunpack.c.h.b16 %v217
    %v1371 = vunpack.c.l.b16 %v218
    %v1372 = vunpack.c.h.b16 %v218
    %v1373 = vunpack.c.l.b16 %v219
    %v1374 = vunpack.c.h.b16 %v219
    %v1375 = vunpack.c.l.b16 %v220
    %v1376 = vunpack.c.h.b16 %v220
    %v1377 = vunpack.c.l.b16 %v221
    %v1378 = vunpack.c.h.b16 %v221
    %v1379 = vunpack.c.l.b16 %v222
    %v1380 = vunpack.c.h.b16 %v222
    %v1381 = vunpack.c.l.b16 %v223
    %v1382 = vunpack.c.h.b16 %v223
    %v1383 = vunpack.c.l.b16 %v224
    %v1384 = vunpack.c.h.b16 %v224
    %v1385 = vunpack.c.l.b16 %v225
    %v1386 = vunpack.c.h.b16 %v225
    %v1387 = vunpack.c.l.b16 %v226
    %v1388 = vunpack.c.h.b16 %v226
    %v1389 = vunpack.c.l.b16 %v227
    %v1390 = vunpack.c.h.b16 %v227
    %v1391 = vunpack.c.l.b16 %v228
    %v1392 = vunpack.c.h.b16 %v228
    %v1393 = vunpack.c.l.b16 %v229
    %v1394 = vunpack.c.h.b16 %v229
    %v1395 = vunpack.c.l.b16 %v230
    %v1396 = vunpack.c.h.b16 %v230
    %v1397 = vunpack.c.l.b16 %v231
    %v1398 = vunpack.c.h.b16 %v231
    %v1399 = vunpack.c.l.b16 %v232
    %v1400 = vunpack.c.h.b16 %v232
    %v1401 = vunpack.c.l.b16 %v233
    %v1402 = vunpack.c.h.b16 %v233
    %v1403 = vunpack.c.l.b16 %v234
    %v1404 = vunpack.c.h.b16 %v234
    %v1405 = vunpack.c.l.b16 %v235
    %v1406 = vunpack.c.h.b16 %v235
    %v1407 = vunpack.c.l.b16 %v236
    %v1408 = vunpack.c.h.b16 %v236
    %v1409 = vunpack.c.l.b16 %v237
    %v1410 = vunpack.c.h.b16 %v237
    %v1411 = vunpack.c.l.b16 %v238
    %v1412 = vunpack.c.h.b16 %v238
    %v1413 = vunpack.c.l.b16 %v239
    %v1414 = vunpack.c.h.b16 %v239
    %v1415 = vunpack.c.l.b16 %v240
    %v1416 = vunpack.c.h.b16 %v240
    %v1417 = vunpack.c.l.b16 %v241
    %v1418 = vunpack.c.h.b16 %v241
    %v1419 = vunpack.c.l.b16 %v242
    %v1420 = vunpack.c.h.b16 %v242
    %v1421 = vunpack.c.l.b16 %v243
    %v1422 = vunpack.c.h.b16 %v243
    %v1423 = vunpack.c.l.b16 %v244
    %v1424 = vunpack.c.h.b16 %v244
    %v1425 = vunpack.c.l.b16 %v245
    %v1426 = vunpack.c.h.b16 %v245
    %v1427 = vunpack.c.l.b16 %v246
    %v1428 = vunpack.c.h.b16 %v246
    %v1429 = vunpack.c.l.b16 %v247
    %v1430 = vunpack.c.h.b16 %v247
    %v1431 = vunpack.c.l.b16 %v248
    %v1432 = vunpack.c.h.b16 %v248
    %v1433 = vunpack.c.l.b16 %v249
    %v1434 = vunpack.c.h.b16 %v249
    %v1435 = vunpack.c.l.b16 %v250
    %v1436 = vunpack.c.h.b16 %v250
    %v1437 = vunpack.c.l.b16 %v251
    %v1438 = vunpack.c.h.b16 %v251
    %v1439 = vunpack.c.l.b16 %v252
    %v1440 = vunpack.c.h.b16 %v252
    %v1441 = vunpack.c.l.b16 %v253
    %v1442 = vunpack.c.h.b16 %v253
    %v1443 = vunpack.c.l.b16 %v254
    %v1444 = vunpack.c.h.b16 %v254
    %v1445 = vunpack.c.l.b16 %v255
    %v1446 = vunpack.c.h.b16 %v255
    %v1447 = vunpack.c.l.b16 %v256
    %v1448 = vunpack.c.h.b16 %v256
    %v1449 = vunpack.c.l.b16 %v257
    %v1450 = vunpack.c.h.b16 %v257
    %v1451 = vunpack.c.l.b16 %v258
    %v1452 = vunpack.c.h.b16 %v258
    %v1453 = vunpack.c.l.b16 %v259
    %v1454 = vunpack.c.h.b16 %v259
    %v1455 = vunpack.c.l.b16 %v260
    %v1456 = vunpack.c.h.b16 %v260
    %v1457 = vunpack.c.l.b16 %v261
    %v1458 = vunpack.c.h.b16 %v261
    %v1459 = vunpack.c.l.b16 %v262
    %v1460 = vunpack.c.h.b16 %v262
    %v1461 = vunpack.c.l.b16 %v263
    %v1462 = vunpack.c.h.b16 %v263
    %v1463 = vunpack.c.l.b16 %v264
    %v1464 = vunpack.c.h.b16 %v264
    %v1465 = vunpack.c.l.b16 %v265
    %v1466 = vunpack.c.h.b16 %v265
    %v1467 = vunpack.c.l.b16 %v266
    %v1468 = vunpack.c.h.b16 %v266
    %v1469 = vunpack.c.l.b16 %v267
    %v1470 = vunpack.c.h.b16 %v267
    %v1471 = vunpack.c.l.b16 %v268
    %v1472 = vunpack.c.h.b16 %v268
    %v1473 = vunpack.c.l.b16 %v269
    %v1474 = vunpack.c.h.b16 %v269
    %v1475 = vunpack.c.l.b16 %v270
    %v1476 = vunpack.c.h.b16 %v270
    %v1477 = vunpack.c.l.b16 %v271
    %v1478 = vunpack.c.h.b16 %v271
    %v1479 = vunpack.c.l.b16 %v272
    %v1480 = vunpack.c.h.b16 %v272
    %v1481 = vunpack.c.l.b16 %v273
    %v1482 = vunpack.c.h.b16 %v273
    %v1483 = vunpack.c.l.b16 %v274
    %v1484 = vunpack.c.h.b16 %v274
    %v1485 = vunpack.c.l.b16 %v275
    %v1486 = vunpack.c.h.b16 %v275
    %v1487 = vunpack.c.l.b16 %v276
    %v1488 = vunpack.c.h.b16 %v276
    %v1489 = vunpack.c.l.b16 %v277
    %v1490 = vunpack.c.h.b16 %v277
    %v1491 = vunpack.c.l.b16 %v278
    %v1492 = vunpack.c.h.b16 %v278
    %v1493 = vunpack.c.l.b16 %v279
    %v1494 = vunpack.c.h.b16 %v279
    %v1495 = vunpack.c.l.b16 %v280
    %v1496 = vunpack.c.h.b16 %v280
    %v1497 = vunpack.c.l.b16 %v281
    %v1498 = vunpack.c.h.b16 %v281
    %v1499 = vunpack.c.l.b16 %v282
    %v1500 = vunpack.c.h.b16 %v282
    %v1501 = vunpack.c.l.b16 %v283
    %v1502 = vunpack.c.h.b16 %v283
    %v1503 = vunpack.c.l.b16 %v284
    %v1504 = vunpack.c.h.b16 %v284
    %v1505 = vunpack.c.l.b16 %v285
    %v1506 = vunpack.c.h.b16 %v285
    %v1507 = vunpack.c.l.b16 %v286
    %v1508 = vunpack.c.h.b16 %v286
    %v1509 = vunpack.c.l.b16 %v287
    %v1510 = vunpack.c.h.b16 %v287
    %v1511 = vunpack.c.l.b16 %v288
    %v1512 = vunpack.c.h.b16 %v288
    %v1513 = vunpack.c.l.b16 %v289
    %v1514 = vunpack.c.h.b16 %v289
    %v1515 = vunpack.c.l.b16 %v290
    %v1516 = vunpack.c.h.b16 %v290
    %v1517 = vunpack.c.l.b16 %v291
    %v1518 = vunpack.c.h.b16 %v291
    %v1519 = vunpack.c.l.b16 %v292
    %v1520 = vunpack.c.h.b16 %v292
    %v1521 = vunpack.c.l.b16 %v293
    %v1522 = vunpack.c.h.b16 %v293
    %v1523 = vunpack.c.l.b16 %v294
    %v1524 = vunpack.c.h.b16 %v294
    %v1525 = vunpack.c.l.b16 %v295
    %v1526 = vunpack.c.h.b16 %v295
    %v1527 = vunpack.c.l.b16 %v296
    %v1528 = vunpack.c.h.b16 %v296
    %v1529 = vunpack.c.l.b16 %v297
    %v1530 = vunpack.c.h.b16 %v297
    %v1531 = vunpack.c.l.b16 %v298
    %v1532 = vunpack.c.h.b16 %v298
    %v1533 = vunpack.c.l.b16 %v299
    %v1534 = vunpack.c.h.b16 %v299
    %v1535 = vunpack.c.l.b16 %v300
    %v1536 = vunpack.c.h.b16 %v300
    %v1537 = vunpack.c.l.b16 %v301
    %v1538 = vunpack.c.h.b16 %v301
    %v1539 = vunpack.c.l.b16 %v302
    %v1540 = vunpack.c.h.b16 %v302
    %v1541 = vunpack.c.l.b16 %v303
    %v1542 = vunpack.c.h.b16 %v303
    %v1543 = vunpack.c.l.b16 %v304
    %v1544 = vunpack.c.h.b16 %v304
    %v1545 = vunpack.c.l.b16 %v305
    %v1546 = vunpack.c.h.b16 %v305
    %v1547 = vunpack.c.l.b16 %v306
    %v1548 = vunpack.c.h.b16 %v306
    %v1549 = vunpack.c.l.b16 %v307
    %v1550 = vunpack.c.h.b16 %v307
    %v1551 = vunpack.c.l.b16 %v308
    %v1552 = vunpack.c.h.b16 %v308
    %v1553 = vunpack.c.l.b16 %v309
    %v1554 = vunpack.c.h.b16 %v309
    %v1555 = vunpack.c.l.b16 %v310
    %v1556 = vunpack.c.h.b16 %v310
    %v1557 = vunpack.c.l.b16 %v311
    %v1558 = vunpack.c.h.b16 %v311
    %v1559 = vunpack.c.l.b16 %v312
    %v1560 = vunpack.c.h.b16 %v312
    %v1561 = vunpack.c.l.b16 %v313
    %v1562 = vunpack.c.h.b16 %v313
    %v1563 = vunpack.c.l.b16 %v314
    %v1564 = vunpack.c.h.b16 %v314
    %v1565 = vunpack.c.l.b16 %v315
    %v1566 = vunpack.c.h.b16 %v315
    %v1567 = vunpack.c.l.b16 %v316
    %v1568 = vunpack.c.h.b16 %v316
    %v1569 = vunpack.c.l.b16 %v317
    %v1570 = vunpack.c.h.b16 %v317
    %v1571 = vunpack.c.l.b16 %v318
    %v1572 = vunpack.c.h.b16 %v318
    %v1573 = vunpack.c.l.b16 %v319
    %v1574 = vunpack.c.h.b16 %v319
    %v1575 = vunpack.c.l.b16 %v320
    %v1576 = vunpack.c.h.b16 %v320
    %v1577 = vunpack.c.l.b16 %v321
    %v1578 = vunpack.c.h.b16 %v321
    %v1579 = vunpack.c.l.b16 %v322
    %v1580 = vunpack.c.h.b16 %v322
    %v1581 = vunpack.c.l.b16 %v323
    %v1582 = vunpack.c.h.b16 %v323
    %v1583 = vunpack.c.l.b16 %v324
    %v1584 = vunpack.c.h.b16 %v324
    %v1585 = vunpack.c.l.b16 %v325
    %v1586 = vunpack.c.h.b16 %v325
    %v1587 = vunpack.c.l.b16 %v326
    %v1588 = vunpack.c.h.b16 %v326
    %v1589 = vunpack.c.l.b16 %v327
    %v1590 = vunpack.c.h.b16 %v327
    %v1591 = vunpack.c.l.b16 %v328
    %v1592 = vunpack.c.h.b16 %v328
    %v1593 = vunpack.c.l.b16 %v329
    %v1594 = vunpack.c.h.b16 %v329
    %v1595 = vunpack.c.l.b16 %v330
    %v1596 = vunpack.c.h.b16 %v330
    %v1597 = vunpack.c.l.b16 %v331
    %v1598 = vunpack.c.h.b16 %v331
    %v1599 = vunpack.c.l.b16 %v332
    %v1600 = vunpack.c.h.b16 %v332
    %v1601 = vunpack.c.l.b16 %v333
    %v1602 = vunpack.c.h.b16 %v333
    %v1603 = vunpack.c.l.b16 %v334
    %v1604 = vunpack.c.h.b16 %v334
    %v1605 = vunpack.c.l.b16 %v335
    %v1606 = vunpack.c.h.b16 %v335
    %v1607 = vunpack.c.l.b16 %v336
    %v1608 = vunpack.c.h.b16 %v336
    %v1609 = vunpack.c.l.b16 %v337
    %v1610 = vunpack.c.h.b16 %v337
    %v1611 = vunpack.c.l.b16 %v338
    %v1612 = vunpack.c.h.b16 %v338
    %v1613 = vunpack.c.l.b16 %v339
    %v1614 = vunpack.c.h.b16 %v339
    %v1615 = vunpack.c.l.b16 %v340
    %v1616 = vunpack.c.h.b16 %v340
    %v1617 = vunpack.c.l.b16 %v341
    %v1618 = vunpack.c.h.b16 %v341
    %v1619 = vunpack.c.l.b16 %v342
    %v1620 = vunpack.c.h.b16 %v342
    %v1621 = vunpack.c.l.b16 %v343
    %v1622 = vunpack.c.h.b16 %v343
    %v1623 = vunpack.c.l.b16 %v344
    %v1624 = vunpack.c.h.b16 %v344
    %v1625 = vunpack.c.l.b16 %v345
    %v1626 = vunpack.c.h.b16 %v345
    %v1627 = vunpack.c.l.b16 %v346
    %v1628 = vunpack.c.h.b16 %v346
    %v1629 = vunpack.c.l.b16 %v347
    %v1630 = vunpack.c.h.b16 %v347
    %v1631 = vunpack.c.l.b16 %v348
    %v1632 = vunpack.c.h.b16 %v348
    %v1633 = vunpack.c.l.b16 %v349
    %v1634 = vunpack.c.h.b16 %v349
    %v1635 = vunpack.c.l.b16 %v350
    %v1636 = vunpack.c.h.b16 %v350
    %v1637 = vunpack.c.l.b16 %v351
    %v1638 = vunpack.c.h.b16 %v351
    %v1639 = vunpack.c.l.b16 %v352
    %v1640 = vunpack.c.h.b16 %v352
    %v1641 = vunpack.c.l.b16 %v353
    %v1642 = vunpack.c.h.b16 %v353
    %v1643 = vunpack.c.l.b16 %v354
    %v1644 = vunpack.c.h.b16 %v354
    %v1645 = vunpack.c.l.b16 %v355
    %v1646 = vunpack.c.h.b16 %v355
    %v1647 = vunpack.c.l.b16 %v356
    %v1648 = vunpack.c.h.b16 %v356
    %v1649 = vunpack.c.l.b16 %v357
    %v1650 = vunpack.c.h.b16 %v357
    %v1651 = vunpack.c.l.b16 %v358
    %v1652 = vunpack.c.h.b16 %v358
    %v1653 = vunpack.c.l.b16 %v359
    %v1654 = vunpack.c.h.b16 %v359
    %v1655 = vunpack.c.l.b16 %v360
    %v1656 = vunpack.c.h.b16 %v360
    %v1657 = vunpack.c.l.b16 %v361
    %v1658 = vunpack.c.h.b16 %v361
    %v1659 = vunpack.c.l.b16 %v362
    %v1660 = vunpack.c.h.b16 %v362
    %v1661 = vunpack.c.l.b16 %v363
    %v1662 = vunpack.c.h.b16 %v363
    %v1663 = vunpack.c.l.b16 %v364
    %v1664 = vunpack.c.h.b16 %v364
    %v1665 = vunpack.c.l.b16 %v365
    %v1666 = vunpack.c.h.b16 %v365
    %v1667 = vunpack.c.l.b16 %v366
    %v1668 = vunpack.c.h.b16 %v366
    %v1669 = vunpack.c.l.b16 %v367
    %v1670 = vunpack.c.h.b16 %v367
    %v1671 = vunpack.c.l.b16 %v368
    %v1672 = vunpack.c.h.b16 %v368
    %v1673 = vunpack.c.l.b16 %v369
    %v1674 = vunpack.c.h.b16 %v369
    %v1675 = vunpack.c.l.b16 %v370
    %v1676 = vunpack.c.h.b16 %v370
    %v1677 = vunpack.c.l.b16 %v371
    %v1678 = vunpack.c.h.b16 %v371
    %v1679 = vunpack.c.l.b16 %v372
    %v1680 = vunpack.c.h.b16 %v372
    %v1681 = vunpack.c.l.b16 %v373
    %v1682 = vunpack.c.h.b16 %v373
    %v1683 = vunpack.c.l.b16 %v374
    %v1684 = vunpack.c.h.b16 %v374
    %v1685 = vunpack.c.l.b16 %v375
    %v1686 = vunpack.c.h.b16 %v375
    %v1687 = vunpack.c.l.b16 %v376
    %v1688 = vunpack.c.h.b16 %v376
    %v1689 = vunpack.c.l.b16 %v377
    %v1690 = vunpack.c.h.b16 %v377
    %v1691 = vunpack.c.l.b16 %v378
    %v1692 = vunpack.c.h.b16 %v378
    %v1693 = vunpack.c.l.b16 %v379
    %v1694 = vunpack.c.h.b16 %v379
    %v1695 = vunpack.c.l.b16 %v380
    %v1696 = vunpack.c.h.b16 %v380
    %v1697 = vunpack.c.l.b16 %v381
    %v1698 = vunpack.c.h.b16 %v381
    %v1699 = vunpack.c.l.b16 %v382
    %v1700 = vunpack.c.h.b16 %v382
    %v1701 = vunpack.c.l.b16 %v383
    %v1702 = vunpack.c.h.b16 %v383
    %v1703 = vunpack.c.l.b16 %v384
    %v1704 = vunpack.c.h.b16 %v384
    %v1705 = vunpack.c.l.b16 %v385
    %v1706 = vunpack.c.h.b16 %v385
    %v1707 = vunpack.c.l.b16 %v386
    %v1708 = vunpack.c.h.b16 %v386
    %v1709 = vunpack.c.l.b16 %v387
    %v1710 = vunpack.c.h.b16 %v387
    %v1711 = vunpack.c.l.b16 %v388
    %v1712 = vunpack.c.h.b16 %v388
    %v1713 = vunpack.c.l.b16 %v389
    %v1714 = vunpack.c.h.b16 %v389
    %v1715 = vunpack.c.l.b16 %v390
    %v1716 = vunpack.c.h.b16 %v390
    %v1717 = vunpack.c.l.b16 %v391
    %v1718 = vunpack.c.h.b16 %v391
    %v1719 = vunpack.c.l.b16 %v392
    %v1720 = vunpack.c.h.b16 %v392
    %v1721 = vunpack.c.l.b16 %v393
    %v1722 = vunpack.c.h.b16 %v393
    %v1723 = vunpack.c.l.b16 %v394
    %v1724 = vunpack.c.h.b16 %v394
    %v1725 = vunpack.c.l.b16 %v395
    %v1726 = vunpack.c.h.b16 %v395
    %v1727 = vunpack.c.l.b16 %v396
    %v1728 = vunpack.c.h.b16 %v396
    %v1729 = vunpack.c.l.b16 %v397
    %v1730 = vunpack.c.h.b16 %v397
    %v1731 = vunpack.c.l.b16 %v398
    %v1732 = vunpack.c.h.b16 %v398
    %v1733 = vunpack.c.l.b16 %v399
    %v1734 = vunpack.c.h.b16 %v399
    %v1735 = vunpack.c.l.b16 %v400
    %v1736 = vunpack.c.h.b16 %v400
    %v1737 = vunpack.c.l.b16 %v401
    %v1738 = vunpack.c.h.b16 %v401
    %v1739 = vunpack.c.l.b16 %v402
    %v1740 = vunpack.c.h.b16 %v402
    %v1741 = vunpack.c.l.b16 %v403
    %v1742 = vunpack.c.h.b16 %v403
    %v1743 = vunpack.c.l.b16 %v404
    %v1744 = vunpack.c.h.b16 %v404
    %v1745 = vunpack.c.l.b16 %v405
    %v1746 = vunpack.c.h.b16 %v405
    %v1747 = vunpack.c.l.b16 %v406
    %v1748 = vunpack.c.h.b16 %v406
    %v1749 = vunpack.c.l.b16 %v407
    %v1750 = vunpack.c.h.b16 %v407
    %v1751 = vunpack.c.l.b16 %v408
    %v1752 = vunpack.c.h.b16 %v408
    %v1753 = vunpack.c.l.b16 %v409
    %v1754 = vunpack.c.h.b16 %v409
    %v1755 = vunpack.c.l.b16 %v410
    %v1756 = vunpack.c.h.b16 %v410
    %v1757 = vunpack.c.l.b16 %v411
    %v1758 = vunpack.c.h.b16 %v411
    %v1759 = vunpack.c.l.b16 %v412
    %v1760 = vunpack.c.h.b16 %v412
    %v1761 = vunpack.c.l.b16 %v413
    %v1762 = vunpack.c.h.b16 %v413
    %v1763 = vunpack.c.l.b16 %v414
    %v1764 = vunpack.c.h.b16 %v414
    %v1765 = vunpack.c.l.b16 %v415
    %v1766 = vunpack.c.h.b16 %v415
    %v1767 = vunpack.c.l.b16 %v416
    %v1768 = vunpack.c.h.b16 %v416
    %v1769 = vunpack.c.l.b16 %v417
    %v1770 = vunpack.c.h.b16 %v417
    %v1771 = vunpack.c.l.b16 %v418
    %v1772 = vunpack.c.h.b16 %v418
    %v1773 = vunpack.c.l.b16 %v419
    %v1774 = vunpack.c.h.b16 %v419
    %v1775 = vunpack.c.l.b16 %v420
    %v1776 = vunpack.c.h.b16 %v420
    %v1777 = vunpack.c.l.b16 %v421
    %v1778 = vunpack.c.h.b16 %v421
    %v1779 = vunpack.c.l.b16 %v422
    %v1780 = vunpack.c.h.b16 %v422
    %v1781 = vunpack.c.l.b16 %v423
    %v1782 = vunpack.c.h.b16 %v423
    %v1783 = vunpack.c.l.b16 %v424
    %v1784 = vunpack.c.h.b16 %v424
    %v1785 = vunpack.c.l.b16 %v425
    %v1786 = vunpack.c.h.b16 %v425
    %v1787 = vunpack.c.l.b16 %v426
    %v1788 = vunpack.c.h.b16 %v426
    %v1789 = vunpack.c.l.b16 %v427
    %v1790 = vunpack.c.h.b16 %v427
    %v1791 = vunpack.c.l.b16 %v428
    %v1792 = vunpack.c.h.b16 %v428
    %v1793 = vunpack.c.l.b16 %v429
    %v1794 = vunpack.c.h.b16 %v429
    %v1795 = vunpack.c.l.b16 %v430
    %v1796 = vunpack.c.h.b16 %v430
    %v1797 = vunpack.c.l.b16 %v431
    %v1798 = vunpack.c.h.b16 %v431
    %v1799 = vunpack.c.l.b16 %v432
    %v1800 = vunpack.c.h.b16 %v432
    %v1801 = vunpack.c.l.b16 %v433
    %v1802 = vunpack.c.h.b16 %v433
    %v1803 = vunpack.c.l.b16 %v434
    %v1804 = vunpack.c.h.b16 %v434
    %v1805 = vunpack.c.l.b16 %v435
    %v1806 = vunpack.c.h.b16 %v435
    %v1807 = vunpack.c.l.b16 %v436
    %v1808 = vunpack.c.h.b16 %v436
    %v1809 = vunpack.c.l.b16 %v437
    %v1810 = vunpack.c.h.b16 %v437
    %v1811 = vunpack.c.l.b16 %v438
    %v1812 = vunpack.c.h.b16 %v438
    %v1813 = vunpack.c.l.b16 %v439
    %v1814 = vunpack.c.h.b16 %v439
    %v1815 = vunpack.c.l.b16 %v440
    %v1816 = vunpack.c.h.b16 %v440
    %v1817 = vunpack.c.l.b16 %v441
    %v1818 = vunpack.c.h.b16 %v441
    %v1819 = vunpack.c.l.b16 %v442
    %v1820 = vunpack.c.h.b16 %v442
    %v1821 = vunpack.c.l.b16 %v443
    %v1822 = vunpack.c.h.b16 %v443
    %v1823 = vunpack.c.l.b16 %v444
    %v1824 = vunpack.c.h.b16 %v444
    %v1825 = vunpack.c.l.b16 %v445
    %v1826 = vunpack.c.h.b16 %v445
    %v1827 = vunpack.c.l.b16 %v446
    %v1828 = vunpack.c.h.b16 %v446
    %v1829 = vunpack.c.l.b16 %v447
    %v1830 = vunpack.c.h.b16 %v447
    %v1831 = vunpack.c.l.b16 %v448
    %v1832 = vunpack.c.h.b16 %v448
    %v1833 = vunpack.c.l.b16 %v449
    %v1834 = vunpack.c.h.b16 %v449
    %v1835 = vunpack.c.l.b16 %v450
    %v1836 = vunpack.c.h.b16 %v450
    %v1837 = vunpack.c.l.b16 %v451
    %v1838 = vunpack.c.h.b16 %v451
    %v1839 = vunpack.c.l.b16 %v452
    %v1840 = vunpack.c.h.b16 %v452
    %v1841 = vunpack.c.l.b16 %v453
    %v1842 = vunpack.c.h.b16 %v453
    %v1843 = vunpack.c.l.b16 %v454
    %v1844 = vunpack.c.h.b16 %v454
    %v1845 = vunpack.c.l.b16 %v455
    %v1846 = vunpack.c.h.b16 %v455
    %v1847 = vunpack.c.l.b16 %v456
    %v1848 = vunpack.c.h.b16 %v456
    %v1849 = vunpack.c.l.b16 %v457
    %v1850 = vunpack.c.h.b16 %v457
    %v1851 = vunpack.c.l.b16 %v458
    %v1852 = vunpack.c.h.b16 %v458
    %v1853 = vunpack.c.l.b16 %v459
    %v1854 = vunpack.c.h.b16 %v459
    %v1855 = vunpack.c.l.b16 %v460
    %v1856 = vunpack.c.h.b16 %v460
    %v1857 = vunpack.c.l.b16 %v461
    %v1858 = vunpack.c.h.b16 %v461
    %v1859 = vunpack.c.l.b16 %v462
    %v1860 = vunpack.c.h.b16 %v462
    %v1861 = vunpack.c.l.b16 %v463
    %v1862 = vunpack.c.h.b16 %v463
    %v1863 = vunpack.c.l.b16 %v464
    %v1864 = vunpack.c.h.b16 %v464
    %v1865 = vunpack.c.l.b16 %v465
    %v1866 = vunpack.c.h.b16 %v465
    %v1867 = vunpack.c.l.b16 %v466
    %v1868 = vunpack.c.h.b16 %v466
    %v1869 = vunpack.c.l.b16 %v467
    %v1870 = vunpack.c.h.b16 %v467
    %v1871 = vunpack.c.l.b16 %v468
    %v1872 = vunpack.c.h.b16 %v468
    %v1873 = vunpack.c.l.b16 %v469
    %v1874 = vunpack.c.h.b16 %v469
    %v1875 = vunpack.c.l.b16 %v470
    %v1876 = vunpack.c.h.b16 %v470
    %v1877 = vunpack.c.l.b16 %v471
    %v1878 = vunpack.c.h.b16 %v471
    %v1879 = vunpack.c.l.b16 %v472
    %v1880 = vunpack.c.h.b16 %v472
    %v1881 = vunpack.c.l.b16 %v473
    %v1882 = vunpack.c.h.b16 %v473
    %v1883 = vunpack.c.l.b16 %v474
    %v1884 = vunpack.c.h.b16 %v474
    %v1885 = vunpack.c.l.b16 %v475
    %v1886 = vunpack.c.h.b16 %v475
    %v1887 = vunpack.c.l.b16 %v476
    %v1888 = vunpack.c.h.b16 %v476
    %v1889 = vunpack.c.l.b16 %v477
    %v1890 = vunpack.c.h.b16 %v477
    %v1891 = vunpack.c.l.b16 %v478
    %v1892 = vunpack.c.h.b16 %v478
    %v1893 = vunpack.c.l.b16 %v479
    %v1894 = vunpack.c.h.b16 %v479
    %v1895 = vunpack.c.l.b16 %v480
    %v1896 = vunpack.c.h.b16 %v480
    %v1897 = vunpack.c.l.b16 %v481
    %v1898 = vunpack.c.h.b16 %v481
    %v1899 = vunpack.c.l.b16 %v482
    %v1900 = vunpack.c.h.b16 %v482
    %v1901 = vunpack.c.l.b16 %v483
    %v1902 = vunpack.c.h.b16 %v483
    %v1903 = vunpack.c.l.b16 %v484
    %v1904 = vunpack.c.h.b16 %v484
    %v1905 = vunpack.c.l.b16 %v485
    %v1906 = vunpack.c.h.b16 %v485
    %v1907 = vunpack.c.l.b16 %v486
    %v1908 = vunpack.c.h.b16 %v486
    %v1909 = vunpack.c.l.b16 %v487
    %v1910 = vunpack.c.h.b16 %v487
    %v1911 = vunpack.c.l.b16 %v488
    %v1912 = vunpack.c.h.b16 %v488
    %v1913 = vunpack.c.l.b16 %v489
    %v1914 = vunpack.c.h.b16 %v489
    %v1915 = vunpack.c.l.b16 %v490
    %v1916 = vunpack.c.h.b16 %v490
    %v1917 = vunpack.c.l.b16 %v491
    %v1918 = vunpack.c.h.b16 %v491
    %v1919 = vunpack.c.l.b16 %v492
    %v1920 = vunpack.c.h.b16 %v492
    %v1921 = vunpack.c.l.b16 %v493
    %v1922 = vunpack.c.h.b16 %v493
    %v1923 = vunpack.c.l.b16 %v494
    %v1924 = vunpack.c.h.b16 %v494
    %v1925 = vunpack.c.l.b16 %v495
    %v1926 = vunpack.c.h.b16 %v495
    %v1927 = vunpack.c.l.b16 %v496
    %v1928 = vunpack.c.h.b16 %v496
    %v1929 = vunpack.c.l.b16 %v497
    %v1930 = vunpack.c.h.b16 %v497
    %v1931 = vunpack.c.l.b16 %v498
    %v1932 = vunpack.c.h.b16 %v498
    %v1933 = vunpack.c.l.b16 %v499
    %v1934 = vunpack.c.h.b16 %v499
    %v1935 = vunpack.c.l.b16 %v500
    %v1936 = vunpack.c.h.b16 %v500
    %v1937 = vunpack.c.l.b16 %v501
    %v1938 = vunpack.c.h.b16 %v501
    %v1939 = vunpack.c.l.b16 %v502
    %v1940 = vunpack.c.h.b16 %v502
    %v1941 = vunpack.c.l.b16 %v503
    %v1942 = vunpack.c.h.b16 %v503
    %v1943 = vunpack.c.l.b16 %v504
    %v1944 = vunpack.c.h.b16 %v504
    %v1945 = vunpack.c.l.b16 %v505
    %v1946 = vunpack.c.h.b16 %v505
    %v1947 = vunpack.c.l.b16 %v506
    %v1948 = vunpack.c.h.b16 %v506
    %v1949 = vunpack.c.l.b16 %v507
    %v1950 = vunpack.c.h.b16 %v507
    %v1951 = vunpack.c.l.b16 %v508
    %v1952 = vunpack.c.h.b16 %v508
    %v1953 = vunpack.c.l.b16 %v509
    %v1954 = vunpack.c.h.b16 %v509
    %v1955 = vunpack.c.l.b16 %v510
    %v1956 = vunpack.c.h.b16 %v510
    %v1957 = vunpack.c.l.b16 %v511
    %v1958 = vunpack.c.h.b16 %v511
    %v1959 = vunpack.c.l.b16 %v512
    %v1960 = vunpack.c.h.b16 %v512
    %v1961 = vunpack.c.l.b16 %v513
    %v1962 = vunpack.c.h.b16 %v513
    %v1963 = vunpack.c.l.b16 %v514
    %v1964 = vunpack.c.h.b16 %v514
    %v1965 = vunpack.c.l.b16 %v515
    %v1966 = vunpack.c.h.b16 %v515
    %v1967 = vunpack.c.l.b16 %v516
    %v1968 = vunpack.c.h.b16 %v516
    %v1969 = vunpack.c.l.b16 %v517
    %v1970 = vunpack.c.h.b16 %v517
    %v1971 = vunpack.c.l.b16 %v518
    %v1972 = vunpack.c.h.b16 %v518
    %v1973 = vunpack.c.l.b16 %v519
    %v1974 = vunpack.c.h.b16 %v519
    %v1975 = vunpack.c.l.b16 %v520
    %v1976 = vunpack.c.h.b16 %v520
    %v1977 = vunpack.c.l.b16 %v521
    %v1978 = vunpack.c.h.b16 %v521
    %v1979 = vunpack.c.l.b16 %v522
    %v1980 = vunpack.c.h.b16 %v522
    %v1981 = vunpack.c.l.b16 %v523
    %v1982 = vunpack.c.h.b16 %v523
    %v1983 = vunpack.c.l.b16 %v524
    %v1984 = vunpack.c.h.b16 %v524
    %v1985 = vunpack.c.l.b16 %v525
    %v1986 = vunpack.c.h.b16 %v525
    %v1987 = vunpack.c.l.b16 %v526
    %v1988 = vunpack.c.h.b16 %v526
    %v1989 = vunpack.c.l.b16 %v527
    %v1990 = vunpack.c.h.b16 %v527
    %v1991 = vunpack.c.l.b16 %v528
    %v1992 = vunpack.c.h.b16 %v528
    %v1993 = vunpack.c.l.b16 %v529
    %v1994 = vunpack.c.h.b16 %v529
    %v1995 = vunpack.c.l.b16 %v530
    %v1996 = vunpack.c.h.b16 %v530
    %v1997 = vunpack.c.l.b16 %v531
    %v1998 = vunpack.c.h.b16 %v531
    %v1999 = vunpack.c.l.b16 %v532
    %v2000 = vunpack.c.h.b16 %v532
    %v2001 = vunpack.c.l.b16 %v533
    %v2002 = vunpack.c.h.b16 %v533
    %v2003 = vunpack.c.l.b16 %v534
    %v2004 = vunpack.c.h.b16 %v534
    %v2005 = vunpack.c.l.b16 %v535
    %v2006 = vunpack.c.h.b16 %v535
    %v2007 = vunpack.c.l.b16 %v536
    %v2008 = vunpack.c.h.b16 %v536
    %v2009 = vunpack.c.l.b16 %v537
    %v2010 = vunpack.c.h.b16 %v537
    %v2011 = vunpack.c.l.b16 %v538
    %v2012 = vunpack.c.h.b16 %v538
    %v2013 = vunpack.c.l.b16 %v539
    %v2014 = vunpack.c.h.b16 %v539
    %v2015 = vunpack.c.l.b16 %v540
    %v2016 = vunpack.c.h.b16 %v540
    %v2017 = vunpack.c.l.b16 %v541
    %v2018 = vunpack.c.h.b16 %v541
    %v2019 = vunpack.c.l.b16 %v542
    %v2020 = vunpack.c.h.b16 %v542
    %v2021 = vunpack.c.l.b16 %v543
    %v2022 = vunpack.c.h.b16 %v543
    %v2023 = vunpack.c.l.b16 %v544
    %v2024 = vunpack.c.h.b16 %v544
    %v2025 = vunpack.c.l.b16 %v545
    %v2026 = vunpack.c.h.b16 %v545
    %v2027 = vunpack.c.l.b16 %v546
    %v2028 = vunpack.c.h.b16 %v546
    %v2029 = vunpack.c.l.b16 %v547
    %v2030 = vunpack.c.h.b16 %v547
    %v2031 = vunpack.c.l.b16 %v548
    %v2032 = vunpack.c.h.b16 %v548
    %v2033 = vunpack.c.l.b16 %v549
    %v2034 = vunpack.c.h.b16 %v549
    %v2035 = vunpack.c.l.b16 %v550
    %v2036 = vunpack.c.h.b16 %v550
    %v2037 = vunpack.c.l.b16 %v551
    %v2038 = vunpack.c.h.b16 %v551
    %v2039 = vunpack.c.l.b16 %v552
    %v2040 = vunpack.c.h.b16 %v552
    %v2041 = vunpack.c.l.b16 %v553
    %v2042 = vunpack.c.h.b16 %v553
    %v2043 = vunpack.c.l.b16 %v554
    %v2044 = vunpack.c.h.b16 %v554
    %v2045 = vunpack.c.l.b16 %v555
    %v2046 = vunpack.c.h.b16 %v555
    %v2047 = vunpack.c.l.b16 %v556
    %v2048 = vunpack.c.h.b16 %v556
    %v2049 = vunpack.c.l.b16 %v557
    %v2050 = vunpack.c.h.b16 %v557
    %v2051 = vunpack.c.l.b16 %v558
    %v2052 = vunpack.c.h.b16 %v558
    %v2053 = vunpack.c.l.b16 %v559
    %v2054 = vunpack.c.h.b16 %v559
    %v2055 = vunpack.c.l.b16 %v560
    %v2056 = vunpack.c.h.b16 %v560
    %v2057 = vunpack.c.l.b16 %v561
    %v2058 = vunpack.c.h.b16 %v561
    %v2059 = vunpack.c.l.b16 %v562
    %v2060 = vunpack.c.h.b16 %v562
    %v2061 = vunpack.c.l.b16 %v563
    %v2062 = vunpack.c.h.b16 %v563
    %v2063 = vunpack.c.l.b16 %v564
    %v2064 = vunpack.c.h.b16 %v564
    %v2065 = vunpack.c.l.b16 %v565
    %v2066 = vunpack.c.h.b16 %v565
    %v2067 = vunpack.c.l.b16 %v566
    %v2068 = vunpack.c.h.b16 %v566
    %v2069 = vunpack.c.l.b16 %v567
    %v2070 = vunpack.c.h.b16 %v567
    %v2071 = vunpack.c.l.b16 %v568
    %v2072 = vunpack.c.h.b16 %v568
    %v2073 = vunpack.c.l.b16 %v569
    %v2074 = vunpack.c.h.b16 %v569
    %v2075 = vunpack.c.l.b16 %v570
    %v2076 = vunpack.c.h.b16 %v570
    %v2077 = vunpack.c.l.b16 %v571
    %v2078 = vunpack.c.h.b16 %v571
    %v2079 = vunpack.c.l.b16 %v572
    %v2080 = vunpack.c.h.b16 %v572
    %v2081 = vunpack.c.l.b16 %v573
    %v2082 = vunpack.c.h.b16 %v573
    %v2083 = vunpack.c.l.b16 %v574
    %v2084 = vunpack.c.h.b16 %v574
    %v2085 = vunpack.c.l.b16 %v575
    %v2086 = vunpack.c.h.b16 %v575
    %v2087 = vunpack.c.l.b16 %v576
    %v2088 = vunpack.c.h.b16 %v576
    %v2089 = vunpack.c.l.b16 %v577
    %v2090 = vunpack.c.h.b16 %v577
    %v2091 = vunpack.c.l.b16 %v578
    %v2092 = vunpack.c.h.b16 %v578
    %v2093 = vunpack.c.l.b16 %v579
    %v2094 = vunpack.c.h.b16 %v579
    %v2095 = vunpack.c.l.b16 %v580
    %v2096 = vunpack.c.h.b16 %v580
    %v2097 = vunpack.c.l.b16 %v581
    %v2098 = vunpack.c.h.b16 %v581
    %v2099 = vunpack.c.l.b16 %v582
    %v2100 = vunpack.c.h.b16 %v582
    %v2101 = vunpack.c.l.b16 %v583
    %v2102 = vunpack.c.h.b16 %v583
    %v2103 = vunpack.c.l.b16 %v584
    %v2104 = vunpack.c.h.b16 %v584
    %v2105 = vunpack.c.l.b16 %v585
    %v2106 = vunpack.c.h.b16 %v585
    %v2107 = vunpack.c.l.b16 %v586
    %v2108 = vunpack.c.h.b16 %v586
    %v2109 = vunpack.c.l.b16 %v587
    %v2110 = vunpack.c.h.b16 %v587
    %v2111 = vunpack.c.l.b16 %v588
    %v2112 = vunpack.c.h.b16 %v588
    %v2113 = vunpack.c.l.b16 %v589
    %v2114 = vunpack.c.h.b16 %v589
    %v2115 = vunpack.c.l.b16 %v590
    %v2116 = vunpack.c.h.b16 %v590
    %v2117 = vunpack.c.l.b16 %v591
    %v2118 = vunpack.c.h.b16 %v591
    %v2119 = vunpack.c.l.b16 %v592
    %v2120 = vunpack.c.h.b16 %v592
    %v2121 = vunpack.c.l.b16 %v593
    %v2122 = vunpack.c.h.b16 %v593
    %v2123 = vunpack.c.l.b16 %v594
    %v2124 = vunpack.c.h.b16 %v594
    %v2125 = vunpack.c.l.b16 %v595
    %v2126 = vunpack.c.h.b16 %v595
    %v2127 = vunpack.c.l.b16 %v596
    %v2128 = vunpack.c.h.b16 %v596
    %v2129 = vunpack.c.l.b16 %v597
    %v2130 = vunpack.c.h.b16 %v597
    %v2131 = vunpack.c.l.b16 %v598
    %v2132 = vunpack.c.h.b16 %v598
    %v2133 = vunpack.c.l.b16 %v599
    %v2134 = vunpack.c.h.b16 %v599
    %v2135 = vunpack.c.l.b16 %v600
    %v2136 = vunpack.c.h.b16 %v600
    %v2137 = vunpack.c.l.b16 %v601
    %v2138 = vunpack.c.h.b16 %v601
    %v2139 = vunpack.c.l.b16 %v602
    %v2140 = vunpack.c.h.b16 %v602
    %v2141 = vunpack.c.l.b16 %v603
    %v2142 = vunpack.c.h.b16 %v603
    %v2143 = vunpack.c.l.b16 %v604
    %v2144 = vunpack.c.h.b16 %v604
    %v2145 = vunpack.c.l.b16 %v605
    %v2146 = vunpack.c.h.b16 %v605
    %v2147 = vunpack.c.l.b16 %v606
    %v2148 = vunpack.c.h.b16 %v606
    %v2149 = vunpack.c.l.b16 %v607
    %v2150 = vunpack.c.h.b16 %v607
    %v2151 = vunpack.c.l.b16 %v608
    %v2152 = vunpack.c.h.b16 %v608
    %v2153 = vunpack.c.l.b16 %v609
    %v2154 = vunpack.c.h.b16 %v609
    %v2155 = vunpack.c.l.b16 %v610
    %v2156 = vunpack.c.h.b16 %v610
    %v2157 = vunpack.c.l.b16 %v611
    %v2158 = vunpack.c.h.b16 %v611
    %v2159 = vunpack.c.l.b16 %v612
    %v2160 = vunpack.c.h.b16 %v612
    %v2161 = vunpack.c.l.b16 %v613
    %v2162 = vunpack.c.h.b16 %v613
    %v2163 = vunpack.c.l.b16 %v614
    %v2164 = vunpack.c.h.b16 %v614
    %v2165 = vunpack.c.l.b16 %v615
    %v2166 = vunpack.c.h.b16 %v615
    %v2167 = vunpack.c.l.b16 %v616
    %v2168 = vunpack.c.h.b16 %v616
    %v2169 = vunpack.c.l.b16 %v617
    %v2170 = vunpack.c.h.b16 %v617
    %v2171 = vunpack.c.l.b16 %v618
    %v2172 = vunpack.c.h.b16 %v618
    %v2173 = vunpack.c.l.b16 %v619
    %v2174 = vunpack.c.h.b16 %v619
    %v2175 = vunpack.c.l.b16 %v620
    %v2176 = vunpack.c.h.b16 %v620
    %v2177 = vunpack.c.l.b16 %v621
    %v2178 = vunpack.c.h.b16 %v621
    %v2179 = vunpack.c.l.b16 %v622
    %v2180 = vunpack.c.h.b16 %v622
    %v2181 = vunpack.c.l.b16 %v623
    %v2182 = vunpack.c.h.b16 %v623
    %v2183 = vunpack.c.l.b16 %v624
    %v2184 = vunpack.c.h.b16 %v624
    %v2185 = vunpack.c.l.b16 %v625
    %v2186 = vunpack.c.h.b16 %v625
    %v2187 = vunpack.c.l.b16 %v626
    %v2188 = vunpack.c.h.b16 %v626
    %v2189 = vunpack.c.l.b16 %v627
    %v2190 = vunpack.c.h.b16 %v627
    %v2191 = vunpack.c.l.b16 %v628
    %v2192 = vunpack.c.h.b16 %v628
    %v2193 = vunpack.c.l.b16 %v629
    %v2194 = vunpack.c.h.b16 %v629
    %v2195 = vunpack.c.l.b16 %v630
    %v2196 = vunpack.c.h.b16 %v630
    %v2197 = vunpack.c.l.b16 %v631
    %v2198 = vunpack.c.h.b16 %v631
    %v2199 = vunpack.c.l.b16 %v632
    %v2200 = vunpack.c.h.b16 %v632
    %v2201 = vunpack.c.l.b16 %v633
    %v2202 = vunpack.c.h.b16 %v633
    %v2203 = vunpack.c.l.b16 %v634
    %v2204 = vunpack.c.h.b16 %v634
    %v2205 = vunpack.c.l.b16 %v635
    %v2206 = vunpack.c.h.b16 %v635
    %v2207 = vunpack.c.l.b16 %v636
    %v2208 = vunpack.c.h.b16 %v636
    %v2209 = vunpack.c.l.b16 %v637
    %v2210 = vunpack.c.h.b16 %v637
    %v2211 = vunpack.c.l.b16 %v638
    %v2212 = vunpack.c.h.b16 %v638
    %v2213 = vunpack.c.l.b16 %v639
    %v2214 = vunpack.c.h.b16 %v639
    %v2215 = vunpack.c.l.b16 %v640
    %v2216 = vunpack.c.h.b16 %v640
    %v2217 = vunpack.c.l.b16 %v641
    %v2218 = vunpack.c.h.b16 %v641
    %v2219 = vunpack.c.l.b16 %v642
    %v2220 = vunpack.c.h.b16 %v642
    %v2221 = vunpack.c.l.b16 %v643
    %v2222 = vunpack.c.h.b16 %v643
    %v2223 = vunpack.c.l.b16 %v644
    %v2224 = vunpack.c.h.b16 %v644
    %v2225 = vunpack.c.l.b16 %v645
    %v2226 = vunpack.c.h.b16 %v645
    %v2227 = vunpack.c.l.b16 %v646
    %v2228 = vunpack.c.h.b16 %v646
    %v2229 = vpack.c.b16 %v1213, %v1205
    %v2230 = vpack.c.b16 %v1214, %v1206
    %v2231 = vpack.c.b16 %v1215, %v1207
    %v2232 = vpack.c.b16 %v1216, %v1208
    %v2233 = vpack.c.b16 %v1217, %v1209
    %v2234 = vpack.c.b16 %v1218, %v1210
    %v2235 = vpack.c.b16 %v1219, %v1211
    %v2236 = vpack.c.b16 %v1220, %v1212
    %v2237 = vpack.c.b16 %v1229, %v1221
    %v2238 = vpack.c.b16 %v1230, %v1222
    %v2239 = vpack.c.b16 %v1231, %v1223
    %v2240 = vpack.c.b16 %v1232, %v1224
    %v2241 = vpack.c.b16 %v1233, %v1225
    %v2242 = vpack.c.b16 %v1234, %v1226
    %v2243 = vpack.c.b16 %v1235, %v1227
    %v2244 = vpack.c.b16 %v1236, %v1228
    %v2245 = vpack.c.b16 %v1245, %v1237
    %v2246 = vpack.c.b16 %v1246, %v1238
    %v2247 = vpack.c.b16 %v1247, %v1239
    %v2248 = vpack.c.b16 %v1248, %v1240
    %v2249 = vpack.c.b16 %v1249, %v1241
    %v2250 = vpack.c.b16 %v1250, %v1242
    %v2251 = vpack.c.b16 %v1251, %v1243
    %v2252 = vpack.c.b16 %v1252, %v1244
    %v2253 = vpack.c.b16 %v1261, %v1253
    %v2254 = vpack.c.b16 %v1262, %v1254
    %v2255 = vpack.c.b16 %v1263, %v1255
    %v2256 = vpack.c.b16 %v1264, %v1256
    %v2257 = vpack.c.b16 %v1265, %v1257
    %v2258 = vpack.c.b16 %v1266, %v1258
    %v2259 = vpack.c.b16 %v1267, %v1259
    %v2260 = vpack.c.b16 %v1268, %v1260
    %v2261 = vpack.c.b16 %v1277, %v1269
    %v2262 = vpack.c.b16 %v1278, %v1270
    %v2263 = vpack.c.b16 %v1279, %v1271
    %v2264 = vpack.c.b16 %v1280, %v1272
    %v2265 = vpack.c.b16 %v1281, %v1273
    %v2266 = vpack.c.b16 %v1282, %v1274
    %v2267 = vpack.c.b16 %v1283, %v1275
    %v2268 = vpack.c.b16 %v1284, %v1276
    %v2269 = vpack.c.b16 %v1293, %v1285
    %v2270 = vpack.c.b16 %v1294, %v1286
    %v2271 = vpack.c.b16 %v1295, %v1287
    %v2272 = vpack.c.b16 %v1296, %v1288
    %v2273 = vpack.c.b16 %v1297, %v1289
    %v2274 = vpack.c.b16 %v1298, %v1290
    %v2275 = vpack.c.b16 %v1299, %v1291
    %v2276 = vpack.c.b16 %v1300, %v1292
    %v2277 = vpack.c.b16 %v1309, %v1301
    %v2278 = vpack.c.b16 %v1310, %v1302
    %v2279 = vpack.c.b16 %v1311, %v1303
    %v2280 = vpack.c.b16 %v1312, %v1304
    %v2281 = vpack.c.b16 %v1313, %v1305
    %v2282 = vpack.c.b16 %v1314, %v1306
    %v2283 = vpack.c.b16 %v1315, %v1307
    %v2284 = vpack.c.b16 %v1316, %v1308
    %v2285 = vpack.c.b16 %v1325, %v1317
    %v2286 = vpack.c.b16 %v1326, %v1318
    %v2287 = vpack.c.b16 %v1327, %v1319
    %v2288 = vpack.c.b16 %v1328, %v1320
    %v2289 = vpack.c.b16 %v1329, %v1321
    %v2290 = vpack.c.b16 %v1330, %v1322
    %v2291 = vpack.c.b16 %v1331, %v1323
    %v2292 = vpack.c.b16 %v1332, %v1324
    %v2293 = vpack.c.b16 %v1341, %v1333
    %v2294 = vpack.c.b16 %v1342, %v1334
    %v2295 = vpack.c.b16 %v1343, %v1335
    %v2296 = vpack.c.b16 %v1344, %v1336
    %v2297 = vpack.c.b16 %v1345, %v1337
    %v2298 = vpack.c.b16 %v1346, %v1338
    %v2299 = vpack.c.b16 %v1347, %v1339
    %v2300 = vpack.c.b16 %v1348, %v1340
    %v2301 = vpack.c.b16 %v1357, %v1349
    %v2302 = vpack.c.b16 %v1358, %v1350
    %v2303 = vpack.c.b16 %v1359, %v1351
    %v2304 = vpack.c.b16 %v1360, %v1352
    %v2305 = vpack.c.b16 %v1361, %v1353
    %v2306 = vpack.c.b16 %v1362, %v1354
    %v2307 = vpack.c.b16 %v1363, %v1355
    %v2308 = vpack.c.b16 %v1364, %v1356
    %v2309 = vpack.c.b16 %v1373, %v1365
    %v2310 = vpack.c.b16 %v1374, %v1366
    %v2311 = vpack.c.b16 %v1375, %v1367
    %v2312 = vpack.c.b16 %v1376, %v1368
    %v2313 = vpack.c.b16 %v1377, %v1369
    %v2314 = vpack.c.b16 %v1378, %v1370
    %v2315 = vpack.c.b16 %v1379, %v1371
    %v2316 = vpack.c.b16 %v1380, %v1372
    %v2317 = vpack.c.b16 %v1389, %v1381
    %v2318 = vpack.c.b16 %v1390, %v1382
    %v2319 = vpack.c.b16 %v1391, %v1383
    %v2320 = vpack.c.b16 %v1392, %v1384
    %v2321 = vpack.c.b16 %v1393, %v1385
    %v2322 = vpack.c.b16 %v1394, %v1386
    %v2323 = vpack.c.b16 %v1395, %v1387
    %v2324 = vpack.c.b16 %v1396, %v1388
    %v2325 = vpack.c.b16 %v1405, %v1397
    %v2326 = vpack.c.b16 %v1406, %v1398
    %v2327 = vpack.c.b16 %v1407, %v1399
    %v2328 = vpack.c.b16 %v1408, %v1400
    %v2329 = vpack.c.b16 %v1409, %v1401
    %v2330 = vpack.c.b16 %v1410, %v1402
    %v2331 = vpack.c.b16 %v1411, %v1403
    %v2332 = vpack.c.b16 %v1412, %v1404
    %v2333 = vpack.c.b16 %v1421, %v1413
    %v2334 = vpack.c.b16 %v1422, %v1414
    %v2335 = vpack.c.b16 %v1423, %v1415
    %v2336 = vpack.c.b16 %v1424, %v1416
    %v2337 = vpack.c.b16 %v1425, %v1417
    %v2338 = vpack.c.b16 %v1426, %v1418
    %v2339 = vpack.c.b16 %v1427, %v1419
    %v2340 = vpack.c.b16 %v1428, %v1420
    %v2341 = vpack.c.b16 %v1437, %v1429
    %v2342 = vpack.c.b16 %v1438, %v1430
    %v2343 = vpack.c.b16 %v1439, %v1431
    %v2344 = vpack.c.b16 %v1440, %v1432
    %v2345 = vpack.c.b16 %v1441, %v1433
    %v2346 = vpack.c.b16 %v1442, %v1434
    %v2347 = vpack.c.b16 %v1443, %v1435
    %v2348 = vpack.c.b16 %v1444, %v1436
    %v2349 = vpack.c.b16 %v1453, %v1445
    %v2350 = vpack.c.b16 %v1454, %v1446
    %v2351 = vpack.c.b16 %v1455, %v1447
    %v2352 = vpack.c.b16 %v1456, %v1448
    %v2353 = vpack.c.b16 %v1457, %v1449
    %v2354 = vpack.c.b16 %v1458, %v1450
    %v2355 = vpack.c.b16 %v1459, %v1451
    %v2356 = vpack.c.b16 %v1460, %v1452
    %v2357 = vpack.c.b16 %v1469, %v1461
    %v2358 = vpack.c.b16 %v1470, %v1462
    %v2359 = vpack.c.b16 %v1471, %v1463
    %v2360 = vpack.c.b16 %v1472, %v1464
    %v2361 = vpack.c.b16 %v1473, %v1465
    %v2362 = vpack.c.b16 %v1474, %v1466
    %v2363 = vpack.c.b16 %v1475, %v1467
    %v2364 = vpack.c.b16 %v1476, %v1468
    %v2365 = vpack.c.b16 %v1485, %v1477
    %v2366 = vpack.c.b16 %v1486, %v1478
    %v2367 = vpack.c.b16 %v1487, %v1479
    %v2368 = vpack.c.b16 %v1488, %v1480
    %v2369 = vpack.c.b16 %v1489, %v1481
    %v2370 = vpack.c.b16 %v1490, %v1482
    %v2371 = vpack.c.b16 %v1491, %v1483
    %v2372 = vpack.c.b16 %v1492, %v1484
    %v2373 = vpack.c.b16 %v1501, %v1493
    %v2374 = vpack.c.b16 %v1502, %v1494
    %v2375 = vpack.c.b16 %v1503, %v1495
    %v2376 = vpack.c.b16 %v1504, %v1496
    %v2377 = vpack.c.b16 %v1505, %v1497
    %v2378 = vpack.c.b16 %v1506, %v1498
    %v2379 = vpack.c.b16 %v1507, %v1499
    %v2380 = vpack.c.b16 %v1508, %v1500
    %v2381 = vpack.c.b16 %v1517, %v1509
    %v2382 = vpack.c.b16 %v1518, %v1510
    %v2383 = vpack.c.b16 %v1519, %v1511
    %v2384 = vpack.c.b16 %v1520, %v1512
    %v2385 = vpack.c.b16 %v1521, %v1513
    %v2386 = vpack.c.b16 %v1522, %v1514
    %v2387 = vpack.c.b16 %v1523, %v1515
    %v2388 = vpack.c.b16 %v1524, %v1516
    %v2389 = vpack.c.b16 %v1533, %v1525
    %v2390 = vpack.c.b16 %v1534, %v1526
    %v2391 = vpack.c.b16 %v1535, %v1527
    %v2392 = vpack.c.b16 %v1536, %v1528
    %v2393 = vpack.c.b16 %v1537, %v1529
    %v2394 = vpack.c.b16 %v1538, %v1530
    %v2395 = vpack.c.b16 %v1539, %v1531
    %v2396 = vpack.c.b16 %v1540, %v1532
    %v2397 = vpack.c.b16 %v1549, %v1541
    %v2398 = vpack.c.b16 %v1550, %v1542
    %v2399 = vpack.c.b16 %v1551, %v1543
    %v2400 = vpack.c.b16 %v1552, %v1544
    %v2401 = vpack.c.b16 %v1553, %v1545
    %v2402 = vpack.c.b16 %v1554, %v1546
    %v2403 = vpack.c.b16 %v1555, %v1547
    %v2404 = vpack.c.b16 %v1556, %v1548
    %v2405 = vpack.c.b16 %v1565, %v1557
    %v2406 = vpack.c.b16 %v1566, %v1558
    %v2407 = vpack.c.b16 %v1567, %v1559
    %v2408 = vpack.c.b16 %v1568, %v1560
    %v2409 = vpack.c.b16 %v1569, %v1561
    %v2410 = vpack.c.b16 %v1570, %v1562
    %v2411 = vpack.c.b16 %v1571, %v1563
    %v2412 = vpack.c.b16 %v1572, %v1564
    %v2413 = vpack.c.b16 %v1581, %v1573
    %v2414 = vpack.c.b16 %v1582, %v1574
    %v2415 = vpack.c.b16 %v1583, %v1575
    %v2416 = vpack.c.b16 %v1584, %v1576
    %v2417 = vpack.c.b16 %v1585, %v1577
    %v2418 = vpack.c.b16 %v1586, %v1578
    %v2419 = vpack.c.b16 %v1587, %v1579
    %v2420 = vpack.c.b16 %v1588, %v1580
    %v2421 = vpack.c.b16 %v1597, %v1589
    %v2422 = vpack.c.b16 %v1598, %v1590
    %v2423 = vpack.c.b16 %v1599, %v1591
    %v2424 = vpack.c.b16 %v1600, %v1592
    %v2425 = vpack.c.b16 %v1601, %v1593
    %v2426 = vpack.c.b16 %v1602, %v1594
    %v2427 = vpack.c.b16 %v1603, %v1595
    %v2428 = vpack.c.b16 %v1604, %v1596
    %v2429 = vpack.c.b16 %v1613, %v1605
    %v2430 = vpack.c.b16 %v1614, %v1606
    %v2431 = vpack.c.b16 %v1615, %v1607
    %v2432 = vpack.c.b16 %v1616, %v1608
    %v2433 = vpack.c.b16 %v1617, %v1609
    %v2434 = vpack.c.b16 %v1618, %v1610
    %v2435 = vpack.c.b16 %v1619, %v1611
    %v2436 = vpack.c.b16 %v1620, %v1612
    %v2437 = vpack.c.b16 %v1629, %v1621
    %v2438 = vpack.c.b16 %v1630, %v1622
    %v2439 = vpack.c.b16 %v1631, %v1623
    %v2440 = vpack.c.b16 %v1632, %v1624
    %v2441 = vpack.c.b16 %v1633, %v1625
    %v2442 = vpack.c.b16 %v1634, %v1626
    %v2443 = vpack.c.b16 %v1635, %v1627
    %v2444 = vpack.c.b16 %v1636, %v1628
    %v2445 = vpack.c.b16 %v1645, %v1637
    %v2446 = vpack.c.b16 %v1646, %v1638
    %v2447 = vpack.c.b16 %v1647, %v1639
    %v2448 = vpack.c.b16 %v1648, %v1640
    %v2449 = vpack.c.b16 %v1649, %v1641
    %v2450 = vpack.c.b16 %v1650, %v1642
    %v2451 = vpack.c.b16 %v1651, %v1643
    %v2452 = vpack.c.b16 %v1652, %v1644
    %v2453 = vpack.c.b16 %v1661, %v1653
    %v2454 = vpack.c.b16 %v1662, %v1654
    %v2455 = vpack.c.b16 %v1663, %v1655
    %v2456 = vpack.c.b16 %v1664, %v1656
    %v2457 = vpack.c.b16 %v1665, %v1657
    %v2458 = vpack.c.b16 %v1666, %v1658
    %v2459 = vpack.c.b16 %v1667, %v1659
    %v2460 = vpack.c.b16 %v1668, %v1660
    %v2461 = vpack.c.b16 %v1677, %v1669
    %v2462 = vpack.c.b16 %v1678, %v1670
    %v2463 = vpack.c.b16 %v1679, %v1671
    %v2464 = vpack.c.b16 %v1680, %v1672
    %v2465 = vpack.c.b16 %v1681, %v1673
    %v2466 = vpack.c.b16 %v1682, %v1674
    %v2467 = vpack.c.b16 %v1683, %v1675
    %v2468 = vpack.c.b16 %v1684, %v1676
    %v2469 = vpack.c.b16 %v1693, %v1685
    %v2470 = vpack.c.b16 %v1694, %v1686
    %v2471 = vpack.c.b16 %v1695, %v1687
    %v2472 = vpack.c.b16 %v1696, %v1688
    %v2473 = vpack.c.b16 %v1697, %v1689
    %v2474 = vpack.c.b16 %v1698, %v1690
    %v2475 = vpack.c.b16 %v1699, %v1691
    %v2476 = vpack.c.b16 %v1700, %v1692
    %v2477 = vpack.c.b16 %v1709, %v1701
    %v2478 = vpack.c.b16 %v1710, %v1702
    %v2479 = vpack.c.b16 %v1711, %v1703
    %v2480 = vpack.c.b16 %v1712, %v1704
    %v2481 = vpack.c.b16 %v1713, %v1705
    %v2482 = vpack.c.b16 %v1714, %v1706
    %v2483 = vpack.c.b16 %v1715, %v1707
    %v2484 = vpack.c.b16 %v1716, %v1708
    %v2485 = vpack.c.b16 %v1725, %v1717
    %v2486 = vpack.c.b16 %v1726, %v1718
    %v2487 = vpack.c.b16 %v1727, %v1719
    %v2488 = vpack.c.b16 %v1728, %v1720
    %v2489 = vpack.c.b16 %v1729, %v1721
    %v2490 = vpack.c.b16 %v1730, %v1722
    %v2491 = vpack.c.b16 %v1731, %v1723
    %v2492 = vpack.c.b16 %v1732, %v1724
    %v2493 = vpack.c.b16 %v1741, %v1733
    %v2494 = vpack.c.b16 %v1742, %v1734
    %v2495 = vpack.c.b16 %v1743, %v1735
    %v2496 = vpack.c.b16 %v1744, %v1736
    %v2497 = vpack.c.b16 %v1745, %v1737
    %v2498 = vpack.c.b16 %v1746, %v1738
    %v2499 = vpack.c.b16 %v1747, %v1739
    %v2500 = vpack.c.b16 %v1748, %v1740
    %v2501 = vpack.c.b16 %v1757, %v1749
    %v2502 = vpack.c.b16 %v1758, %v1750
    %v2503 = vpack.c.b16 %v1759, %v1751
    %v2504 = vpack.c.b16 %v1760, %v1752
    %v2505 = vpack.c.b16 %v1761, %v1753
    %v2506 = vpack.c.b16 %v1762, %v1754
    %v2507 = vpack.c.b16 %v1763, %v1755
    %v2508 = vpack.c.b16 %v1764, %v1756
    %v2509 = vpack.c.b16 %v1773, %v1765
    %v2510 = vpack.c.b16 %v1774, %v1766
    %v2511 = vpack.c.b16 %v1775, %v1767
    %v2512 = vpack.c.b16 %v1776, %v1768
    %v2513 = vpack.c.b16 %v1777, %v1769
    %v2514 = vpack.c.b16 %v1778, %v1770
    %v2515 = vpack.c.b16 %v1779, %v1771
    %v2516 = vpack.c.b16 %v1780, %v1772
    %v2517 = vpack.c.b16 %v1789, %v1781
    %v2518 = vpack.c.b16 %v1790, %v1782
    %v2519 = vpack.c.b16 %v1791, %v1783
    %v2520 = vpack.c.b16 %v1792, %v1784
    %v2521 = vpack.c.b16 %v1793, %v1785
    %v2522 = vpack.c.b16 %v1794, %v1786
    %v2523 = vpack.c.b16 %v1795, %v1787
    %v2524 = vpack.c.b16 %v1796, %v1788
    %v2525 = vpack.c.b16 %v1805, %v1797
    %v2526 = vpack.c.b16 %v1806, %v1798
    %v2527 = vpack.c.b16 %v1807, %v1799
    %v2528 = vpack.c.b16 %v1808, %v1800
    %v2529 = vpack.c.b16 %v1809, %v1801
    %v2530 = vpack.c.b16 %v1810, %v1802
    %v2531 = vpack.c.b16 %v1811, %v1803
    %v2532 = vpack.c.b16 %v1812, %v1804
    %v2533 = vpack.c.b16 %v1821, %v1813
    %v2534 = vpack.c.b16 %v1822, %v1814
    %v2535 = vpack.c.b16 %v1823, %v1815
    %v2536 = vpack.c.b16 %v1824, %v1816
    %v2537 = vpack.c.b16 %v1825, %v1817
    %v2538 = vpack.c.b16 %v1826, %v1818
    %v2539 = vpack.c.b16 %v1827, %v1819
    %v2540 = vpack.c.b16 %v1828, %v1820
    %v2541 = vpack.c.b16 %v1837, %v1829
    %v2542 = vpack.c.b16 %v1838, %v1830
    %v2543 = vpack.c.b16 %v1839, %v1831
    %v2544 = vpack.c.b16 %v1840, %v1832
    %v2545 = vpack.c.b16 %v1841, %v1833
    %v2546 = vpack.c.b16 %v1842, %v1834
    %v2547 = vpack.c.b16 %v1843, %v1835
    %v2548 = vpack.c.b16 %v1844, %v1836
    %v2549 = vpack.c.b16 %v1853, %v1845
    %v2550 = vpack.c.b16 %v1854, %v1846
    %v2551 = vpack.c.b16 %v1855, %v1847
    %v2552 = vpack.c.b16 %v1856, %v1848
    %v2553 = vpack.c.b16 %v1857, %v1849
    %v2554 = vpack.c.b16 %v1858, %v1850
    %v2555 = vpack.c.b16 %v1859, %v1851
    %v2556 = vpack.c.b16 %v1860, %v1852
    %v2557 = vpack.c.b16 %v1869, %v1861
    %v2558 = vpack.c.b16 %v1870, %v1862
    %v2559 = vpack.c.b16 %v1871, %v1863
    %v2560 = vpack.c.b16 %v1872, %v1864
    %v2561 = vpack.c.b16 %v1873, %v1865
    %v2562 = vpack.c.b16 %v1874, %v1866
    %v2563 = vpack.c.b16 %v1875, %v1867
    %v2564 = vpack.c.b16 %v1876, %v1868
    %v2565 = vpack.c.b16 %v1885, %v1877
    %v2566 = vpack.c.b16 %v1886, %v1878
    %v2567 = vpack.c.b16 %v1887, %v1879
    %v2568 = vpack.c.b16 %v1888, %v1880
    %v2569 = vpack.c.b16 %v1889, %v1881
    %v2570 = vpack.c.b16 %v1890, %v1882
    %v2571 = vpack.c.b16 %v1891, %v1883
    %v2572 = vpack.c.b16 %v1892, %v1884
    %v2573 = vpack.c.b16 %v1901, %v1893
    %v2574 = vpack.c.b16 %v1902, %v1894
    %v2575 = vpack.c.b16 %v1903, %v1895
    %v2576 = vpack.c.b16 %v1904, %v1896
    %v2577 = vpack.c.b16 %v1905, %v1897
    %v2578 = vpack.c.b16 %v1906, %v1898
    %v2579 = vpack.c.b16 %v1907, %v1899
    %v2580 = vpack.c.b16 %v1908, %v1900
    %v2581 = vpack.c.b16 %v1917, %v1909
    %v2582 = vpack.c.b16 %v1918, %v1910
    %v2583 = vpack.c.b16 %v1919, %v1911
    %v2584 = vpack.c.b16 %v1920, %v1912
    %v2585 = vpack.c.b16 %v1921, %v1913
    %v2586 = vpack.c.b16 %v1922, %v1914
    %v2587 = vpack.c.b16 %v1923, %v1915
    %v2588 = vpack.c.b16 %v1924, %v1916
    %v2589 = vpack.c.b16 %v1933, %v1925
    %v2590 = vpack.c.b16 %v1934, %v1926
    %v2591 = vpack.c.b16 %v1935, %v1927
    %v2592 = vpack.c.b16 %v1936, %v1928
    %v2593 = vpack.c.b16 %v1937, %v1929
    %v2594 = vpack.c.b16 %v1938, %v1930
    %v2595 = vpack.c.b16 %v1939, %v1931
    %v2596 = vpack.c.b16 %v1940, %v1932
    %v2597 = vpack.c.b16 %v1949, %v1941
    %v2598 = vpack.c.b16 %v1950, %v1942
    %v2599 = vpack.c.b16 %v1951, %v1943
    %v2600 = vpack.c.b16 %v1952, %v1944
    %v2601 = vpack.c.b16 %v1953, %v1945
    %v2602 = vpack.c.b16 %v1954, %v1946
    %v2603 = vpack.c.b16 %v1955, %v1947
    %v2604 = vpack.c.b16 %v1956, %v1948
    %v2605 = vpack.c.b16 %v1965, %v1957
    %v2606 = vpack.c.b16 %v1966, %v1958
    %v2607 = vpack.c.b16 %v1967, %v1959
    %v2608 = vpack.c.b16 %v1968, %v1960
    %v2609 = vpack.c.b16 %v1969, %v1961
    %v2610 = vpack.c.b16 %v1970, %v1962
    %v2611 = vpack.c.b16 %v1971, %v1963
    %v2612 = vpack.c.b16 %v1972, %v1964
    %v2613 = vpack.c.b16 %v1981, %v1973
    %v2614 = vpack.c.b16 %v1982, %v1974
    %v2615 = vpack.c.b16 %v1983, %v1975
    %v2616 = vpack.c.b16 %v1984, %v1976
    %v2617 = vpack.c.b16 %v1985, %v1977
    %v2618 = vpack.c.b16 %v1986, %v1978
    %v2619 = vpack.c.b16 %v1987, %v1979
    %v2620 = vpack.c.b16 %v1988, %v1980
    %v2621 = vpack.c.b16 %v1997, %v1989
    %v2622 = vpack.c.b16 %v1998, %v1990
    %v2623 = vpack.c.b16 %v1999, %v1991
    %v2624 = vpack.c.b16 %v2000, %v1992
    %v2625 = vpack.c.b16 %v2001, %v1993
    %v2626 = vpack.c.b16 %v2002, %v1994
    %v2627 = vpack.c.b16 %v2003, %v1995
    %v2628 = vpack.c.b16 %v2004, %v1996
    %v2629 = vpack.c.b16 %v2013, %v2005
    %v2630 = vpack.c.b16 %v2014, %v2006
    %v2631 = vpack.c.b16 %v2015, %v2007
    %v2632 = vpack.c.b16 %v2016, %v2008
    %v2633 = vpack.c.b16 %v2017, %v2009
    %v2634 = vpack.c.b16 %v2018, %v2010
    %v2635 = vpack.c.b16 %v2019, %v2011
    %v2636 = vpack.c.b16 %v2020, %v2012
    %v2637 = vpack.c.b16 %v2029, %v2021
    %v2638 = vpack.c.b16 %v2030, %v2022
    %v2639 = vpack.c.b16 %v2031, %v2023
    %v2640 = vpack.c.b16 %v2032, %v2024
    %v2641 = vpack.c.b16 %v2033, %v2025
    %v2642 = vpack.c.b16 %v2034, %v2026
    %v2643 = vpack.c.b16 %v2035, %v2027
    %v2644 = vpack.c.b16 %v2036, %v2028
    %v2645 = vpack.c.b16 %v2045, %v2037
    %v2646 = vpack.c.b16 %v2046, %v2038
    %v2647 = vpack.c.b16 %v2047, %v2039
    %v2648 = vpack.c.b16 %v2048, %v2040
    %v2649 = vpack.c.b16 %v2049, %v2041
    %v2650 = vpack.c.b16 %v2050, %v2042
    %v2651 = vpack.c.b16 %v2051, %v2043
    %v2652 = vpack.c.b16 %v2052, %v2044
    %v2653 = vpack.c.b16 %v2061, %v2053
    %v2654 = vpack.c.b16 %v2062, %v2054
    %v2655 = vpack.c.b16 %v2063, %v2055
    %v2656 = vpack.c.b16 %v2064, %v2056
    %v2657 = vpack.c.b16 %v2065, %v2057
    %v2658 = vpack.c.b16 %v2066, %v2058
    %v2659 = vpack.c.b16 %v2067, %v2059
    %v2660 = vpack.c.b16 %v2068, %v2060
    %v2661 = vpack.c.b16 %v2077, %v2069
    %v2662 = vpack.c.b16 %v2078, %v2070
    %v2663 = vpack.c.b16 %v2079, %v2071
    %v2664 = vpack.c.b16 %v2080, %v2072
    %v2665 = vpack.c.b16 %v2081, %v2073
    %v2666 = vpack.c.b16 %v2082, %v2074
    %v2667 = vpack.c.b16 %v2083, %v2075
    %v2668 = vpack.c.b16 %v2084, %v2076
    %v2669 = vpack.c.b16 %v2093, %v2085
    %v2670 = vpack.c.b16 %v2094, %v2086
    %v2671 = vpack.c.b16 %v2095, %v2087
    %v2672 = vpack.c.b16 %v2096, %v2088
    %v2673 = vpack.c.b16 %v2097, %v2089
    %v2674 = vpack.c.b16 %v2098, %v2090
    %v2675 = vpack.c.b16 %v2099, %v2091
    %v2676 = vpack.c.b16 %v2100, %v2092
    %v2677 = vpack.c.b16 %v2109, %v2101
    %v2678 = vpack.c.b16 %v2110, %v2102
    %v2679 = vpack.c.b16 %v2111, %v2103
    %v2680 = vpack.c.b16 %v2112, %v2104
    %v2681 = vpack.c.b16 %v2113, %v2105
    %v2682 = vpack.c.b16 %v2114, %v2106
    %v2683 = vpack.c.b16 %v2115, %v2107
    %v2684 = vpack.c.b16 %v2116, %v2108
    %v2685 = vpack.c.b16 %v2125, %v2117
    %v2686 = vpack.c.b16 %v2126, %v2118
    %v2687 = vpack.c.b16 %v2127, %v2119
    %v2688 = vpack.c.b16 %v2128, %v2120
    %v2689 = vpack.c.b16 %v2129, %v2121
    %v2690 = vpack.c.b16 %v2130, %v2122
    %v2691 = vpack.c.b16 %v2131, %v2123
    %v2692 = vpack.c.b16 %v2132, %v2124
    %v2693 = vpack.c.b16 %v2141, %v2133
    %v2694 = vpack.c.b16 %v2142, %v2134
    %v2695 = vpack.c.b16 %v2143, %v2135
    %v2696 = vpack.c.b16 %v2144, %v2136
    %v2697 = vpack.c.b16 %v2145, %v2137
    %v2698 = vpack.c.b16 %v2146, %v2138
    %v2699 = vpack.c.b16 %v2147, %v2139
    %v2700 = vpack.c.b16 %v2148, %v2140
    %v2701 = vpack.c.b16 %v2157, %v2149
    %v2702 = vpack.c.b16 %v2158, %v2150
    %v2703 = vpack.c.b16 %v2159, %v2151
    %v2704 = vpack.c.b16 %v2160, %v2152
    %v2705 = vpack.c.b16 %v2161, %v2153
    %v2706 = vpack.c.b16 %v2162, %v2154
    %v2707 = vpack.c.b16 %v2163, %v2155
    %v2708 = vpack.c.b16 %v2164, %v2156
    %v2709 = vpack.c.b16 %v2173, %v2165
    %v2710 = vpack.c.b16 %v2174, %v2166
    %v2711 = vpack.c.b16 %v2175, %v2167
    %v2712 = vpack.c.b16 %v2176, %v2168
    %v2713 = vpack.c.b16 %v2177, %v2169
    %v2714 = vpack.c.b16 %v2178, %v2170
    %v2715 = vpack.c.b16 %v2179, %v2171
    %v2716 = vpack.c.b16 %v2180, %v2172
    %v2717 = vpack.c.b16 %v2189, %v2181
    %v2718 = vpack.c.b16 %v2190, %v2182
    %v2719 = vpack.c.b16 %v2191, %v2183
    %v2720 = vpack.c.b16 %v2192, %v2184
    %v2721 = vpack.c.b16 %v2193, %v2185
    %v2722 = vpack.c.b16 %v2194, %v2186
    %v2723 = vpack.c.b16 %v2195, %v2187
    %v2724 = vpack.c.b16 %v2196, %v2188
    %v2725 = vpack.c.b16 %v2205, %v2197
    %v2726 = vpack.c.b16 %v2206, %v2198
    %v2727 = vpack.c.b16 %v2207, %v2199
    %v2728 = vpack.c.b16 %v2208, %v2200
    %v2729 = vpack.c.b16 %v2209, %v2201
    %v2730 = vpack.c.b16 %v2210, %v2202
    %v2731 = vpack.c.b16 %v2211, %v2203
    %v2732 = vpack.c.b16 %v2212, %v2204
    %v2733 = vpack.c.b16 %v2221, %v2213
    %v2734 = vpack.c.b16 %v2222, %v2214
    %v2735 = vpack.c.b16 %v2223, %v2215
    %v2736 = vpack.c.b16 %v2224, %v2216
    %v2737 = vpack.c.b16 %v2225, %v2217
    %v2738 = vpack.c.b16 %v2226, %v2218
    %v2739 = vpack.c.b16 %v2227, %v2219
    %v2740 = vpack.c.b16 %v2228, %v2220
    %3253 = vmatpush.bf16.msra.mxu0 %v2285
    %3254 = vmatpush.bf16.msra.mxu0 %v2277
    %3255 = vmatpush.bf16.msra.mxu0 %v2269
    %3256 = vmatpush.bf16.msra.mxu0 %v2261
    %3257 = vmatpush.bf16.msra.mxu0 %v2253
    %3258 = vmatpush.bf16.msra.mxu0 %v2245
    %3259 = vmatpush.bf16.msra.mxu0 %v2237
    %3260 = vmatpush.bf16.msra.mxu0 %v2229
    %3261 = vmatmul.bf16.gmra.mxu0 %v677
    %v3262 = vpop.f32.mrf.mxu0
    %v3263 = vadd.f32 %v649, %v3262
    %v3264 = vpop.f32.mrf.mxu0
    %3265 = vdwg.mxu0
    %3266 = vmatpush.bf16.msra.mxu0 %v2349
    %3267 = vmatpush.bf16.msra.mxu0 %v2341
    %3268 = vmatpush.bf16.msra.mxu0 %v2333
    %3269 = vmatpush.bf16.msra.mxu0 %v2325
    %3270 = vmatpush.bf16.msra.mxu0 %v2317
    %3271 = vmatpush.bf16.msra.mxu0 %v2309
    %3272 = vmatpush.bf16.msra.mxu0 %v2301
    %3273 = vmatpush.bf16.msra.mxu0 %v2293
    %3274 = vmatmul.bf16.gmra.mxu0 %v678
    %v3275 = vpop.f32.mrf.mxu0
    %v3276 = vadd.f32 %v3263, %v3275
    %v3277 = vpop.f32.mrf.mxu0
    %3278 = vdwg.mxu0
    %3279 = vmatpush.bf16.msra.mxu0 %v2413
    %3280 = vmatpush.bf16.msra.mxu0 %v2405
    %3281 = vmatpush.bf16.msra.mxu0 %v2397
    %3282 = vmatpush.bf16.msra.mxu0 %v2389
    %3283 = vmatpush.bf16.msra.mxu0 %v2381
    %3284 = vmatpush.bf16.msra.mxu0 %v2373
    %3285 = vmatpush.bf16.msra.mxu0 %v2365
    %3286 = vmatpush.bf16.msra.mxu0 %v2357
    %3287 = vmatmul.bf16.gmra.mxu0 %v679
    %v3288 = vpop.f32.mrf.mxu0
    %v3289 = vadd.f32 %v3276, %v3288
    %v3290 = vpop.f32.mrf.mxu0
    %3291 = vdwg.mxu0
    %3292 = vmatpush.bf16.msra.mxu0 %v2477
    %3293 = vmatpush.bf16.msra.mxu0 %v2469
    %3294 = vmatpush.bf16.msra.mxu0 %v2461
    %3295 = vmatpush.bf16.msra.mxu0 %v2453
    %3296 = vmatpush.bf16.msra.mxu0 %v2445
    %3297 = vmatpush.bf16.msra.mxu0 %v2437
    %3298 = vmatpush.bf16.msra.mxu0 %v2429
    %3299 = vmatpush.bf16.msra.mxu0 %v2421
    %3300 = vmatmul.bf16.gmra.mxu0 %v680
    %v3301 = vpop.f32.mrf.mxu0
    %v3302 = vadd.f32 %v3289, %v3301
    %v3303 = vpop.f32.mrf.mxu0
    %3304 = vdwg.mxu0
    %3305 = vmatpush.bf16.msra.mxu0 %v2541
    %3306 = vmatpush.bf16.msra.mxu0 %v2533
    %3307 = vmatpush.bf16.msra.mxu0 %v2525
    %3308 = vmatpush.bf16.msra.mxu0 %v2517
    %3309 = vmatpush.bf16.msra.mxu0 %v2509
    %3310 = vmatpush.bf16.msra.mxu0 %v2501
    %3311 = vmatpush.bf16.msra.mxu0 %v2493
    %3312 = vmatpush.bf16.msra.mxu0 %v2485
    %3313 = vmatmul.bf16.gmra.mxu0 %v681
    %v3314 = vpop.f32.mrf.mxu0
    %v3315 = vadd.f32 %v3302, %v3314
    %v3316 = vpop.f32.mrf.mxu0
    %3317 = vdwg.mxu0
    %3318 = vmatpush.bf16.msra.mxu0 %v2605
    %3319 = vmatpush.bf16.msra.mxu0 %v2597
    %3320 = vmatpush.bf16.msra.mxu0 %v2589
    %3321 = vmatpush.bf16.msra.mxu0 %v2581
    %3322 = vmatpush.bf16.msra.mxu0 %v2573
    %3323 = vmatpush.bf16.msra.mxu0 %v2565
    %3324 = vmatpush.bf16.msra.mxu0 %v2557
    %3325 = vmatpush.bf16.msra.mxu0 %v2549
    %3326 = vmatmul.bf16.gmra.mxu0 %v682
    %v3327 = vpop.f32.mrf.mxu0
    %v3328 = vadd.f32 %v3315, %v3327
    %v3329 = vpop.f32.mrf.mxu0
    %3330 = vdwg.mxu0
    %3331 = vmatpush.bf16.msra.mxu0 %v2669
    %3332 = vmatpush.bf16.msra.mxu0 %v2661
    %3333 = vmatpush.bf16.msra.mxu0 %v2653
    %3334 = vmatpush.bf16.msra.mxu0 %v2645
    %3335 = vmatpush.bf16.msra.mxu0 %v2637
    %3336 = vmatpush.bf16.msra.mxu0 %v2629
    %3337 = vmatpush.bf16.msra.mxu0 %v2621
    %3338 = vmatpush.bf16.msra.mxu0 %v2613
    %3339 = vmatmul.bf16.gmra.mxu0 %v683
    %v3340 = vpop.f32.mrf.mxu0
    %v3341 = vadd.f32 %v3328, %v3340
    %v3342 = vpop.f32.mrf.mxu0
    %3343 = vdwg.mxu0
    %3344 = vmatpush.bf16.msra.mxu0 %v2733
    %3345 = vmatpush.bf16.msra.mxu0 %v2725
    %3346 = vmatpush.bf16.msra.mxu0 %v2717
    %3347 = vmatpush.bf16.msra.mxu0 %v2709
    %3348 = vmatpush.bf16.msra.mxu0 %v2701
    %3349 = vmatpush.bf16.msra.mxu0 %v2693
    %3350 = vmatpush.bf16.msra.mxu0 %v2685
    %3351 = vmatpush.bf16.msra.mxu0 %v2677
    %3352 = vmatmul.bf16.gmra.mxu0 %v684
    %v3353 = vpop.f32.mrf.mxu0
    %v3354 = vadd.f32 %v3341, %v3353
    %v3355 = vpop.f32.mrf.mxu0
    %3356 = vdwg.mxu0
    %3357 = vmatpush.bf16.msra.mxu0 %v2286
    %3358 = vmatpush.bf16.msra.mxu0 %v2278
    %3359 = vmatpush.bf16.msra.mxu0 %v2270
    %3360 = vmatpush.bf16.msra.mxu0 %v2262
    %3361 = vmatpush.bf16.msra.mxu0 %v2254
    %3362 = vmatpush.bf16.msra.mxu0 %v2246
    %3363 = vmatpush.bf16.msra.mxu0 %v2238
    %3364 = vmatpush.bf16.msra.mxu0 %v2230
    %3365 = vmatmul.bf16.gmra.mxu0 %v677
    %v3366 = vpop.f32.mrf.mxu0
    %v3367 = vadd.f32 %v650, %v3366
    %v3368 = vpop.f32.mrf.mxu0
    %3369 = vdwg.mxu0
    %3370 = vmatpush.bf16.msra.mxu0 %v2350
    %3371 = vmatpush.bf16.msra.mxu0 %v2342
    %3372 = vmatpush.bf16.msra.mxu0 %v2334
    %3373 = vmatpush.bf16.msra.mxu0 %v2326
    %3374 = vmatpush.bf16.msra.mxu0 %v2318
    %3375 = vmatpush.bf16.msra.mxu0 %v2310
    %3376 = vmatpush.bf16.msra.mxu0 %v2302
    %3377 = vmatpush.bf16.msra.mxu0 %v2294
    %3378 = vmatmul.bf16.gmra.mxu0 %v678
    %v3379 = vpop.f32.mrf.mxu0
    %v3380 = vadd.f32 %v3367, %v3379
    %v3381 = vpop.f32.mrf.mxu0
    %3382 = vdwg.mxu0
    %3383 = vmatpush.bf16.msra.mxu0 %v2414
    %3384 = vmatpush.bf16.msra.mxu0 %v2406
    %3385 = vmatpush.bf16.msra.mxu0 %v2398
    %3386 = vmatpush.bf16.msra.mxu0 %v2390
    %3387 = vmatpush.bf16.msra.mxu0 %v2382
    %3388 = vmatpush.bf16.msra.mxu0 %v2374
    %3389 = vmatpush.bf16.msra.mxu0 %v2366
    %3390 = vmatpush.bf16.msra.mxu0 %v2358
    %3391 = vmatmul.bf16.gmra.mxu0 %v679
    %v3392 = vpop.f32.mrf.mxu0
    %v3393 = vadd.f32 %v3380, %v3392
    %v3394 = vpop.f32.mrf.mxu0
    %3395 = vdwg.mxu0
    %3396 = vmatpush.bf16.msra.mxu0 %v2478
    %3397 = vmatpush.bf16.msra.mxu0 %v2470
    %3398 = vmatpush.bf16.msra.mxu0 %v2462
    %3399 = vmatpush.bf16.msra.mxu0 %v2454
    %3400 = vmatpush.bf16.msra.mxu0 %v2446
    %3401 = vmatpush.bf16.msra.mxu0 %v2438
    %3402 = vmatpush.bf16.msra.mxu0 %v2430
    %3403 = vmatpush.bf16.msra.mxu0 %v2422
    %3404 = vmatmul.bf16.gmra.mxu0 %v680
    %v3405 = vpop.f32.mrf.mxu0
    %v3406 = vadd.f32 %v3393, %v3405
    %v3407 = vpop.f32.mrf.mxu0
    %3408 = vdwg.mxu0
    %3409 = vmatpush.bf16.msra.mxu0 %v2542
    %3410 = vmatpush.bf16.msra.mxu0 %v2534
    %3411 = vmatpush.bf16.msra.mxu0 %v2526
    %3412 = vmatpush.bf16.msra.mxu0 %v2518
    %3413 = vmatpush.bf16.msra.mxu0 %v2510
    %3414 = vmatpush.bf16.msra.mxu0 %v2502
    %3415 = vmatpush.bf16.msra.mxu0 %v2494
    %3416 = vmatpush.bf16.msra.mxu0 %v2486
    %3417 = vmatmul.bf16.gmra.mxu0 %v681
    %v3418 = vpop.f32.mrf.mxu0
    %v3419 = vadd.f32 %v3406, %v3418
    %v3420 = vpop.f32.mrf.mxu0
    %3421 = vdwg.mxu0
    %3422 = vmatpush.bf16.msra.mxu0 %v2606
    %3423 = vmatpush.bf16.msra.mxu0 %v2598
    %3424 = vmatpush.bf16.msra.mxu0 %v2590
    %3425 = vmatpush.bf16.msra.mxu0 %v2582
    %3426 = vmatpush.bf16.msra.mxu0 %v2574
    %3427 = vmatpush.bf16.msra.mxu0 %v2566
    %3428 = vmatpush.bf16.msra.mxu0 %v2558
    %3429 = vmatpush.bf16.msra.mxu0 %v2550
    %3430 = vmatmul.bf16.gmra.mxu0 %v682
    %v3431 = vpop.f32.mrf.mxu0
    %v3432 = vadd.f32 %v3419, %v3431
    %v3433 = vpop.f32.mrf.mxu0
    %3434 = vdwg.mxu0
    %3435 = vmatpush.bf16.msra.mxu0 %v2670
    %3436 = vmatpush.bf16.msra.mxu0 %v2662
    %3437 = vmatpush.bf16.msra.mxu0 %v2654
    %3438 = vmatpush.bf16.msra.mxu0 %v2646
    %3439 = vmatpush.bf16.msra.mxu0 %v2638
    %3440 = vmatpush.bf16.msra.mxu0 %v2630
    %3441 = vmatpush.bf16.msra.mxu0 %v2622
    %3442 = vmatpush.bf16.msra.mxu0 %v2614
    %3443 = vmatmul.bf16.gmra.mxu0 %v683
    %v3444 = vpop.f32.mrf.mxu0
    %v3445 = vadd.f32 %v3432, %v3444
    %v3446 = vpop.f32.mrf.mxu0
    %3447 = vdwg.mxu0
    %3448 = vmatpush.bf16.msra.mxu0 %v2734
    %3449 = vmatpush.bf16.msra.mxu0 %v2726
    %3450 = vmatpush.bf16.msra.mxu0 %v2718
    %3451 = vmatpush.bf16.msra.mxu0 %v2710
    %3452 = vmatpush.bf16.msra.mxu0 %v2702
    %3453 = vmatpush.bf16.msra.mxu0 %v2694
    %3454 = vmatpush.bf16.msra.mxu0 %v2686
    %3455 = vmatpush.bf16.msra.mxu0 %v2678
    %3456 = vmatmul.bf16.gmra.mxu0 %v684
    %v3457 = vpop.f32.mrf.mxu0
    %v3458 = vadd.f32 %v3445, %v3457
    %v3459 = vpop.f32.mrf.mxu0
    %3460 = vdwg.mxu0
    %3461 = vmatpush.bf16.msra.mxu0 %v2287
    %3462 = vmatpush.bf16.msra.mxu0 %v2279
    %3463 = vmatpush.bf16.msra.mxu0 %v2271
    %3464 = vmatpush.bf16.msra.mxu0 %v2263
    %3465 = vmatpush.bf16.msra.mxu0 %v2255
    %3466 = vmatpush.bf16.msra.mxu0 %v2247
    %3467 = vmatpush.bf16.msra.mxu0 %v2239
    %3468 = vmatpush.bf16.msra.mxu0 %v2231
    %3469 = vmatmul.bf16.gmra.mxu0 %v677
    %v3470 = vpop.f32.mrf.mxu0
    %v3471 = vadd.f32 %v651, %v3470
    %v3472 = vpop.f32.mrf.mxu0
    %3473 = vdwg.mxu0
    %3474 = vmatpush.bf16.msra.mxu0 %v2351
    %3475 = vmatpush.bf16.msra.mxu0 %v2343
    %3476 = vmatpush.bf16.msra.mxu0 %v2335
    %3477 = vmatpush.bf16.msra.mxu0 %v2327
    %3478 = vmatpush.bf16.msra.mxu0 %v2319
    %3479 = vmatpush.bf16.msra.mxu0 %v2311
    %3480 = vmatpush.bf16.msra.mxu0 %v2303
    %3481 = vmatpush.bf16.msra.mxu0 %v2295
    %3482 = vmatmul.bf16.gmra.mxu0 %v678
    %v3483 = vpop.f32.mrf.mxu0
    %v3484 = vadd.f32 %v3471, %v3483
    %v3485 = vpop.f32.mrf.mxu0
    %3486 = vdwg.mxu0
    %3487 = vmatpush.bf16.msra.mxu0 %v2415
    %3488 = vmatpush.bf16.msra.mxu0 %v2407
    %3489 = vmatpush.bf16.msra.mxu0 %v2399
    %3490 = vmatpush.bf16.msra.mxu0 %v2391
    %3491 = vmatpush.bf16.msra.mxu0 %v2383
    %3492 = vmatpush.bf16.msra.mxu0 %v2375
    %3493 = vmatpush.bf16.msra.mxu0 %v2367
    %3494 = vmatpush.bf16.msra.mxu0 %v2359
    %3495 = vmatmul.bf16.gmra.mxu0 %v679
    %v3496 = vpop.f32.mrf.mxu0
    %v3497 = vadd.f32 %v3484, %v3496
    %v3498 = vpop.f32.mrf.mxu0
    %3499 = vdwg.mxu0
    %3500 = vmatpush.bf16.msra.mxu0 %v2479
    %3501 = vmatpush.bf16.msra.mxu0 %v2471
    %3502 = vmatpush.bf16.msra.mxu0 %v2463
    %3503 = vmatpush.bf16.msra.mxu0 %v2455
    %3504 = vmatpush.bf16.msra.mxu0 %v2447
    %3505 = vmatpush.bf16.msra.mxu0 %v2439
    %3506 = vmatpush.bf16.msra.mxu0 %v2431
    %3507 = vmatpush.bf16.msra.mxu0 %v2423
    %3508 = vmatmul.bf16.gmra.mxu0 %v680
    %v3509 = vpop.f32.mrf.mxu0
    %v3510 = vadd.f32 %v3497, %v3509
    %v3511 = vpop.f32.mrf.mxu0
    %3512 = vdwg.mxu0
    %3513 = vmatpush.bf16.msra.mxu0 %v2543
    %3514 = vmatpush.bf16.msra.mxu0 %v2535
    %3515 = vmatpush.bf16.msra.mxu0 %v2527
    %3516 = vmatpush.bf16.msra.mxu0 %v2519
    %3517 = vmatpush.bf16.msra.mxu0 %v2511
    %3518 = vmatpush.bf16.msra.mxu0 %v2503
    %3519 = vmatpush.bf16.msra.mxu0 %v2495
    %3520 = vmatpush.bf16.msra.mxu0 %v2487
    %3521 = vmatmul.bf16.gmra.mxu0 %v681
    %v3522 = vpop.f32.mrf.mxu0
    %v3523 = vadd.f32 %v3510, %v3522
    %v3524 = vpop.f32.mrf.mxu0
    %3525 = vdwg.mxu0
    %3526 = vmatpush.bf16.msra.mxu0 %v2607
    %3527 = vmatpush.bf16.msra.mxu0 %v2599
    %3528 = vmatpush.bf16.msra.mxu0 %v2591
    %3529 = vmatpush.bf16.msra.mxu0 %v2583
    %3530 = vmatpush.bf16.msra.mxu0 %v2575
    %3531 = vmatpush.bf16.msra.mxu0 %v2567
    %3532 = vmatpush.bf16.msra.mxu0 %v2559
    %3533 = vmatpush.bf16.msra.mxu0 %v2551
    %3534 = vmatmul.bf16.gmra.mxu0 %v682
    %v3535 = vpop.f32.mrf.mxu0
    %v3536 = vadd.f32 %v3523, %v3535
    %v3537 = vpop.f32.mrf.mxu0
    %3538 = vdwg.mxu0
    %3539 = vmatpush.bf16.msra.mxu0 %v2671
    %3540 = vmatpush.bf16.msra.mxu0 %v2663
    %3541 = vmatpush.bf16.msra.mxu0 %v2655
    %3542 = vmatpush.bf16.msra.mxu0 %v2647
    %3543 = vmatpush.bf16.msra.mxu0 %v2639
    %3544 = vmatpush.bf16.msra.mxu0 %v2631
    %3545 = vmatpush.bf16.msra.mxu0 %v2623
    %3546 = vmatpush.bf16.msra.mxu0 %v2615
    %3547 = vmatmul.bf16.gmra.mxu0 %v683
    %v3548 = vpop.f32.mrf.mxu0
    %v3549 = vadd.f32 %v3536, %v3548
    %v3550 = vpop.f32.mrf.mxu0
    %3551 = vdwg.mxu0
    %3552 = vmatpush.bf16.msra.mxu0 %v2735
    %3553 = vmatpush.bf16.msra.mxu0 %v2727
    %3554 = vmatpush.bf16.msra.mxu0 %v2719
    %3555 = vmatpush.bf16.msra.mxu0 %v2711
    %3556 = vmatpush.bf16.msra.mxu0 %v2703
    %3557 = vmatpush.bf16.msra.mxu0 %v2695
    %3558 = vmatpush.bf16.msra.mxu0 %v2687
    %3559 = vmatpush.bf16.msra.mxu0 %v2679
    %3560 = vmatmul.bf16.gmra.mxu0 %v684
    %v3561 = vpop.f32.mrf.mxu0
    %v3562 = vadd.f32 %v3549, %v3561
    %v3563 = vpop.f32.mrf.mxu0
    %3564 = vdwg.mxu0
    %3565 = vmatpush.bf16.msra.mxu0 %v2288
    %3566 = vmatpush.bf16.msra.mxu0 %v2280
    %3567 = vmatpush.bf16.msra.mxu0 %v2272
    %3568 = vmatpush.bf16.msra.mxu0 %v2264
    %3569 = vmatpush.bf16.msra.mxu0 %v2256
    %3570 = vmatpush.bf16.msra.mxu0 %v2248
    %3571 = vmatpush.bf16.msra.mxu0 %v2240
    %3572 = vmatpush.bf16.msra.mxu0 %v2232
    %3573 = vmatmul.bf16.gmra.mxu0 %v677
    %v3574 = vpop.f32.mrf.mxu0
    %v3575 = vadd.f32 %v652, %v3574
    %v3576 = vpop.f32.mrf.mxu0
    %3577 = vdwg.mxu0
    %3578 = vmatpush.bf16.msra.mxu0 %v2352
    %3579 = vmatpush.bf16.msra.mxu0 %v2344
    %3580 = vmatpush.bf16.msra.mxu0 %v2336
    %3581 = vmatpush.bf16.msra.mxu0 %v2328
    %3582 = vmatpush.bf16.msra.mxu0 %v2320
    %3583 = vmatpush.bf16.msra.mxu0 %v2312
    %3584 = vmatpush.bf16.msra.mxu0 %v2304
    %3585 = vmatpush.bf16.msra.mxu0 %v2296
    %3586 = vmatmul.bf16.gmra.mxu0 %v678
    %v3587 = vpop.f32.mrf.mxu0
    %v3588 = vadd.f32 %v3575, %v3587
    %v3589 = vpop.f32.mrf.mxu0
    %3590 = vdwg.mxu0
    %3591 = vmatpush.bf16.msra.mxu0 %v2416
    %3592 = vmatpush.bf16.msra.mxu0 %v2408
    %3593 = vmatpush.bf16.msra.mxu0 %v2400
    %3594 = vmatpush.bf16.msra.mxu0 %v2392
    %3595 = vmatpush.bf16.msra.mxu0 %v2384
    %3596 = vmatpush.bf16.msra.mxu0 %v2376
    %3597 = vmatpush.bf16.msra.mxu0 %v2368
    %3598 = vmatpush.bf16.msra.mxu0 %v2360
    %3599 = vmatmul.bf16.gmra.mxu0 %v679
    %v3600 = vpop.f32.mrf.mxu0
    %v3601 = vadd.f32 %v3588, %v3600
    %v3602 = vpop.f32.mrf.mxu0
    %3603 = vdwg.mxu0
    %3604 = vmatpush.bf16.msra.mxu0 %v2480
    %3605 = vmatpush.bf16.msra.mxu0 %v2472
    %3606 = vmatpush.bf16.msra.mxu0 %v2464
    %3607 = vmatpush.bf16.msra.mxu0 %v2456
    %3608 = vmatpush.bf16.msra.mxu0 %v2448
    %3609 = vmatpush.bf16.msra.mxu0 %v2440
    %3610 = vmatpush.bf16.msra.mxu0 %v2432
    %3611 = vmatpush.bf16.msra.mxu0 %v2424
    %3612 = vmatmul.bf16.gmra.mxu0 %v680
    %v3613 = vpop.f32.mrf.mxu0
    %v3614 = vadd.f32 %v3601, %v3613
    %v3615 = vpop.f32.mrf.mxu0
    %3616 = vdwg.mxu0
    %3617 = vmatpush.bf16.msra.mxu0 %v2544
    %3618 = vmatpush.bf16.msra.mxu0 %v2536
    %3619 = vmatpush.bf16.msra.mxu0 %v2528
    %3620 = vmatpush.bf16.msra.mxu0 %v2520
    %3621 = vmatpush.bf16.msra.mxu0 %v2512
    %3622 = vmatpush.bf16.msra.mxu0 %v2504
    %3623 = vmatpush.bf16.msra.mxu0 %v2496
    %3624 = vmatpush.bf16.msra.mxu0 %v2488
    %3625 = vmatmul.bf16.gmra.mxu0 %v681
    %v3626 = vpop.f32.mrf.mxu0
    %v3627 = vadd.f32 %v3614, %v3626
    %v3628 = vpop.f32.mrf.mxu0
    %3629 = vdwg.mxu0
    %3630 = vmatpush.bf16.msra.mxu0 %v2608
    %3631 = vmatpush.bf16.msra.mxu0 %v2600
    %3632 = vmatpush.bf16.msra.mxu0 %v2592
    %3633 = vmatpush.bf16.msra.mxu0 %v2584
    %3634 = vmatpush.bf16.msra.mxu0 %v2576
    %3635 = vmatpush.bf16.msra.mxu0 %v2568
    %3636 = vmatpush.bf16.msra.mxu0 %v2560
    %3637 = vmatpush.bf16.msra.mxu0 %v2552
    %3638 = vmatmul.bf16.gmra.mxu0 %v682
    %v3639 = vpop.f32.mrf.mxu0
    %v3640 = vadd.f32 %v3627, %v3639
    %v3641 = vpop.f32.mrf.mxu0
    %3642 = vdwg.mxu0
    %3643 = vmatpush.bf16.msra.mxu0 %v2672
    %3644 = vmatpush.bf16.msra.mxu0 %v2664
    %3645 = vmatpush.bf16.msra.mxu0 %v2656
    %3646 = vmatpush.bf16.msra.mxu0 %v2648
    %3647 = vmatpush.bf16.msra.mxu0 %v2640
    %3648 = vmatpush.bf16.msra.mxu0 %v2632
    %3649 = vmatpush.bf16.msra.mxu0 %v2624
    %3650 = vmatpush.bf16.msra.mxu0 %v2616
    %3651 = vmatmul.bf16.gmra.mxu0 %v683
    %v3652 = vpop.f32.mrf.mxu0
    %v3653 = vadd.f32 %v3640, %v3652
    %v3654 = vpop.f32.mrf.mxu0
    %3655 = vdwg.mxu0
    %3656 = vmatpush.bf16.msra.mxu0 %v2736
    %3657 = vmatpush.bf16.msra.mxu0 %v2728
    %3658 = vmatpush.bf16.msra.mxu0 %v2720
    %3659 = vmatpush.bf16.msra.mxu0 %v2712
    %3660 = vmatpush.bf16.msra.mxu0 %v2704
    %3661 = vmatpush.bf16.msra.mxu0 %v2696
    %3662 = vmatpush.bf16.msra.mxu0 %v2688
    %3663 = vmatpush.bf16.msra.mxu0 %v2680
    %3664 = vmatmul.bf16.gmra.mxu0 %v684
    %v3665 = vpop.f32.mrf.mxu0
    %v3666 = vadd.f32 %v3653, %v3665
    %v3667 = vpop.f32.mrf.mxu0
    %3668 = vdwg.mxu0
    %3669 = vmatpush.bf16.msra.mxu0 %v2289
    %3670 = vmatpush.bf16.msra.mxu0 %v2281
    %3671 = vmatpush.bf16.msra.mxu0 %v2273
    %3672 = vmatpush.bf16.msra.mxu0 %v2265
    %3673 = vmatpush.bf16.msra.mxu0 %v2257
    %3674 = vmatpush.bf16.msra.mxu0 %v2249
    %3675 = vmatpush.bf16.msra.mxu0 %v2241
    %3676 = vmatpush.bf16.msra.mxu0 %v2233
    %3677 = vmatmul.bf16.gmra.mxu0 %v677
    %v3678 = vpop.f32.mrf.mxu0
    %v3679 = vadd.f32 %v653, %v3678
    %v3680 = vpop.f32.mrf.mxu0
    %3681 = vdwg.mxu0
    %3682 = vmatpush.bf16.msra.mxu0 %v2353
    %3683 = vmatpush.bf16.msra.mxu0 %v2345
    %3684 = vmatpush.bf16.msra.mxu0 %v2337
    %3685 = vmatpush.bf16.msra.mxu0 %v2329
    %3686 = vmatpush.bf16.msra.mxu0 %v2321
    %3687 = vmatpush.bf16.msra.mxu0 %v2313
    %3688 = vmatpush.bf16.msra.mxu0 %v2305
    %3689 = vmatpush.bf16.msra.mxu0 %v2297
    %3690 = vmatmul.bf16.gmra.mxu0 %v678
    %v3691 = vpop.f32.mrf.mxu0
    %v3692 = vadd.f32 %v3679, %v3691
    %v3693 = vpop.f32.mrf.mxu0
    %3694 = vdwg.mxu0
    %3695 = vmatpush.bf16.msra.mxu0 %v2417
    %3696 = vmatpush.bf16.msra.mxu0 %v2409
    %3697 = vmatpush.bf16.msra.mxu0 %v2401
    %3698 = vmatpush.bf16.msra.mxu0 %v2393
    %3699 = vmatpush.bf16.msra.mxu0 %v2385
    %3700 = vmatpush.bf16.msra.mxu0 %v2377
    %3701 = vmatpush.bf16.msra.mxu0 %v2369
    %3702 = vmatpush.bf16.msra.mxu0 %v2361
    %3703 = vmatmul.bf16.gmra.mxu0 %v679
    %v3704 = vpop.f32.mrf.mxu0
    %v3705 = vadd.f32 %v3692, %v3704
    %v3706 = vpop.f32.mrf.mxu0
    %3707 = vdwg.mxu0
    %3708 = vmatpush.bf16.msra.mxu0 %v2481
    %3709 = vmatpush.bf16.msra.mxu0 %v2473
    %3710 = vmatpush.bf16.msra.mxu0 %v2465
    %3711 = vmatpush.bf16.msra.mxu0 %v2457
    %3712 = vmatpush.bf16.msra.mxu0 %v2449
    %3713 = vmatpush.bf16.msra.mxu0 %v2441
    %3714 = vmatpush.bf16.msra.mxu0 %v2433
    %3715 = vmatpush.bf16.msra.mxu0 %v2425
    %3716 = vmatmul.bf16.gmra.mxu0 %v680
    %v3717 = vpop.f32.mrf.mxu0
    %v3718 = vadd.f32 %v3705, %v3717
    %v3719 = vpop.f32.mrf.mxu0
    %3720 = vdwg.mxu0
    %3721 = vmatpush.bf16.msra.mxu0 %v2545
    %3722 = vmatpush.bf16.msra.mxu0 %v2537
    %3723 = vmatpush.bf16.msra.mxu0 %v2529
    %3724 = vmatpush.bf16.msra.mxu0 %v2521
    %3725 = vmatpush.bf16.msra.mxu0 %v2513
    %3726 = vmatpush.bf16.msra.mxu0 %v2505
    %3727 = vmatpush.bf16.msra.mxu0 %v2497
    %3728 = vmatpush.bf16.msra.mxu0 %v2489
    %3729 = vmatmul.bf16.gmra.mxu0 %v681
    %v3730 = vpop.f32.mrf.mxu0
    %v3731 = vadd.f32 %v3718, %v3730
    %v3732 = vpop.f32.mrf.mxu0
    %3733 = vdwg.mxu0
    %3734 = vmatpush.bf16.msra.mxu0 %v2609
    %3735 = vmatpush.bf16.msra.mxu0 %v2601
    %3736 = vmatpush.bf16.msra.mxu0 %v2593
    %3737 = vmatpush.bf16.msra.mxu0 %v2585
    %3738 = vmatpush.bf16.msra.mxu0 %v2577
    %3739 = vmatpush.bf16.msra.mxu0 %v2569
    %3740 = vmatpush.bf16.msra.mxu0 %v2561
    %3741 = vmatpush.bf16.msra.mxu0 %v2553
    %3742 = vmatmul.bf16.gmra.mxu0 %v682
    %v3743 = vpop.f32.mrf.mxu0
    %v3744 = vadd.f32 %v3731, %v3743
    %v3745 = vpop.f32.mrf.mxu0
    %3746 = vdwg.mxu0
    %3747 = vmatpush.bf16.msra.mxu0 %v2673
    %3748 = vmatpush.bf16.msra.mxu0 %v2665
    %3749 = vmatpush.bf16.msra.mxu0 %v2657
    %3750 = vmatpush.bf16.msra.mxu0 %v2649
    %3751 = vmatpush.bf16.msra.mxu0 %v2641
    %3752 = vmatpush.bf16.msra.mxu0 %v2633
    %3753 = vmatpush.bf16.msra.mxu0 %v2625
    %3754 = vmatpush.bf16.msra.mxu0 %v2617
    %3755 = vmatmul.bf16.gmra.mxu0 %v683
    %v3756 = vpop.f32.mrf.mxu0
    %v3757 = vadd.f32 %v3744, %v3756
    %v3758 = vpop.f32.mrf.mxu0
    %3759 = vdwg.mxu0
    %3760 = vmatpush.bf16.msra.mxu0 %v2737
    %3761 = vmatpush.bf16.msra.mxu0 %v2729
    %3762 = vmatpush.bf16.msra.mxu0 %v2721
    %3763 = vmatpush.bf16.msra.mxu0 %v2713
    %3764 = vmatpush.bf16.msra.mxu0 %v2705
    %3765 = vmatpush.bf16.msra.mxu0 %v2697
    %3766 = vmatpush.bf16.msra.mxu0 %v2689
    %3767 = vmatpush.bf16.msra.mxu0 %v2681
    %3768 = vmatmul.bf16.gmra.mxu0 %v684
    %v3769 = vpop.f32.mrf.mxu0
    %v3770 = vadd.f32 %v3757, %v3769
    %v3771 = vpop.f32.mrf.mxu0
    %3772 = vdwg.mxu0
    %3773 = vmatpush.bf16.msra.mxu0 %v2290
    %3774 = vmatpush.bf16.msra.mxu0 %v2282
    %3775 = vmatpush.bf16.msra.mxu0 %v2274
    %3776 = vmatpush.bf16.msra.mxu0 %v2266
    %3777 = vmatpush.bf16.msra.mxu0 %v2258
    %3778 = vmatpush.bf16.msra.mxu0 %v2250
    %3779 = vmatpush.bf16.msra.mxu0 %v2242
    %3780 = vmatpush.bf16.msra.mxu0 %v2234
    %3781 = vmatmul.bf16.gmra.mxu0 %v677
    %v3782 = vpop.f32.mrf.mxu0
    %v3783 = vadd.f32 %v654, %v3782
    %v3784 = vpop.f32.mrf.mxu0
    %3785 = vdwg.mxu0
    %3786 = vmatpush.bf16.msra.mxu0 %v2354
    %3787 = vmatpush.bf16.msra.mxu0 %v2346
    %3788 = vmatpush.bf16.msra.mxu0 %v2338
    %3789 = vmatpush.bf16.msra.mxu0 %v2330
    %3790 = vmatpush.bf16.msra.mxu0 %v2322
    %3791 = vmatpush.bf16.msra.mxu0 %v2314
    %3792 = vmatpush.bf16.msra.mxu0 %v2306
    %3793 = vmatpush.bf16.msra.mxu0 %v2298
    %3794 = vmatmul.bf16.gmra.mxu0 %v678
    %v3795 = vpop.f32.mrf.mxu0
    %v3796 = vadd.f32 %v3783, %v3795
    %v3797 = vpop.f32.mrf.mxu0
    %3798 = vdwg.mxu0
    %3799 = vmatpush.bf16.msra.mxu0 %v2418
    %3800 = vmatpush.bf16.msra.mxu0 %v2410
    %3801 = vmatpush.bf16.msra.mxu0 %v2402
    %3802 = vmatpush.bf16.msra.mxu0 %v2394
    %3803 = vmatpush.bf16.msra.mxu0 %v2386
    %3804 = vmatpush.bf16.msra.mxu0 %v2378
    %3805 = vmatpush.bf16.msra.mxu0 %v2370
    %3806 = vmatpush.bf16.msra.mxu0 %v2362
    %3807 = vmatmul.bf16.gmra.mxu0 %v679
    %v3808 = vpop.f32.mrf.mxu0
    %v3809 = vadd.f32 %v3796, %v3808
    %v3810 = vpop.f32.mrf.mxu0
    %3811 = vdwg.mxu0
    %3812 = vmatpush.bf16.msra.mxu0 %v2482
    %3813 = vmatpush.bf16.msra.mxu0 %v2474
    %3814 = vmatpush.bf16.msra.mxu0 %v2466
    %3815 = vmatpush.bf16.msra.mxu0 %v2458
    %3816 = vmatpush.bf16.msra.mxu0 %v2450
    %3817 = vmatpush.bf16.msra.mxu0 %v2442
    %3818 = vmatpush.bf16.msra.mxu0 %v2434
    %3819 = vmatpush.bf16.msra.mxu0 %v2426
    %3820 = vmatmul.bf16.gmra.mxu0 %v680
    %v3821 = vpop.f32.mrf.mxu0
    %v3822 = vadd.f32 %v3809, %v3821
    %v3823 = vpop.f32.mrf.mxu0
    %3824 = vdwg.mxu0
    %3825 = vmatpush.bf16.msra.mxu0 %v2546
    %3826 = vmatpush.bf16.msra.mxu0 %v2538
    %3827 = vmatpush.bf16.msra.mxu0 %v2530
    %3828 = vmatpush.bf16.msra.mxu0 %v2522
    %3829 = vmatpush.bf16.msra.mxu0 %v2514
    %3830 = vmatpush.bf16.msra.mxu0 %v2506
    %3831 = vmatpush.bf16.msra.mxu0 %v2498
    %3832 = vmatpush.bf16.msra.mxu0 %v2490
    %3833 = vmatmul.bf16.gmra.mxu0 %v681
    %v3834 = vpop.f32.mrf.mxu0
    %v3835 = vadd.f32 %v3822, %v3834
    %v3836 = vpop.f32.mrf.mxu0
    %3837 = vdwg.mxu0
    %3838 = vmatpush.bf16.msra.mxu0 %v2610
    %3839 = vmatpush.bf16.msra.mxu0 %v2602
    %3840 = vmatpush.bf16.msra.mxu0 %v2594
    %3841 = vmatpush.bf16.msra.mxu0 %v2586
    %3842 = vmatpush.bf16.msra.mxu0 %v2578
    %3843 = vmatpush.bf16.msra.mxu0 %v2570
    %3844 = vmatpush.bf16.msra.mxu0 %v2562
    %3845 = vmatpush.bf16.msra.mxu0 %v2554
    %3846 = vmatmul.bf16.gmra.mxu0 %v682
    %v3847 = vpop.f32.mrf.mxu0
    %v3848 = vadd.f32 %v3835, %v3847
    %v3849 = vpop.f32.mrf.mxu0
    %3850 = vdwg.mxu0
    %3851 = vmatpush.bf16.msra.mxu0 %v2674
    %3852 = vmatpush.bf16.msra.mxu0 %v2666
    %3853 = vmatpush.bf16.msra.mxu0 %v2658
    %3854 = vmatpush.bf16.msra.mxu0 %v2650
    %3855 = vmatpush.bf16.msra.mxu0 %v2642
    %3856 = vmatpush.bf16.msra.mxu0 %v2634
    %3857 = vmatpush.bf16.msra.mxu0 %v2626
    %3858 = vmatpush.bf16.msra.mxu0 %v2618
    %3859 = vmatmul.bf16.gmra.mxu0 %v683
    %v3860 = vpop.f32.mrf.mxu0
    %v3861 = vadd.f32 %v3848, %v3860
    %v3862 = vpop.f32.mrf.mxu0
    %3863 = vdwg.mxu0
    %3864 = vmatpush.bf16.msra.mxu0 %v2738
    %3865 = vmatpush.bf16.msra.mxu0 %v2730
    %3866 = vmatpush.bf16.msra.mxu0 %v2722
    %3867 = vmatpush.bf16.msra.mxu0 %v2714
    %3868 = vmatpush.bf16.msra.mxu0 %v2706
    %3869 = vmatpush.bf16.msra.mxu0 %v2698
    %3870 = vmatpush.bf16.msra.mxu0 %v2690
    %3871 = vmatpush.bf16.msra.mxu0 %v2682
    %3872 = vmatmul.bf16.gmra.mxu0 %v684
    %v3873 = vpop.f32.mrf.mxu0
    %v3874 = vadd.f32 %v3861, %v3873
    %v3875 = vpop.f32.mrf.mxu0
    %3876 = vdwg.mxu0
    %3877 = vmatpush.bf16.msra.mxu0 %v2291
    %3878 = vmatpush.bf16.msra.mxu0 %v2283
    %3879 = vmatpush.bf16.msra.mxu0 %v2275
    %3880 = vmatpush.bf16.msra.mxu0 %v2267
    %3881 = vmatpush.bf16.msra.mxu0 %v2259
    %3882 = vmatpush.bf16.msra.mxu0 %v2251
    %3883 = vmatpush.bf16.msra.mxu0 %v2243
    %3884 = vmatpush.bf16.msra.mxu0 %v2235
    %3885 = vmatmul.bf16.gmra.mxu0 %v677
    %v3886 = vpop.f32.mrf.mxu0
    %v3887 = vadd.f32 %v655, %v3886
    %v3888 = vpop.f32.mrf.mxu0
    %3889 = vdwg.mxu0
    %3890 = vmatpush.bf16.msra.mxu0 %v2355
    %3891 = vmatpush.bf16.msra.mxu0 %v2347
    %3892 = vmatpush.bf16.msra.mxu0 %v2339
    %3893 = vmatpush.bf16.msra.mxu0 %v2331
    %3894 = vmatpush.bf16.msra.mxu0 %v2323
    %3895 = vmatpush.bf16.msra.mxu0 %v2315
    %3896 = vmatpush.bf16.msra.mxu0 %v2307
    %3897 = vmatpush.bf16.msra.mxu0 %v2299
    %3898 = vmatmul.bf16.gmra.mxu0 %v678
    %v3899 = vpop.f32.mrf.mxu0
    %v3900 = vadd.f32 %v3887, %v3899
    %v3901 = vpop.f32.mrf.mxu0
    %3902 = vdwg.mxu0
    %3903 = vmatpush.bf16.msra.mxu0 %v2419
    %3904 = vmatpush.bf16.msra.mxu0 %v2411
    %3905 = vmatpush.bf16.msra.mxu0 %v2403
    %3906 = vmatpush.bf16.msra.mxu0 %v2395
    %3907 = vmatpush.bf16.msra.mxu0 %v2387
    %3908 = vmatpush.bf16.msra.mxu0 %v2379
    %3909 = vmatpush.bf16.msra.mxu0 %v2371
    %3910 = vmatpush.bf16.msra.mxu0 %v2363
    %3911 = vmatmul.bf16.gmra.mxu0 %v679
    %v3912 = vpop.f32.mrf.mxu0
    %v3913 = vadd.f32 %v3900, %v3912
    %v3914 = vpop.f32.mrf.mxu0
    %3915 = vdwg.mxu0
    %3916 = vmatpush.bf16.msra.mxu0 %v2483
    %3917 = vmatpush.bf16.msra.mxu0 %v2475
    %3918 = vmatpush.bf16.msra.mxu0 %v2467
    %3919 = vmatpush.bf16.msra.mxu0 %v2459
    %3920 = vmatpush.bf16.msra.mxu0 %v2451
    %3921 = vmatpush.bf16.msra.mxu0 %v2443
    %3922 = vmatpush.bf16.msra.mxu0 %v2435
    %3923 = vmatpush.bf16.msra.mxu0 %v2427
    %3924 = vmatmul.bf16.gmra.mxu0 %v680
    %v3925 = vpop.f32.mrf.mxu0
    %v3926 = vadd.f32 %v3913, %v3925
    %v3927 = vpop.f32.mrf.mxu0
    %3928 = vdwg.mxu0
    %3929 = vmatpush.bf16.msra.mxu0 %v2547
    %3930 = vmatpush.bf16.msra.mxu0 %v2539
    %3931 = vmatpush.bf16.msra.mxu0 %v2531
    %3932 = vmatpush.bf16.msra.mxu0 %v2523
    %3933 = vmatpush.bf16.msra.mxu0 %v2515
    %3934 = vmatpush.bf16.msra.mxu0 %v2507
    %3935 = vmatpush.bf16.msra.mxu0 %v2499
    %3936 = vmatpush.bf16.msra.mxu0 %v2491
    %3937 = vmatmul.bf16.gmra.mxu0 %v681
    %v3938 = vpop.f32.mrf.mxu0
    %v3939 = vadd.f32 %v3926, %v3938
    %v3940 = vpop.f32.mrf.mxu0
    %3941 = vdwg.mxu0
    %3942 = vmatpush.bf16.msra.mxu0 %v2611
    %3943 = vmatpush.bf16.msra.mxu0 %v2603
    %3944 = vmatpush.bf16.msra.mxu0 %v2595
    %3945 = vmatpush.bf16.msra.mxu0 %v2587
    %3946 = vmatpush.bf16.msra.mxu0 %v2579
    %3947 = vmatpush.bf16.msra.mxu0 %v2571
    %3948 = vmatpush.bf16.msra.mxu0 %v2563
    %3949 = vmatpush.bf16.msra.mxu0 %v2555
    %3950 = vmatmul.bf16.gmra.mxu0 %v682
    %v3951 = vpop.f32.mrf.mxu0
    %v3952 = vadd.f32 %v3939, %v3951
    %v3953 = vpop.f32.mrf.mxu0
    %3954 = vdwg.mxu0
    %3955 = vmatpush.bf16.msra.mxu0 %v2675
    %3956 = vmatpush.bf16.msra.mxu0 %v2667
    %3957 = vmatpush.bf16.msra.mxu0 %v2659
    %3958 = vmatpush.bf16.msra.mxu0 %v2651
    %3959 = vmatpush.bf16.msra.mxu0 %v2643
    %3960 = vmatpush.bf16.msra.mxu0 %v2635
    %3961 = vmatpush.bf16.msra.mxu0 %v2627
    %3962 = vmatpush.bf16.msra.mxu0 %v2619
    %3963 = vmatmul.bf16.gmra.mxu0 %v683
    %v3964 = vpop.f32.mrf.mxu0
    %v3965 = vadd.f32 %v3952, %v3964
    %v3966 = vpop.f32.mrf.mxu0
    %3967 = vdwg.mxu0
    %3968 = vmatpush.bf16.msra.mxu0 %v2739
    %3969 = vmatpush.bf16.msra.mxu0 %v2731
    %3970 = vmatpush.bf16.msra.mxu0 %v2723
    %3971 = vmatpush.bf16.msra.mxu0 %v2715
    %3972 = vmatpush.bf16.msra.mxu0 %v2707
    %3973 = vmatpush.bf16.msra.mxu0 %v2699
    %3974 = vmatpush.bf16.msra.mxu0 %v2691
    %3975 = vmatpush.bf16.msra.mxu0 %v2683
    %3976 = vmatmul.bf16.gmra.mxu0 %v684
    %v3977 = vpop.f32.mrf.mxu0
    %v3978 = vadd.f32 %v3965, %v3977
    %v3979 = vpop.f32.mrf.mxu0
    %3980 = vdwg.mxu0
    %3981 = vmatpush.bf16.msra.mxu0 %v2292
    %3982 = vmatpush.bf16.msra.mxu0 %v2284
    %3983 = vmatpush.bf16.msra.mxu0 %v2276
    %3984 = vmatpush.bf16.msra.mxu0 %v2268
    %3985 = vmatpush.bf16.msra.mxu0 %v2260
    %3986 = vmatpush.bf16.msra.mxu0 %v2252
    %3987 = vmatpush.bf16.msra.mxu0 %v2244
    %3988 = vmatpush.bf16.msra.mxu0 %v2236
    %3989 = vmatmul.bf16.gmra.mxu0 %v677
    %v3990 = vpop.f32.mrf.mxu0
    %v3991 = vadd.f32 %v656, %v3990
    %v3992 = vpop.f32.mrf.mxu0
    %3993 = vdwg.mxu0
    %3994 = vmatpush.bf16.msra.mxu0 %v2356
    %3995 = vmatpush.bf16.msra.mxu0 %v2348
    %3996 = vmatpush.bf16.msra.mxu0 %v2340
    %3997 = vmatpush.bf16.msra.mxu0 %v2332
    %3998 = vmatpush.bf16.msra.mxu0 %v2324
    %3999 = vmatpush.bf16.msra.mxu0 %v2316
    %4000 = vmatpush.bf16.msra.mxu0 %v2308
    %4001 = vmatpush.bf16.msra.mxu0 %v2300
    %4002 = vmatmul.bf16.gmra.mxu0 %v678
    %v4003 = vpop.f32.mrf.mxu0
    %v4004 = vadd.f32 %v3991, %v4003
    %v4005 = vpop.f32.mrf.mxu0
    %4006 = vdwg.mxu0
    %4007 = vmatpush.bf16.msra.mxu0 %v2420
    %4008 = vmatpush.bf16.msra.mxu0 %v2412
    %4009 = vmatpush.bf16.msra.mxu0 %v2404
    %4010 = vmatpush.bf16.msra.mxu0 %v2396
    %4011 = vmatpush.bf16.msra.mxu0 %v2388
    %4012 = vmatpush.bf16.msra.mxu0 %v2380
    %4013 = vmatpush.bf16.msra.mxu0 %v2372
    %4014 = vmatpush.bf16.msra.mxu0 %v2364
    %4015 = vmatmul.bf16.gmra.mxu0 %v679
    %v4016 = vpop.f32.mrf.mxu0
    %v4017 = vadd.f32 %v4004, %v4016
    %v4018 = vpop.f32.mrf.mxu0
    %4019 = vdwg.mxu0
    %4020 = vmatpush.bf16.msra.mxu0 %v2484
    %4021 = vmatpush.bf16.msra.mxu0 %v2476
    %4022 = vmatpush.bf16.msra.mxu0 %v2468
    %4023 = vmatpush.bf16.msra.mxu0 %v2460
    %4024 = vmatpush.bf16.msra.mxu0 %v2452
    %4025 = vmatpush.bf16.msra.mxu0 %v2444
    %4026 = vmatpush.bf16.msra.mxu0 %v2436
    %4027 = vmatpush.bf16.msra.mxu0 %v2428
    %4028 = vmatmul.bf16.gmra.mxu0 %v680
    %v4029 = vpop.f32.mrf.mxu0
    %v4030 = vadd.f32 %v4017, %v4029
    %v4031 = vpop.f32.mrf.mxu0
    %4032 = vdwg.mxu0
    %4033 = vmatpush.bf16.msra.mxu0 %v2548
    %4034 = vmatpush.bf16.msra.mxu0 %v2540
    %4035 = vmatpush.bf16.msra.mxu0 %v2532
    %4036 = vmatpush.bf16.msra.mxu0 %v2524
    %4037 = vmatpush.bf16.msra.mxu0 %v2516
    %4038 = vmatpush.bf16.msra.mxu0 %v2508
    %4039 = vmatpush.bf16.msra.mxu0 %v2500
    %4040 = vmatpush.bf16.msra.mxu0 %v2492
    %4041 = vmatmul.bf16.gmra.mxu0 %v681
    %v4042 = vpop.f32.mrf.mxu0
    %v4043 = vadd.f32 %v4030, %v4042
    %v4044 = vpop.f32.mrf.mxu0
    %4045 = vdwg.mxu0
    %4046 = vmatpush.bf16.msra.mxu0 %v2612
    %4047 = vmatpush.bf16.msra.mxu0 %v2604
    %4048 = vmatpush.bf16.msra.mxu0 %v2596
    %4049 = vmatpush.bf16.msra.mxu0 %v2588
    %4050 = vmatpush.bf16.msra.mxu0 %v2580
    %4051 = vmatpush.bf16.msra.mxu0 %v2572
    %4052 = vmatpush.bf16.msra.mxu0 %v2564
    %4053 = vmatpush.bf16.msra.mxu0 %v2556
    %4054 = vmatmul.bf16.gmra.mxu0 %v682
    %v4055 = vpop.f32.mrf.mxu0
    %v4056 = vadd.f32 %v4043, %v4055
    %v4057 = vpop.f32.mrf.mxu0
    %4058 = vdwg.mxu0
    %4059 = vmatpush.bf16.msra.mxu0 %v2676
    %4060 = vmatpush.bf16.msra.mxu0 %v2668
    %4061 = vmatpush.bf16.msra.mxu0 %v2660
    %4062 = vmatpush.bf16.msra.mxu0 %v2652
    %4063 = vmatpush.bf16.msra.mxu0 %v2644
    %4064 = vmatpush.bf16.msra.mxu0 %v2636
    %4065 = vmatpush.bf16.msra.mxu0 %v2628
    %4066 = vmatpush.bf16.msra.mxu0 %v2620
    %4067 = vmatmul.bf16.gmra.mxu0 %v683
    %v4068 = vpop.f32.mrf.mxu0
    %v4069 = vadd.f32 %v4056, %v4068
    %v4070 = vpop.f32.mrf.mxu0
    %4071 = vdwg.mxu0
    %4072 = vmatpush.bf16.msra.mxu0 %v2740
    %4073 = vmatpush.bf16.msra.mxu0 %v2732
    %4074 = vmatpush.bf16.msra.mxu0 %v2724
    %4075 = vmatpush.bf16.msra.mxu0 %v2716
    %4076 = vmatpush.bf16.msra.mxu0 %v2708
    %4077 = vmatpush.bf16.msra.mxu0 %v2700
    %4078 = vmatpush.bf16.msra.mxu0 %v2692
    %4079 = vmatpush.bf16.msra.mxu0 %v2684
    %4080 = vmatmul.bf16.gmra.mxu0 %v684
    %v4081 = vpop.f32.mrf.mxu0
    %v4082 = vadd.f32 %v4069, %v4081
    %v4083 = vpop.f32.mrf.mxu0
    %4084 = vdwg.mxu0
    %v4085 = vmax.f32 %v3354, %v3770
    %v4086 = vmax.f32 %v3458, %v3874
    %v4087 = vmax.f32 %v3562, %v3978
    %v4088 = vmax.f32 %v3666, %v4082
    %v4089 = vmax.f32 %v4085, 0.0
    %v4090 = vmax.f32 %v4086, 0.0
    %v4091 = vmax.f32 %v4087, 0.0
    %v4092 = vmax.f32 %v4088, 0.0
    %v4093 = vpack.c.bf16 %v4089, %v4089
    %v4094 = vpack.c.bf16 %v4090, %v4090
    %v4095 = vpack.c.bf16 %v4091, %v4091
    %v4096 = vpack.c.bf16 %v4092, %v4092
    %v4097 = vld [vmem:[#allocation8] sm:$0xff]
    %v4098 = vld [vmem:[#allocation8 + $0x8] sm:$0xff]
    %v4099 = vld [vmem:[#allocation8 + $0x10] sm:$0xff]
    %v4100 = vld [vmem:[#allocation8 + $0x18] sm:$0xff]
    %v4101 = vld [vmem:[#allocation8 + $0x20] sm:$0xff]
    %v4102 = vld [vmem:[#allocation8 + $0x28] sm:$0xff]
    %v4103 = vld [vmem:[#allocation8 + $0x30] sm:$0xff]
    %v4104 = vld [vmem:[#allocation8 + $0x38] sm:$0xff]
    %v4105 = vld [vmem:[#allocation8 + $0x40] sm:$0xff]
    %v4106 = vld [vmem:[#allocation8 + $0x48] sm:$0xff]
    %v4107 = vld [vmem:[#allocation8 + $0x50] sm:$0xff]
    %v4108 = vld [vmem:[#allocation8 + $0x58] sm:$0xff]
    %v4109 = vld [vmem:[#allocation8 + $0x60] sm:$0xff]
    %v4110 = vld [vmem:[#allocation8 + $0x68] sm:$0xff]
    %v4111 = vld [vmem:[#allocation8 + $0x70] sm:$0xff]
    %v4112 = vld [vmem:[#allocation8 + $0x78] sm:$0xff]
    %v4113 = vld [vmem:[#allocation8 + $0x80] sm:$0xff]
    %v4114 = vld [vmem:[#allocation8 + $0x88] sm:$0xff]
    %v4115 = vld [vmem:[#allocation8 + $0x90] sm:$0xff]
    %v4116 = vld [vmem:[#allocation8 + $0x98] sm:$0xff]
    %v4117 = vld [vmem:[#allocation8 + $0xa0] sm:$0xff]
    %v4118 = vld [vmem:[#allocation8 + $0xa8] sm:$0xff]
    %v4119 = vld [vmem:[#allocation8 + $0xb0] sm:$0xff]
    %v4120 = vld [vmem:[#allocation8 + $0xb8] sm:$0xff]
    %v4121 = vld [vmem:[#allocation8 + $0xc0] sm:$0xff]
    %v4122 = vld [vmem:[#allocation8 + $0xc8] sm:$0xff]
    %v4123 = vld [vmem:[#allocation8 + $0xd0] sm:$0xff]
    %v4124 = vld [vmem:[#allocation8 + $0xd8] sm:$0xff]
    %v4125 = vld [vmem:[#allocation8 + $0xe0] sm:$0xff]
    %v4126 = vld [vmem:[#allocation8 + $0xe8] sm:$0xff]
    %v4127 = vld [vmem:[#allocation8 + $0xf0] sm:$0xff]
    %v4128 = vld [vmem:[#allocation8 + $0xf8] sm:$0xff]
    %v4129 = vld [vmem:[#allocation8 + $0x100] sm:$0xff]
    %v4130 = vld [vmem:[#allocation8 + $0x108] sm:$0xff]
    %v4131 = vld [vmem:[#allocation8 + $0x110] sm:$0xff]
    %v4132 = vld [vmem:[#allocation8 + $0x118] sm:$0xff]
    %v4133 = vld [vmem:[#allocation8 + $0x120] sm:$0xff]
    %v4134 = vld [vmem:[#allocation8 + $0x128] sm:$0xff]
    %v4135 = vld [vmem:[#allocation8 + $0x130] sm:$0xff]
    %v4136 = vld [vmem:[#allocation8 + $0x138] sm:$0xff]
    %v4137 = vld [vmem:[#allocation8 + $0x140] sm:$0xff]
    %v4138 = vld [vmem:[#allocation8 + $0x148] sm:$0xff]
    %v4139 = vld [vmem:[#allocation8 + $0x150] sm:$0xff]
    %v4140 = vld [vmem:[#allocation8 + $0x158] sm:$0xff]
    %v4141 = vld [vmem:[#allocation8 + $0x160] sm:$0xff]
    %v4142 = vld [vmem:[#allocation8 + $0x168] sm:$0xff]
    %v4143 = vld [vmem:[#allocation8 + $0x170] sm:$0xff]
    %v4144 = vld [vmem:[#allocation8 + $0x178] sm:$0xff]
    %v4145 = vld [vmem:[#allocation8 + $0x180] sm:$0xff]
    %v4146 = vld [vmem:[#allocation8 + $0x188] sm:$0xff]
    %v4147 = vld [vmem:[#allocation8 + $0x190] sm:$0xff]
    %v4148 = vld [vmem:[#allocation8 + $0x198] sm:$0xff]
    %v4149 = vld [vmem:[#allocation8 + $0x1a0] sm:$0xff]
    %v4150 = vld [vmem:[#allocation8 + $0x1a8] sm:$0xff]
    %v4151 = vld [vmem:[#allocation8 + $0x1b0] sm:$0xff]
    %v4152 = vld [vmem:[#allocation8 + $0x1b8] sm:$0xff]
    %v4153 = vld [vmem:[#allocation8 + $0x1c0] sm:$0xff]
    %v4154 = vld [vmem:[#allocation8 + $0x1c8] sm:$0xff]
    %v4155 = vld [vmem:[#allocation8 + $0x1d0] sm:$0xff]
    %v4156 = vld [vmem:[#allocation8 + $0x1d8] sm:$0xff]
    %v4157 = vld [vmem:[#allocation8 + $0x1e0] sm:$0xff]
    %v4158 = vld [vmem:[#allocation8 + $0x1e8] sm:$0xff]
    %v4159 = vld [vmem:[#allocation8 + $0x1f0] sm:$0xff]
    %v4160 = vld [vmem:[#allocation8 + $0x1f8] sm:$0xff]
    %v4161 = vld [vmem:[#allocation8 + $0x200] sm:$0xff]
    %v4162 = vld [vmem:[#allocation8 + $0x208] sm:$0xff]
    %v4163 = vld [vmem:[#allocation8 + $0x210] sm:$0xff]
    %v4164 = vld [vmem:[#allocation8 + $0x218] sm:$0xff]
    %v4165 = vld [vmem:[#allocation8 + $0x220] sm:$0xff]
    %v4166 = vld [vmem:[#allocation8 + $0x228] sm:$0xff]
    %v4167 = vld [vmem:[#allocation8 + $0x230] sm:$0xff]
    %v4168 = vld [vmem:[#allocation8 + $0x238] sm:$0xff]
    %v4169 = vld [vmem:[#allocation8 + $0x240] sm:$0xff]
    %v4170 = vld [vmem:[#allocation8 + $0x248] sm:$0xff]
    %v4171 = vld [vmem:[#allocation8 + $0x250] sm:$0xff]
    %v4172 = vld [vmem:[#allocation8 + $0x258] sm:$0xff]
    %v4173 = vld [vmem:[#allocation8 + $0x260] sm:$0xff]
    %v4174 = vld [vmem:[#allocation8 + $0x268] sm:$0xff]
    %v4175 = vld [vmem:[#allocation8 + $0x270] sm:$0xff]
    %v4176 = vld [vmem:[#allocation8 + $0x278] sm:$0xff]
    %v4177 = vld [vmem:[#allocation8 + $0x280] sm:$0xff]
    %v4178 = vld [vmem:[#allocation8 + $0x288] sm:$0xff]
    %v4179 = vld [vmem:[#allocation8 + $0x290] sm:$0xff]
    %v4180 = vld [vmem:[#allocation8 + $0x298] sm:$0xff]
    %v4181 = vld [vmem:[#allocation8 + $0x2a0] sm:$0xff]
    %v4182 = vld [vmem:[#allocation8 + $0x2a8] sm:$0xff]
    %v4183 = vld [vmem:[#allocation8 + $0x2b0] sm:$0xff]
    %v4184 = vld [vmem:[#allocation8 + $0x2b8] sm:$0xff]
    %v4185 = vld [vmem:[#allocation8 + $0x2c0] sm:$0xff]
    %v4186 = vld [vmem:[#allocation8 + $0x2c8] sm:$0xff]
    %v4187 = vld [vmem:[#allocation8 + $0x2d0] sm:$0xff]
    %v4188 = vld [vmem:[#allocation8 + $0x2d8] sm:$0xff]
    %v4189 = vld [vmem:[#allocation8 + $0x2e0] sm:$0xff]
    %v4190 = vld [vmem:[#allocation8 + $0x2e8] sm:$0xff]
    %v4191 = vld [vmem:[#allocation8 + $0x2f0] sm:$0xff]
    %v4192 = vld [vmem:[#allocation8 + $0x2f8] sm:$0xff]
    %v4193 = vld [vmem:[#allocation8 + $0x300] sm:$0xff]
    %v4194 = vld [vmem:[#allocation8 + $0x308] sm:$0xff]
    %v4195 = vld [vmem:[#allocation8 + $0x310] sm:$0xff]
    %v4196 = vld [vmem:[#allocation8 + $0x318] sm:$0xff]
    %v4197 = vld [vmem:[#allocation8 + $0x320] sm:$0xff]
    %v4198 = vld [vmem:[#allocation8 + $0x328] sm:$0xff]
    %v4199 = vld [vmem:[#allocation8 + $0x330] sm:$0xff]
    %v4200 = vld [vmem:[#allocation8 + $0x338] sm:$0xff]
    %v4201 = vld [vmem:[#allocation8 + $0x340] sm:$0xff]
    %v4202 = vld [vmem:[#allocation8 + $0x348] sm:$0xff]
    %v4203 = vld [vmem:[#allocation8 + $0x350] sm:$0xff]
    %v4204 = vld [vmem:[#allocation8 + $0x358] sm:$0xff]
    %v4205 = vld [vmem:[#allocation8 + $0x360] sm:$0xff]
    %v4206 = vld [vmem:[#allocation8 + $0x368] sm:$0xff]
    %v4207 = vld [vmem:[#allocation8 + $0x370] sm:$0xff]
    %v4208 = vld [vmem:[#allocation8 + $0x378] sm:$0xff]
    %v4209 = vld [vmem:[#allocation8 + $0x380] sm:$0xff]
    %v4210 = vld [vmem:[#allocation8 + $0x388] sm:$0xff]
    %v4211 = vld [vmem:[#allocation8 + $0x390] sm:$0xff]
    %v4212 = vld [vmem:[#allocation8 + $0x398] sm:$0xff]
    %v4213 = vld [vmem:[#allocation8 + $0x3a0] sm:$0xff]
    %v4214 = vld [vmem:[#allocation8 + $0x3a8] sm:$0xff]
    %v4215 = vld [vmem:[#allocation8 + $0x3b0] sm:$0xff]
    %v4216 = vld [vmem:[#allocation8 + $0x3b8] sm:$0xff]
    %v4217 = vld [vmem:[#allocation8 + $0x3c0] sm:$0xff]
    %v4218 = vld [vmem:[#allocation8 + $0x3c8] sm:$0xff]
    %v4219 = vld [vmem:[#allocation8 + $0x3d0] sm:$0xff]
    %v4220 = vld [vmem:[#allocation8 + $0x3d8] sm:$0xff]
    %v4221 = vld [vmem:[#allocation8 + $0x3e0] sm:$0xff]
    %v4222 = vld [vmem:[#allocation8 + $0x3e8] sm:$0xff]
    %v4223 = vld [vmem:[#allocation8 + $0x3f0] sm:$0xff]
    %v4224 = vld [vmem:[#allocation8 + $0x3f8] sm:$0xff]
    %v4225 = vld [vmem:[#allocation10] sm:$0xf]
    %v4227 = vperm.slane %v4225, 0
    %v4228 = vperm.slane %v4225, 1
    %v4229 = vperm.slane %v4225, 2
    %v4230 = vperm.slane %v4225, 3
    %v4363 = vunpack.c.l.b16 %v4097
    %v4364 = vunpack.c.h.b16 %v4097
    %v4365 = vunpack.c.l.b16 %v4098
    %v4366 = vunpack.c.h.b16 %v4098
    %v4367 = vunpack.c.l.b16 %v4099
    %v4368 = vunpack.c.h.b16 %v4099
    %v4369 = vunpack.c.l.b16 %v4100
    %v4370 = vunpack.c.h.b16 %v4100
    %v4371 = vunpack.c.l.b16 %v4101
    %v4372 = vunpack.c.h.b16 %v4101
    %v4373 = vunpack.c.l.b16 %v4102
    %v4374 = vunpack.c.h.b16 %v4102
    %v4375 = vunpack.c.l.b16 %v4103
    %v4376 = vunpack.c.h.b16 %v4103
    %v4377 = vunpack.c.l.b16 %v4104
    %v4378 = vunpack.c.h.b16 %v4104
    %v4379 = vunpack.c.l.b16 %v4105
    %v4380 = vunpack.c.h.b16 %v4105
    %v4381 = vunpack.c.l.b16 %v4106
    %v4382 = vunpack.c.h.b16 %v4106
    %v4383 = vunpack.c.l.b16 %v4107
    %v4384 = vunpack.c.h.b16 %v4107
    %v4385 = vunpack.c.l.b16 %v4108
    %v4386 = vunpack.c.h.b16 %v4108
    %v4387 = vunpack.c.l.b16 %v4109
    %v4388 = vunpack.c.h.b16 %v4109
    %v4389 = vunpack.c.l.b16 %v4110
    %v4390 = vunpack.c.h.b16 %v4110
    %v4391 = vunpack.c.l.b16 %v4111
    %v4392 = vunpack.c.h.b16 %v4111
    %v4393 = vunpack.c.l.b16 %v4112
    %v4394 = vunpack.c.h.b16 %v4112
    %v4395 = vunpack.c.l.b16 %v4113
    %v4396 = vunpack.c.h.b16 %v4113
    %v4397 = vunpack.c.l.b16 %v4114
    %v4398 = vunpack.c.h.b16 %v4114
    %v4399 = vunpack.c.l.b16 %v4115
    %v4400 = vunpack.c.h.b16 %v4115
    %v4401 = vunpack.c.l.b16 %v4116
    %v4402 = vunpack.c.h.b16 %v4116
    %v4403 = vunpack.c.l.b16 %v4117
    %v4404 = vunpack.c.h.b16 %v4117
    %v4405 = vunpack.c.l.b16 %v4118
    %v4406 = vunpack.c.h.b16 %v4118
    %v4407 = vunpack.c.l.b16 %v4119
    %v4408 = vunpack.c.h.b16 %v4119
    %v4409 = vunpack.c.l.b16 %v4120
    %v4410 = vunpack.c.h.b16 %v4120
    %v4411 = vunpack.c.l.b16 %v4121
    %v4412 = vunpack.c.h.b16 %v4121
    %v4413 = vunpack.c.l.b16 %v4122
    %v4414 = vunpack.c.h.b16 %v4122
    %v4415 = vunpack.c.l.b16 %v4123
    %v4416 = vunpack.c.h.b16 %v4123
    %v4417 = vunpack.c.l.b16 %v4124
    %v4418 = vunpack.c.h.b16 %v4124
    %v4419 = vunpack.c.l.b16 %v4125
    %v4420 = vunpack.c.h.b16 %v4125
    %v4421 = vunpack.c.l.b16 %v4126
    %v4422 = vunpack.c.h.b16 %v4126
    %v4423 = vunpack.c.l.b16 %v4127
    %v4424 = vunpack.c.h.b16 %v4127
    %v4425 = vunpack.c.l.b16 %v4128
    %v4426 = vunpack.c.h.b16 %v4128
    %v4427 = vunpack.c.l.b16 %v4129
    %v4428 = vunpack.c.h.b16 %v4129
    %v4429 = vunpack.c.l.b16 %v4130
    %v4430 = vunpack.c.h.b16 %v4130
    %v4431 = vunpack.c.l.b16 %v4131
    %v4432 = vunpack.c.h.b16 %v4131
    %v4433 = vunpack.c.l.b16 %v4132
    %v4434 = vunpack.c.h.b16 %v4132
    %v4435 = vunpack.c.l.b16 %v4133
    %v4436 = vunpack.c.h.b16 %v4133
    %v4437 = vunpack.c.l.b16 %v4134
    %v4438 = vunpack.c.h.b16 %v4134
    %v4439 = vunpack.c.l.b16 %v4135
    %v4440 = vunpack.c.h.b16 %v4135
    %v4441 = vunpack.c.l.b16 %v4136
    %v4442 = vunpack.c.h.b16 %v4136
    %v4443 = vunpack.c.l.b16 %v4137
    %v4444 = vunpack.c.h.b16 %v4137
    %v4445 = vunpack.c.l.b16 %v4138
    %v4446 = vunpack.c.h.b16 %v4138
    %v4447 = vunpack.c.l.b16 %v4139
    %v4448 = vunpack.c.h.b16 %v4139
    %v4449 = vunpack.c.l.b16 %v4140
    %v4450 = vunpack.c.h.b16 %v4140
    %v4451 = vunpack.c.l.b16 %v4141
    %v4452 = vunpack.c.h.b16 %v4141
    %v4453 = vunpack.c.l.b16 %v4142
    %v4454 = vunpack.c.h.b16 %v4142
    %v4455 = vunpack.c.l.b16 %v4143
    %v4456 = vunpack.c.h.b16 %v4143
    %v4457 = vunpack.c.l.b16 %v4144
    %v4458 = vunpack.c.h.b16 %v4144
    %v4459 = vunpack.c.l.b16 %v4145
    %v4460 = vunpack.c.h.b16 %v4145
    %v4461 = vunpack.c.l.b16 %v4146
    %v4462 = vunpack.c.h.b16 %v4146
    %v4463 = vunpack.c.l.b16 %v4147
    %v4464 = vunpack.c.h.b16 %v4147
    %v4465 = vunpack.c.l.b16 %v4148
    %v4466 = vunpack.c.h.b16 %v4148
    %v4467 = vunpack.c.l.b16 %v4149
    %v4468 = vunpack.c.h.b16 %v4149
    %v4469 = vunpack.c.l.b16 %v4150
    %v4470 = vunpack.c.h.b16 %v4150
    %v4471 = vunpack.c.l.b16 %v4151
    %v4472 = vunpack.c.h.b16 %v4151
    %v4473 = vunpack.c.l.b16 %v4152
    %v4474 = vunpack.c.h.b16 %v4152
    %v4475 = vunpack.c.l.b16 %v4153
    %v4476 = vunpack.c.h.b16 %v4153
    %v4477 = vunpack.c.l.b16 %v4154
    %v4478 = vunpack.c.h.b16 %v4154
    %v4479 = vunpack.c.l.b16 %v4155
    %v4480 = vunpack.c.h.b16 %v4155
    %v4481 = vunpack.c.l.b16 %v4156
    %v4482 = vunpack.c.h.b16 %v4156
    %v4483 = vunpack.c.l.b16 %v4157
    %v4484 = vunpack.c.h.b16 %v4157
    %v4485 = vunpack.c.l.b16 %v4158
    %v4486 = vunpack.c.h.b16 %v4158
    %v4487 = vunpack.c.l.b16 %v4159
    %v4488 = vunpack.c.h.b16 %v4159
    %v4489 = vunpack.c.l.b16 %v4160
    %v4490 = vunpack.c.h.b16 %v4160
    %v4491 = vunpack.c.l.b16 %v4161
    %v4492 = vunpack.c.h.b16 %v4161
    %v4493 = vunpack.c.l.b16 %v4162
    %v4494 = vunpack.c.h.b16 %v4162
    %v4495 = vunpack.c.l.b16 %v4163
    %v4496 = vunpack.c.h.b16 %v4163
    %v4497 = vunpack.c.l.b16 %v4164
    %v4498 = vunpack.c.h.b16 %v4164
    %v4499 = vunpack.c.l.b16 %v4165
    %v4500 = vunpack.c.h.b16 %v4165
    %v4501 = vunpack.c.l.b16 %v4166
    %v4502 = vunpack.c.h.b16 %v4166
    %v4503 = vunpack.c.l.b16 %v4167
    %v4504 = vunpack.c.h.b16 %v4167
    %v4505 = vunpack.c.l.b16 %v4168
    %v4506 = vunpack.c.h.b16 %v4168
    %v4507 = vunpack.c.l.b16 %v4169
    %v4508 = vunpack.c.h.b16 %v4169
    %v4509 = vunpack.c.l.b16 %v4170
    %v4510 = vunpack.c.h.b16 %v4170
    %v4511 = vunpack.c.l.b16 %v4171
    %v4512 = vunpack.c.h.b16 %v4171
    %v4513 = vunpack.c.l.b16 %v4172
    %v4514 = vunpack.c.h.b16 %v4172
    %v4515 = vunpack.c.l.b16 %v4173
    %v4516 = vunpack.c.h.b16 %v4173
    %v4517 = vunpack.c.l.b16 %v4174
    %v4518 = vunpack.c.h.b16 %v4174
    %v4519 = vunpack.c.l.b16 %v4175
    %v4520 = vunpack.c.h.b16 %v4175
    %v4521 = vunpack.c.l.b16 %v4176
    %v4522 = vunpack.c.h.b16 %v4176
    %v4523 = vunpack.c.l.b16 %v4177
    %v4524 = vunpack.c.h.b16 %v4177
    %v4525 = vunpack.c.l.b16 %v4178
    %v4526 = vunpack.c.h.b16 %v4178
    %v4527 = vunpack.c.l.b16 %v4179
    %v4528 = vunpack.c.h.b16 %v4179
    %v4529 = vunpack.c.l.b16 %v4180
    %v4530 = vunpack.c.h.b16 %v4180
    %v4531 = vunpack.c.l.b16 %v4181
    %v4532 = vunpack.c.h.b16 %v4181
    %v4533 = vunpack.c.l.b16 %v4182
    %v4534 = vunpack.c.h.b16 %v4182
    %v4535 = vunpack.c.l.b16 %v4183
    %v4536 = vunpack.c.h.b16 %v4183
    %v4537 = vunpack.c.l.b16 %v4184
    %v4538 = vunpack.c.h.b16 %v4184
    %v4539 = vunpack.c.l.b16 %v4185
    %v4540 = vunpack.c.h.b16 %v4185
    %v4541 = vunpack.c.l.b16 %v4186
    %v4542 = vunpack.c.h.b16 %v4186
    %v4543 = vunpack.c.l.b16 %v4187
    %v4544 = vunpack.c.h.b16 %v4187
    %v4545 = vunpack.c.l.b16 %v4188
    %v4546 = vunpack.c.h.b16 %v4188
    %v4547 = vunpack.c.l.b16 %v4189
    %v4548 = vunpack.c.h.b16 %v4189
    %v4549 = vunpack.c.l.b16 %v4190
    %v4550 = vunpack.c.h.b16 %v4190
    %v4551 = vunpack.c.l.b16 %v4191
    %v4552 = vunpack.c.h.b16 %v4191
    %v4553 = vunpack.c.l.b16 %v4192
    %v4554 = vunpack.c.h.b16 %v4192
    %v4555 = vunpack.c.l.b16 %v4193
    %v4556 = vunpack.c.h.b16 %v4193
    %v4557 = vunpack.c.l.b16 %v4194
    %v4558 = vunpack.c.h.b16 %v4194
    %v4559 = vunpack.c.l.b16 %v4195
    %v4560 = vunpack.c.h.b16 %v4195
    %v4561 = vunpack.c.l.b16 %v4196
    %v4562 = vunpack.c.h.b16 %v4196
    %v4563 = vunpack.c.l.b16 %v4197
    %v4564 = vunpack.c.h.b16 %v4197
    %v4565 = vunpack.c.l.b16 %v4198
    %v4566 = vunpack.c.h.b16 %v4198
    %v4567 = vunpack.c.l.b16 %v4199
    %v4568 = vunpack.c.h.b16 %v4199
    %v4569 = vunpack.c.l.b16 %v4200
    %v4570 = vunpack.c.h.b16 %v4200
    %v4571 = vunpack.c.l.b16 %v4201
    %v4572 = vunpack.c.h.b16 %v4201
    %v4573 = vunpack.c.l.b16 %v4202
    %v4574 = vunpack.c.h.b16 %v4202
    %v4575 = vunpack.c.l.b16 %v4203
    %v4576 = vunpack.c.h.b16 %v4203
    %v4577 = vunpack.c.l.b16 %v4204
    %v4578 = vunpack.c.h.b16 %v4204
    %v4579 = vunpack.c.l.b16 %v4205
    %v4580 = vunpack.c.h.b16 %v4205
    %v4581 = vunpack.c.l.b16 %v4206
    %v4582 = vunpack.c.h.b16 %v4206
    %v4583 = vunpack.c.l.b16 %v4207
    %v4584 = vunpack.c.h.b16 %v4207
    %v4585 = vunpack.c.l.b16 %v4208
    %v4586 = vunpack.c.h.b16 %v4208
    %v4587 = vunpack.c.l.b16 %v4209
    %v4588 = vunpack.c.h.b16 %v4209
    %v4589 = vunpack.c.l.b16 %v4210
    %v4590 = vunpack.c.h.b16 %v4210
    %v4591 = vunpack.c.l.b16 %v4211
    %v4592 = vunpack.c.h.b16 %v4211
    %v4593 = vunpack.c.l.b16 %v4212
    %v4594 = vunpack.c.h.b16 %v4212
    %v4595 = vunpack.c.l.b16 %v4213
    %v4596 = vunpack.c.h.b16 %v4213
    %v4597 = vunpack.c.l.b16 %v4214
    %v4598 = vunpack.c.h.b16 %v4214
    %v4599 = vunpack.c.l.b16 %v4215
    %v4600 = vunpack.c.h.b16 %v4215
    %v4601 = vunpack.c.l.b16 %v4216
    %v4602 = vunpack.c.h.b16 %v4216
    %v4603 = vunpack.c.l.b16 %v4217
    %v4604 = vunpack.c.h.b16 %v4217
    %v4605 = vunpack.c.l.b16 %v4218
    %v4606 = vunpack.c.h.b16 %v4218
    %v4607 = vunpack.c.l.b16 %v4219
    %v4608 = vunpack.c.h.b16 %v4219
    %v4609 = vunpack.c.l.b16 %v4220
    %v4610 = vunpack.c.h.b16 %v4220
    %v4611 = vunpack.c.l.b16 %v4221
    %v4612 = vunpack.c.h.b16 %v4221
    %v4613 = vunpack.c.l.b16 %v4222
    %v4614 = vunpack.c.h.b16 %v4222
    %v4615 = vunpack.c.l.b16 %v4223
    %v4616 = vunpack.c.h.b16 %v4223
    %v4617 = vunpack.c.l.b16 %v4224
    %v4618 = vunpack.c.h.b16 %v4224
    %v4619 = vpack.c.b16 %v4367, %v4363
    %v4620 = vpack.c.b16 %v4368, %v4364
    %v4621 = vpack.c.b16 %v4369, %v4365
    %v4622 = vpack.c.b16 %v4370, %v4366
    %v4623 = vpack.c.b16 %v4375, %v4371
    %v4624 = vpack.c.b16 %v4376, %v4372
    %v4625 = vpack.c.b16 %v4377, %v4373
    %v4626 = vpack.c.b16 %v4378, %v4374
    %v4627 = vpack.c.b16 %v4383, %v4379
    %v4628 = vpack.c.b16 %v4384, %v4380
    %v4629 = vpack.c.b16 %v4385, %v4381
    %v4630 = vpack.c.b16 %v4386, %v4382
    %v4631 = vpack.c.b16 %v4391, %v4387
    %v4632 = vpack.c.b16 %v4392, %v4388
    %v4633 = vpack.c.b16 %v4393, %v4389
    %v4634 = vpack.c.b16 %v4394, %v4390
    %v4635 = vpack.c.b16 %v4399, %v4395
    %v4636 = vpack.c.b16 %v4400, %v4396
    %v4637 = vpack.c.b16 %v4401, %v4397
    %v4638 = vpack.c.b16 %v4402, %v4398
    %v4639 = vpack.c.b16 %v4407, %v4403
    %v4640 = vpack.c.b16 %v4408, %v4404
    %v4641 = vpack.c.b16 %v4409, %v4405
    %v4642 = vpack.c.b16 %v4410, %v4406
    %v4643 = vpack.c.b16 %v4415, %v4411
    %v4644 = vpack.c.b16 %v4416, %v4412
    %v4645 = vpack.c.b16 %v4417, %v4413
    %v4646 = vpack.c.b16 %v4418, %v4414
    %v4647 = vpack.c.b16 %v4423, %v4419
    %v4648 = vpack.c.b16 %v4424, %v4420
    %v4649 = vpack.c.b16 %v4425, %v4421
    %v4650 = vpack.c.b16 %v4426, %v4422
    %v4651 = vpack.c.b16 %v4431, %v4427
    %v4652 = vpack.c.b16 %v4432, %v4428
    %v4653 = vpack.c.b16 %v4433, %v4429
    %v4654 = vpack.c.b16 %v4434, %v4430
    %v4655 = vpack.c.b16 %v4439, %v4435
    %v4656 = vpack.c.b16 %v4440, %v4436
    %v4657 = vpack.c.b16 %v4441, %v4437
    %v4658 = vpack.c.b16 %v4442, %v4438
    %v4659 = vpack.c.b16 %v4447, %v4443
    %v4660 = vpack.c.b16 %v4448, %v4444
    %v4661 = vpack.c.b16 %v4449, %v4445
    %v4662 = vpack.c.b16 %v4450, %v4446
    %v4663 = vpack.c.b16 %v4455, %v4451
    %v4664 = vpack.c.b16 %v4456, %v4452
    %v4665 = vpack.c.b16 %v4457, %v4453
    %v4666 = vpack.c.b16 %v4458, %v4454
    %v4667 = vpack.c.b16 %v4463, %v4459
    %v4668 = vpack.c.b16 %v4464, %v4460
    %v4669 = vpack.c.b16 %v4465, %v4461
    %v4670 = vpack.c.b16 %v4466, %v4462
    %v4671 = vpack.c.b16 %v4471, %v4467
    %v4672 = vpack.c.b16 %v4472, %v4468
    %v4673 = vpack.c.b16 %v4473, %v4469
    %v4674 = vpack.c.b16 %v4474, %v4470
    %v4675 = vpack.c.b16 %v4479, %v4475
    %v4676 = vpack.c.b16 %v4480, %v4476
    %v4677 = vpack.c.b16 %v4481, %v4477
    %v4678 = vpack.c.b16 %v4482, %v4478
    %v4679 = vpack.c.b16 %v4487, %v4483
    %v4680 = vpack.c.b16 %v4488, %v4484
    %v4681 = vpack.c.b16 %v4489, %v4485
    %v4682 = vpack.c.b16 %v4490, %v4486
    %v4683 = vpack.c.b16 %v4495, %v4491
    %v4684 = vpack.c.b16 %v4496, %v4492
    %v4685 = vpack.c.b16 %v4497, %v4493
    %v4686 = vpack.c.b16 %v4498, %v4494
    %v4687 = vpack.c.b16 %v4503, %v4499
    %v4688 = vpack.c.b16 %v4504, %v4500
    %v4689 = vpack.c.b16 %v4505, %v4501
    %v4690 = vpack.c.b16 %v4506, %v4502
    %v4691 = vpack.c.b16 %v4511, %v4507
    %v4692 = vpack.c.b16 %v4512, %v4508
    %v4693 = vpack.c.b16 %v4513, %v4509
    %v4694 = vpack.c.b16 %v4514, %v4510
    %v4695 = vpack.c.b16 %v4519, %v4515
    %v4696 = vpack.c.b16 %v4520, %v4516
    %v4697 = vpack.c.b16 %v4521, %v4517
    %v4698 = vpack.c.b16 %v4522, %v4518
    %v4699 = vpack.c.b16 %v4527, %v4523
    %v4700 = vpack.c.b16 %v4528, %v4524
    %v4701 = vpack.c.b16 %v4529, %v4525
    %v4702 = vpack.c.b16 %v4530, %v4526
    %v4703 = vpack.c.b16 %v4535, %v4531
    %v4704 = vpack.c.b16 %v4536, %v4532
    %v4705 = vpack.c.b16 %v4537, %v4533
    %v4706 = vpack.c.b16 %v4538, %v4534
    %v4707 = vpack.c.b16 %v4543, %v4539
    %v4708 = vpack.c.b16 %v4544, %v4540
    %v4709 = vpack.c.b16 %v4545, %v4541
    %v4710 = vpack.c.b16 %v4546, %v4542
    %v4711 = vpack.c.b16 %v4551, %v4547
    %v4712 = vpack.c.b16 %v4552, %v4548
    %v4713 = vpack.c.b16 %v4553, %v4549
    %v4714 = vpack.c.b16 %v4554, %v4550
    %v4715 = vpack.c.b16 %v4559, %v4555
    %v4716 = vpack.c.b16 %v4560, %v4556
    %v4717 = vpack.c.b16 %v4561, %v4557
    %v4718 = vpack.c.b16 %v4562, %v4558
    %v4719 = vpack.c.b16 %v4567, %v4563
    %v4720 = vpack.c.b16 %v4568, %v4564
    %v4721 = vpack.c.b16 %v4569, %v4565
    %v4722 = vpack.c.b16 %v4570, %v4566
    %v4723 = vpack.c.b16 %v4575, %v4571
    %v4724 = vpack.c.b16 %v4576, %v4572
    %v4725 = vpack.c.b16 %v4577, %v4573
    %v4726 = vpack.c.b16 %v4578, %v4574
    %v4727 = vpack.c.b16 %v4583, %v4579
    %v4728 = vpack.c.b16 %v4584, %v4580
    %v4729 = vpack.c.b16 %v4585, %v4581
    %v4730 = vpack.c.b16 %v4586, %v4582
    %v4731 = vpack.c.b16 %v4591, %v4587
    %v4732 = vpack.c.b16 %v4592, %v4588
    %v4733 = vpack.c.b16 %v4593, %v4589
    %v4734 = vpack.c.b16 %v4594, %v4590
    %v4735 = vpack.c.b16 %v4599, %v4595
    %v4736 = vpack.c.b16 %v4600, %v4596
    %v4737 = vpack.c.b16 %v4601, %v4597
    %v4738 = vpack.c.b16 %v4602, %v4598
    %v4739 = vpack.c.b16 %v4607, %v4603
    %v4740 = vpack.c.b16 %v4608, %v4604
    %v4741 = vpack.c.b16 %v4609, %v4605
    %v4742 = vpack.c.b16 %v4610, %v4606
    %v4743 = vpack.c.b16 %v4615, %v4611
    %v4744 = vpack.c.b16 %v4616, %v4612
    %v4745 = vpack.c.b16 %v4617, %v4613
    %v4746 = vpack.c.b16 %v4618, %v4614
    %4875 = vmatpush.bf16.msra.mxu0 %v4647
    %4876 = vmatpush.bf16.msra.mxu0 %v4643
    %4877 = vmatpush.bf16.msra.mxu0 %v4639
    %4878 = vmatpush.bf16.msra.mxu0 %v4635
    %4879 = vmatpush.bf16.msra.mxu0 %v4631
    %4880 = vmatpush.bf16.msra.mxu0 %v4627
    %4881 = vmatpush.bf16.msra.mxu0 %v4623
    %4882 = vmatpush.bf16.msra.mxu0 %v4619
    %4883 = vmatmul.bf16.gmra.mxu0 %v4093
    %v4884 = vpop.f32.mrf.mxu0
    %v4885 = vadd.f32 %v4227, %v4884
    %v4886 = vpop.f32.mrf.mxu0
    %4887 = vdwg.mxu0
    %4888 = vmatpush.bf16.msra.mxu0 %v4679
    %4889 = vmatpush.bf16.msra.mxu0 %v4675
    %4890 = vmatpush.bf16.msra.mxu0 %v4671
    %4891 = vmatpush.bf16.msra.mxu0 %v4667
    %4892 = vmatpush.bf16.msra.mxu0 %v4663
    %4893 = vmatpush.bf16.msra.mxu0 %v4659
    %4894 = vmatpush.bf16.msra.mxu0 %v4655
    %4895 = vmatpush.bf16.msra.mxu0 %v4651
    %4896 = vmatmul.bf16.gmra.mxu0 %v4094
    %v4897 = vpop.f32.mrf.mxu0
    %v4898 = vadd.f32 %v4885, %v4897
    %v4899 = vpop.f32.mrf.mxu0
    %4900 = vdwg.mxu0
    %4901 = vmatpush.bf16.msra.mxu0 %v4711
    %4902 = vmatpush.bf16.msra.mxu0 %v4707
    %4903 = vmatpush.bf16.msra.mxu0 %v4703
    %4904 = vmatpush.bf16.msra.mxu0 %v4699
    %4905 = vmatpush.bf16.msra.mxu0 %v4695
    %4906 = vmatpush.bf16.msra.mxu0 %v4691
    %4907 = vmatpush.bf16.msra.mxu0 %v4687
    %4908 = vmatpush.bf16.msra.mxu0 %v4683
    %4909 = vmatmul.bf16.gmra.mxu0 %v4095
    %v4910 = vpop.f32.mrf.mxu0
    %v4911 = vadd.f32 %v4898, %v4910
    %v4912 = vpop.f32.mrf.mxu0
    %4913 = vdwg.mxu0
    %4914 = vmatpush.bf16.msra.mxu0 %v4743
    %4915 = vmatpush.bf16.msra.mxu0 %v4739
    %4916 = vmatpush.bf16.msra.mxu0 %v4735
    %4917 = vmatpush.bf16.msra.mxu0 %v4731
    %4918 = vmatpush.bf16.msra.mxu0 %v4727
    %4919 = vmatpush.bf16.msra.mxu0 %v4723
    %4920 = vmatpush.bf16.msra.mxu0 %v4719
    %4921 = vmatpush.bf16.msra.mxu0 %v4715
    %4922 = vmatmul.bf16.gmra.mxu0 %v4096
    %v4923 = vpop.f32.mrf.mxu0
    %v4924 = vadd.f32 %v4911, %v4923
    %v4925 = vpop.f32.mrf.mxu0
    %4926 = vdwg.mxu0
    %4927 = vmatpush.bf16.msra.mxu0 %v4648
    %4928 = vmatpush.bf16.msra.mxu0 %v4644
    %4929 = vmatpush.bf16.msra.mxu0 %v4640
    %4930 = vmatpush.bf16.msra.mxu0 %v4636
    %4931 = vmatpush.bf16.msra.mxu0 %v4632
    %4932 = vmatpush.bf16.msra.mxu0 %v4628
    %4933 = vmatpush.bf16.msra.mxu0 %v4624
    %4934 = vmatpush.bf16.msra.mxu0 %v4620
    %4935 = vmatmul.bf16.gmra.mxu0 %v4093
    %v4936 = vpop.f32.mrf.mxu0
    %v4937 = vadd.f32 %v4228, %v4936
    %v4938 = vpop.f32.mrf.mxu0
    %4939 = vdwg.mxu0
    %4940 = vmatpush.bf16.msra.mxu0 %v4680
    %4941 = vmatpush.bf16.msra.mxu0 %v4676
    %4942 = vmatpush.bf16.msra.mxu0 %v4672
    %4943 = vmatpush.bf16.msra.mxu0 %v4668
    %4944 = vmatpush.bf16.msra.mxu0 %v4664
    %4945 = vmatpush.bf16.msra.mxu0 %v4660
    %4946 = vmatpush.bf16.msra.mxu0 %v4656
    %4947 = vmatpush.bf16.msra.mxu0 %v4652
    %4948 = vmatmul.bf16.gmra.mxu0 %v4094
    %v4949 = vpop.f32.mrf.mxu0
    %v4950 = vadd.f32 %v4937, %v4949
    %v4951 = vpop.f32.mrf.mxu0
    %4952 = vdwg.mxu0
    %4953 = vmatpush.bf16.msra.mxu0 %v4712
    %4954 = vmatpush.bf16.msra.mxu0 %v4708
    %4955 = vmatpush.bf16.msra.mxu0 %v4704
    %4956 = vmatpush.bf16.msra.mxu0 %v4700
    %4957 = vmatpush.bf16.msra.mxu0 %v4696
    %4958 = vmatpush.bf16.msra.mxu0 %v4692
    %4959 = vmatpush.bf16.msra.mxu0 %v4688
    %4960 = vmatpush.bf16.msra.mxu0 %v4684
    %4961 = vmatmul.bf16.gmra.mxu0 %v4095
    %v4962 = vpop.f32.mrf.mxu0
    %v4963 = vadd.f32 %v4950, %v4962
    %v4964 = vpop.f32.mrf.mxu0
    %4965 = vdwg.mxu0
    %4966 = vmatpush.bf16.msra.mxu0 %v4744
    %4967 = vmatpush.bf16.msra.mxu0 %v4740
    %4968 = vmatpush.bf16.msra.mxu0 %v4736
    %4969 = vmatpush.bf16.msra.mxu0 %v4732
    %4970 = vmatpush.bf16.msra.mxu0 %v4728
    %4971 = vmatpush.bf16.msra.mxu0 %v4724
    %4972 = vmatpush.bf16.msra.mxu0 %v4720
    %4973 = vmatpush.bf16.msra.mxu0 %v4716
    %4974 = vmatmul.bf16.gmra.mxu0 %v4096
    %v4975 = vpop.f32.mrf.mxu0
    %v4976 = vadd.f32 %v4963, %v4975
    %v4977 = vpop.f32.mrf.mxu0
    %4978 = vdwg.mxu0
    %4979 = vmatpush.bf16.msra.mxu0 %v4649
    %4980 = vmatpush.bf16.msra.mxu0 %v4645
    %4981 = vmatpush.bf16.msra.mxu0 %v4641
    %4982 = vmatpush.bf16.msra.mxu0 %v4637
    %4983 = vmatpush.bf16.msra.mxu0 %v4633
    %4984 = vmatpush.bf16.msra.mxu0 %v4629
    %4985 = vmatpush.bf16.msra.mxu0 %v4625
    %4986 = vmatpush.bf16.msra.mxu0 %v4621
    %4987 = vmatmul.bf16.gmra.mxu0 %v4093
    %v4988 = vpop.f32.mrf.mxu0
    %v4989 = vadd.f32 %v4229, %v4988
    %v4990 = vpop.f32.mrf.mxu0
    %4991 = vdwg.mxu0
    %4992 = vmatpush.bf16.msra.mxu0 %v4681
    %4993 = vmatpush.bf16.msra.mxu0 %v4677
    %4994 = vmatpush.bf16.msra.mxu0 %v4673
    %4995 = vmatpush.bf16.msra.mxu0 %v4669
    %4996 = vmatpush.bf16.msra.mxu0 %v4665
    %4997 = vmatpush.bf16.msra.mxu0 %v4661
    %4998 = vmatpush.bf16.msra.mxu0 %v4657
    %4999 = vmatpush.bf16.msra.mxu0 %v4653
    %5000 = vmatmul.bf16.gmra.mxu0 %v4094
    %v5001 = vpop.f32.mrf.mxu0
    %v5002 = vadd.f32 %v4989, %v5001
    %v5003 = vpop.f32.mrf.mxu0
    %5004 = vdwg.mxu0
    %5005 = vmatpush.bf16.msra.mxu0 %v4713
    %5006 = vmatpush.bf16.msra.mxu0 %v4709
    %5007 = vmatpush.bf16.msra.mxu0 %v4705
    %5008 = vmatpush.bf16.msra.mxu0 %v4701
    %5009 = vmatpush.bf16.msra.mxu0 %v4697
    %5010 = vmatpush.bf16.msra.mxu0 %v4693
    %5011 = vmatpush.bf16.msra.mxu0 %v4689
    %5012 = vmatpush.bf16.msra.mxu0 %v4685
    %5013 = vmatmul.bf16.gmra.mxu0 %v4095
    %v5014 = vpop.f32.mrf.mxu0
    %v5015 = vadd.f32 %v5002, %v5014
    %v5016 = vpop.f32.mrf.mxu0
    %5017 = vdwg.mxu0
    %5018 = vmatpush.bf16.msra.mxu0 %v4745
    %5019 = vmatpush.bf16.msra.mxu0 %v4741
    %5020 = vmatpush.bf16.msra.mxu0 %v4737
    %5021 = vmatpush.bf16.msra.mxu0 %v4733
    %5022 = vmatpush.bf16.msra.mxu0 %v4729
    %5023 = vmatpush.bf16.msra.mxu0 %v4725
    %5024 = vmatpush.bf16.msra.mxu0 %v4721
    %5025 = vmatpush.bf16.msra.mxu0 %v4717
    %5026 = vmatmul.bf16.gmra.mxu0 %v4096
    %v5027 = vpop.f32.mrf.mxu0
    %v5028 = vadd.f32 %v5015, %v5027
    %v5029 = vpop.f32.mrf.mxu0
    %5030 = vdwg.mxu0
    %5031 = vmatpush.bf16.msra.mxu0 %v4650
    %5032 = vmatpush.bf16.msra.mxu0 %v4646
    %5033 = vmatpush.bf16.msra.mxu0 %v4642
    %5034 = vmatpush.bf16.msra.mxu0 %v4638
    %5035 = vmatpush.bf16.msra.mxu0 %v4634
    %5036 = vmatpush.bf16.msra.mxu0 %v4630
    %5037 = vmatpush.bf16.msra.mxu0 %v4626
    %5038 = vmatpush.bf16.msra.mxu0 %v4622
    %5039 = vmatmul.bf16.gmra.mxu0 %v4093
    %v5040 = vpop.f32.mrf.mxu0
    %v5041 = vadd.f32 %v4230, %v5040
    %v5042 = vpop.f32.mrf.mxu0
    %5043 = vdwg.mxu0
    %5044 = vmatpush.bf16.msra.mxu0 %v4682
    %5045 = vmatpush.bf16.msra.mxu0 %v4678
    %5046 = vmatpush.bf16.msra.mxu0 %v4674
    %5047 = vmatpush.bf16.msra.mxu0 %v4670
    %5048 = vmatpush.bf16.msra.mxu0 %v4666
    %5049 = vmatpush.bf16.msra.mxu0 %v4662
    %5050 = vmatpush.bf16.msra.mxu0 %v4658
    %5051 = vmatpush.bf16.msra.mxu0 %v4654
    %5052 = vmatmul.bf16.gmra.mxu0 %v4094
    %v5053 = vpop.f32.mrf.mxu0
    %v5054 = vadd.f32 %v5041, %v5053
    %v5055 = vpop.f32.mrf.mxu0
    %5056 = vdwg.mxu0
    %5057 = vmatpush.bf16.msra.mxu0 %v4714
    %5058 = vmatpush.bf16.msra.mxu0 %v4710
    %5059 = vmatpush.bf16.msra.mxu0 %v4706
    %5060 = vmatpush.bf16.msra.mxu0 %v4702
    %5061 = vmatpush.bf16.msra.mxu0 %v4698
    %5062 = vmatpush.bf16.msra.mxu0 %v4694
    %5063 = vmatpush.bf16.msra.mxu0 %v4690
    %5064 = vmatpush.bf16.msra.mxu0 %v4686
    %5065 = vmatmul.bf16.gmra.mxu0 %v4095
    %v5066 = vpop.f32.mrf.mxu0
    %v5067 = vadd.f32 %v5054, %v5066
    %v5068 = vpop.f32.mrf.mxu0
    %5069 = vdwg.mxu0
    %5070 = vmatpush.bf16.msra.mxu0 %v4746
    %5071 = vmatpush.bf16.msra.mxu0 %v4742
    %5072 = vmatpush.bf16.msra.mxu0 %v4738
    %5073 = vmatpush.bf16.msra.mxu0 %v4734
    %5074 = vmatpush.bf16.msra.mxu0 %v4730
    %5075 = vmatpush.bf16.msra.mxu0 %v4726
    %5076 = vmatpush.bf16.msra.mxu0 %v4722
    %5077 = vmatpush.bf16.msra.mxu0 %v4718
    %5078 = vmatmul.bf16.gmra.mxu0 %v4096
    %v5079 = vpop.f32.mrf.mxu0
    %v5080 = vadd.f32 %v5067, %v5079
    %v5081 = vpop.f32.mrf.mxu0
    %5082 = vdwg.mxu0
    %v5083 = vmax.f32 %v4924, %v5028
    %v5084 = vmax.f32 %v4976, %v5080
    %v5085 = vmax.f32 %v5083, 0.0
    %v5086 = vmax.f32 %v5084, 0.0
    %5087 = vst [vmem:[#allocation15] sm:$0xff] %v5085
    %5088 = vst [vmem:[#allocation15 + $0x8] sm:$0xff] %v5086
    %v5089 = vmax.f32 %v5085, %v5086
    %5090 = vmax.xlane.f32.xlu0 %v5089
    %v5091 = vpop.xlane.xlu0 %5090
    %v5092 = vsub.f32 %v5085, %v5091
    %v5093 = vsub.f32 %v5086, %v5091
    %v5094 = vmul.f32 %v5092, 1.442695
    %v5095 = vpow.pop %v5094
    %v5096 = vmul.f32 %v5093, 1.442695
    %v5097 = vpow.pop %v5096
    %v5098 = vadd.f32 %v5095, %v5097
    %5099 = vadd.xlane.f32.xlu0 %v5098
    %v5100 = vpop.xlane.xlu0 %5099
    %v5101 = vrcp.pop %v5100
    %v5102 = vpack.c.bf16 %v5095, %v5095
    %v5103 = vpack.c.bf16 %v5097, %v5097
    %v5104 = vld [vmem:[#allocation11] sm:$0xf]
    %v5105 = vld [vmem:[#allocation11 + $0x4] sm:$0xf]
    %v5106 = vld [vmem:[#allocation11 + $0x8] sm:$0xf]
    %v5107 = vld [vmem:[#allocation11 + $0xc] sm:$0xf]
    %v5108 = vld [vmem:[#allocation11 + $0x10] sm:$0xf]
    %v5109 = vld [vmem:[#allocation11 + $0x14] sm:$0xf]
    %v5110 = vld [vmem:[#allocation11 + $0x18] sm:$0xf]
    %v5111 = vld [vmem:[#allocation11 + $0x1c] sm:$0xf]
    %v5112 = vld [vmem:[#allocation11 + $0x20] sm:$0xf]
    %v5113 = vld [vmem:[#allocation11 + $0x24] sm:$0xf]
    %v5114 = vld [vmem:[#allocation11 + $0x28] sm:$0xf]
    %v5115 = vld [vmem:[#allocation11 + $0x2c] sm:$0xf]
    %v5116 = vld [vmem:[#allocation11 + $0x30] sm:$0xf]
    %v5117 = vld [vmem:[#allocation11 + $0x34] sm:$0xf]
    %v5118 = vld [vmem:[#allocation11 + $0x38] sm:$0xf]
    %v5119 = vld [vmem:[#allocation11 + $0x3c] sm:$0xf]
    %v5120 = vld [vmem:[#allocation11 + $0x40] sm:$0xf]
    %v5121 = vld [vmem:[#allocation11 + $0x44] sm:$0xf]
    %v5122 = vld [vmem:[#allocation11 + $0x48] sm:$0xf]
    %v5123 = vld [vmem:[#allocation11 + $0x4c] sm:$0xf]
    %v5124 = vld [vmem:[#allocation11 + $0x50] sm:$0xf]
    %v5125 = vld [vmem:[#allocation11 + $0x54] sm:$0xf]
    %v5126 = vld [vmem:[#allocation11 + $0x58] sm:$0xf]
    %v5127 = vld [vmem:[#allocation11 + $0x5c] sm:$0xf]
    %v5128 = vld [vmem:[#allocation11 + $0x60] sm:$0xf]
    %v5129 = vld [vmem:[#allocation11 + $0x64] sm:$0xf]
    %v5130 = vld [vmem:[#allocation11 + $0x68] sm:$0xf]
    %v5131 = vld [vmem:[#allocation11 + $0x6c] sm:$0xf]
    %v5132 = vld [vmem:[#allocation11 + $0x70] sm:$0xf]
    %v5133 = vld [vmem:[#allocation11 + $0x74] sm:$0xf]
    %v5134 = vld [vmem:[#allocation11 + $0x78] sm:$0xf]
    %v5135 = vld [vmem:[#allocation11 + $0x7c] sm:$0xf]
    %v5168 = vunpack.c.l.b16 %v5104
    %v5169 = vunpack.c.l.b16 %v5105
    %v5170 = vunpack.c.l.b16 %v5106
    %v5171 = vunpack.c.l.b16 %v5107
    %v5172 = vunpack.c.l.b16 %v5108
    %v5173 = vunpack.c.l.b16 %v5109
    %v5174 = vunpack.c.l.b16 %v5110
    %v5175 = vunpack.c.l.b16 %v5111
    %v5176 = vunpack.c.l.b16 %v5112
    %v5177 = vunpack.c.l.b16 %v5113
    %v5178 = vunpack.c.l.b16 %v5114
    %v5179 = vunpack.c.l.b16 %v5115
    %v5180 = vunpack.c.l.b16 %v5116
    %v5181 = vunpack.c.l.b16 %v5117
    %v5182 = vunpack.c.l.b16 %v5118
    %v5183 = vunpack.c.l.b16 %v5119
    %v5184 = vunpack.c.l.b16 %v5120
    %v5185 = vunpack.c.l.b16 %v5121
    %v5186 = vunpack.c.l.b16 %v5122
    %v5187 = vunpack.c.l.b16 %v5123
    %v5188 = vunpack.c.l.b16 %v5124
    %v5189 = vunpack.c.l.b16 %v5125
    %v5190 = vunpack.c.l.b16 %v5126
    %v5191 = vunpack.c.l.b16 %v5127
    %v5192 = vunpack.c.l.b16 %v5128
    %v5193 = vunpack.c.l.b16 %v5129
    %v5194 = vunpack.c.l.b16 %v5130
    %v5195 = vunpack.c.l.b16 %v5131
    %v5196 = vunpack.c.l.b16 %v5132
    %v5197 = vunpack.c.l.b16 %v5133
    %v5198 = vunpack.c.l.b16 %v5134
    %v5199 = vunpack.c.l.b16 %v5135
    %v5200 = vpack.c.b16 %v5169, %v5168
    %v5201 = vpack.c.b16 %v5171, %v5170
    %v5202 = vpack.c.b16 %v5173, %v5172
    %v5203 = vpack.c.b16 %v5175, %v5174
    %v5204 = vpack.c.b16 %v5177, %v5176
    %v5205 = vpack.c.b16 %v5179, %v5178
    %v5206 = vpack.c.b16 %v5181, %v5180
    %v5207 = vpack.c.b16 %v5183, %v5182
    %v5208 = vpack.c.b16 %v5185, %v5184
    %v5209 = vpack.c.b16 %v5187, %v5186
    %v5210 = vpack.c.b16 %v5189, %v5188
    %v5211 = vpack.c.b16 %v5191, %v5190
    %v5212 = vpack.c.b16 %v5193, %v5192
    %v5213 = vpack.c.b16 %v5195, %v5194
    %v5214 = vpack.c.b16 %v5197, %v5196
    %v5215 = vpack.c.b16 %v5199, %v5198
    %5232 = vmatpush.bf16.msra.mxu0 %v5207
    %5233 = vmatpush.bf16.msra.mxu0 %v5206
    %5234 = vmatpush.bf16.msra.mxu0 %v5205
    %5235 = vmatpush.bf16.msra.mxu0 %v5204
    %5236 = vmatpush.bf16.msra.mxu0 %v5203
    %5237 = vmatpush.bf16.msra.mxu0 %v5202
    %5238 = vmatpush.bf16.msra.mxu0 %v5201
    %5239 = vmatpush.bf16.msra.mxu0 %v5200
    %5240 = vmatmul.bf16.gmra.mxu0 %v5102
    %v5241 = vpop.f32.mrf.mxu0
    %v5242 = vadd.f32 0.0, %v5241
    %v5243 = vpop.f32.mrf.mxu0
    %5244 = vdwg.mxu0
    %5245 = vmatpush.bf16.msra.mxu0 %v5215
    %5246 = vmatpush.bf16.msra.mxu0 %v5214
    %5247 = vmatpush.bf16.msra.mxu0 %v5213
    %5248 = vmatpush.bf16.msra.mxu0 %v5212
    %5249 = vmatpush.bf16.msra.mxu0 %v5211
    %5250 = vmatpush.bf16.msra.mxu0 %v5210
    %5251 = vmatpush.bf16.msra.mxu0 %v5209
    %5252 = vmatpush.bf16.msra.mxu0 %v5208
    %5253 = vmatmul.bf16.gmra.mxu0 %v5103
    %v5254 = vpop.f32.mrf.mxu0
    %v5255 = vadd.f32 %v5242, %v5254
    %v5256 = vpop.f32.mrf.mxu0
    %5257 = vdwg.mxu0
    %v5258 = vmul.f32 %v5255, %v5101
    %v5259 = vld [vmem:[#allocation13] sm:$0x1]
    %v5261 = vperm.slane %v5259, 0
    %v5263 = vadd.f32 %v5258, %v5261
    %5264 = vst [vmem:[#allocation14] sm:$0xff] %v5263
    // Predicated region
    $region58: #{tpu_custom_call.1} parent=1 // pred_check
      _
    $region59: #{tpu_custom_call.1} parent=1 // pred_check_branch
      %5266 = sbr.rel (0) target = $region61
    $region60: #{tpu_custom_call.1} parent=1 // pred_region
      %5268 = vsyncadd [#allocation4], 0
      %s5270 = sshll.u32 [#allocation14], 4
      %s5271 = int_to_ptr.vmem [resolvable:$true] %s5270
      %s5272 = sshll.u32 %s7, 4
      %s5273 = int_to_ptr.hbm [resolvable:$true] %s5272
      %5275 = dma.vmem_to_hbm [thread:$0]  %s5271, 128, %s5273, [#allocation4]
    $region61: #{tpu_custom_call.1} parent=1 // pred_fallthru
      _
    // Predicated region
    $region62: #{tpu_custom_call.1} parent=1 // pred_check
      _
    $region63: #{tpu_custom_call.1} parent=1 // pred_check_branch
      %5277 = sbr.rel (0) target = $region65
    $region64: #{tpu_custom_call.1} parent=1 // pred_region
      %5279 = vsyncadd [#allocation16], 0
      %s5281 = sshll.u32 [#allocation15], 4
      %s5282 = int_to_ptr.vmem [resolvable:$true] %s5281
      %s5283 = sshll.u32 %s8, 4
      %s5284 = int_to_ptr.hbm [resolvable:$true] %s5283
      %5286 = dma.vmem_to_hbm [thread:$0]  %s5282, 256, %s5284, [#allocation16]
    $region65: #{tpu_custom_call.1} parent=1 // pred_fallthru
      _
    // Predicated region
    $region66: #{tpu_custom_call.1} parent=1 // pred_check
      _
    $region67: #{tpu_custom_call.1} parent=1 // pred_check_branch
      %5288 = sbr.rel (0) target = $region69
    $region68: #{tpu_custom_call.1} parent=1 // pred_region
      %5290 = dma.done [#allocation4], 128
    $region69: #{tpu_custom_call.1} parent=1 // pred_fallthru
      _
    // Predicated region
    $region70: #{tpu_custom_call.1} parent=1 // pred_check
      _
    $region71: #{tpu_custom_call.1} parent=1 // pred_check_branch
      %5292 = sbr.rel (0) target = $region73
    $region72: #{tpu_custom_call.1} parent=1 // pred_region
      %5294 = dma.done [#allocation16], 256
    $region73: #{tpu_custom_call.1} parent=1 // pred_fallthru
      _
    %5295 = vsyncpa [#allocation3], 1
    %5296 = vsyncpa [#allocation6], 1
    %5297 = vsyncpa [#allocation9], 1
    %5298 = vsyncpa [#allocation12], 1
    %5299 = vsyncpa [#allocation4], 1
    %5300 = vsyncpa [#allocation16], 1

</llo_original>
